<compile_context>
chip_gen: v7x
topology: tpu7x:2x2x1
jax: 0.10.0
libtpu: 0.0.40
codegen_flags: <defaults>
</compile_context>

<pallas_src>
import functools

import jax
import jax.numpy as jnp
from jax import lax
from jax.experimental import pallas as pl
from jax.experimental.pallas import tpu as pltpu
import numpy as np


def _round_up(x, m):
    return ((x + m - 1) // m) * m


def _fused_inception_kernel(x_ref, m_ref, w_ref, o_ref, slab_ref, rhs_ref, *,
                            B, Cin, W, HW, Kmax, KC, EXT, K_used, K_pad):
    # x_ref:    [B, Cin, L2]        flattened input, front offset P*(W+1), zero tail (bf16)
    # m_ref:    [Kmax, Cin, EXT]    per-dx width-boundary mask over extended lanes (bf16)
    # w_ref:    [Cout_pad, K_pad]   fused weights, col = dy*KC + dx*Cin + ci; col K_used = bias (bf16)
    # o_ref:    [B, Cout_pad, HW]   output, spatial (H*W) on the lane axis (f32)
    # slab_ref: [KC, EXT]           VMEM scratch: per-dx masked shifted buffers (bf16)
    # rhs_ref:  [K_pad, B*HW]       VMEM scratch: fused im2col RHS (bf16)
    n_tot = B * HW

    # Bias "ones" row + explicit zeroing of the K-padding rows, so the zero
    # weight columns never multiply uninitialized VMEM (NaN * 0 = NaN).
    row_id = lax.broadcasted_iota(jnp.int32, (K_pad - K_used, n_tot), 0)
    rhs_ref[K_used:K_pad, :] = (row_id == 0).astype(jnp.bfloat16)

    for b in range(B):                        # unrolled; B is small
        x = x_ref[b]                          # [Cin, L2]
        # (1) hoisted mask: one masked, shifted extended buffer per dx
        #     (11 slices + 11 multiplies + 11 scratch stores per image,
        #      vs 121 masked slices + 11 sublane concats previously).
        for dx in range(Kmax):
            slab_ref[dx * Cin:(dx + 1) * Cin, :] = x[:, dx:dx + EXT] * m_ref[dx]
        # (2) per dy, the fused-RHS rows are ONE contiguous lane slice of the
        #     slab at offset dy*W (dy*W is a multiple of W, so the per-dx mask
        #     stays valid for every dy).  Written straight into the RHS slab,
        #     batch b occupying a 128-aligned lane block.
        for dy in range(Kmax):
            rhs_ref[dy * KC:(dy + 1) * KC, b * HW:(b + 1) * HW] = (
                slab_ref[:, dy * W:dy * W + HW])

    # (3) single full-depth MXU pass; bias enters through the ones row.
    res = jnp.dot(w_ref[...], rhs_ref[...], preferred_element_type=jnp.float32)
    for b in range(B):
        o_ref[b] = res[:, b * HW:(b + 1) * HW]


def inception_block_v1(x_nchw, weights, biases, num_kernels):
    """x_nchw: [B, Cin, H, W] float32.
    weights: list of [Cout, Cin, k, k] with k = 2*i + 1.
    biases:  list of [Cout].
    Returns [B, Cout, H, W] (NCHW), matching the PyTorch module forward.
    """
    B, Cin, H, W = x_nchw.shape
    Cout = weights[0].shape[0]
    Kmax = 2 * (num_kernels - 1) + 1
    P = (Kmax - 1) // 2
    HW = H * W
    EXT = HW + (Kmax - 1) * W            # extended lane range consumed by dy shifts
    KC = Kmax * Cin                      # RHS rows per dy block
    K_used = Kmax * KC                   # conv-tap rows of the fused contraction
    K_pad = _round_up(K_used + 1, 128)   # + bias row, padded to MXU-friendly K
    Cout_pad = _round_up(Cout, 8)
    L2 = _round_up((Kmax - 1) + EXT, 128)
    n_tot = B * HW
    assert L2 >= (Kmax - 1) + EXT        # every in-kernel shifted slice stays in-bounds

    # ---- algebraic fusion: mean of linear "same" convs == one Kmax^2 conv ----
    w_avg = jnp.zeros((Kmax, Kmax, Cin, Cout), jnp.float32)
    for i in range(num_kernels):
        k = 2 * i + 1
        off = (Kmax - k) // 2
        w_hwio = jnp.transpose(weights[i].astype(jnp.float32), (2, 3, 1, 0))
        w_avg = w_avg.at[off:off + k, off:off + k].add(w_hwio)
    w_avg = w_avg / float(num_kernels)
    b_avg = jnp.stack(biases, 0).astype(jnp.float32).mean(0)          # [Cout]

    # Pre-padded fused weight matrix [Cout_pad, K_pad]: col = dy*KC + dx*Cin + ci,
    # col K_used = averaged bias (matched by the in-kernel ones row), rest zero.
    w_mat = jnp.transpose(w_avg, (3, 0, 1, 2)).reshape(Cout, K_used)
    w_full = jnp.zeros((Cout_pad, K_pad), jnp.float32)
    w_full = w_full.at[:Cout, :K_used].set(w_mat)
    w_full = w_full.at[:Cout, K_used].set(b_avg)
    w_full = w_full.astype(jnp.bfloat16)

    # ---- input: single reshape + pad + cast (no zeros+set HBM round-trip) ----
    # x_flat[b, c, P*(W+1) + h*W + w] = x[b, c, h, w]; tap (dy, dx) for output
    # pixel p = h*W + w reads lane p + dy*W + dx.  Every lane outside the image
    # is an explicit zero, and the width mask additionally kills any read that
    # crosses the left/right "same"-padding boundary; reads that land in the
    # zero tail are always mask-killed as well (w + dx >= W + P there).
    front = P * (W + 1)
    x_flat = jnp.pad(x_nchw.reshape(B, Cin, HW),
                     ((0, 0), (0, 0), (front, L2 - front - HW))).astype(jnp.bfloat16)

    # Extended per-dx width-boundary mask, pre-broadcast over Cin so the kernel
    # multiply needs no sublane broadcast.  It only depends on (lane mod W), so
    # it is valid for every dy shift (multiples of W).
    q = jnp.arange(EXT, dtype=jnp.int32) % W
    dxs = jnp.arange(Kmax, dtype=jnp.int32)
    mext = ((q[None, :] + dxs[:, None] >= P) &
            (q[None, :] + dxs[:, None] < W + P))
    mext = jnp.broadcast_to(mext[:, None, :], (Kmax, Cin, EXT)).astype(jnp.bfloat16)

    kernel = functools.partial(
        _fused_inception_kernel, B=B, Cin=Cin, W=W, HW=HW, Kmax=Kmax, KC=KC,
        EXT=EXT, K_used=K_used, K_pad=K_pad)

    out = pl.pallas_call(
        kernel,
        out_shape=jax.ShapeDtypeStruct((B, Cout_pad, HW), jnp.float32),
        grid_spec=pltpu.PrefetchScalarGridSpec(
            num_scalar_prefetch=0,
            grid=(1,),                       # single invocation: batch folded onto lanes
            in_specs=[
                pl.BlockSpec((B, Cin, L2), lambda i: (0, 0, 0)),
                pl.BlockSpec((Kmax, Cin, EXT), lambda i: (0, 0, 0)),
                pl.BlockSpec((Cout_pad, K_pad), lambda i: (0, 0)),
            ],
            out_specs=pl.BlockSpec((B, Cout_pad, HW), lambda i: (0, 0, 0)),
            scratch_shapes=[
                pltpu.VMEM((KC, EXT), jnp.bfloat16),        # masked shifted slab
                pltpu.VMEM((K_pad, n_tot), jnp.bfloat16),   # fused im2col RHS
            ],
        ),
        compiler_params=pltpu.CompilerParams(
            dimension_semantics=("arbitrary",)),
    )(x_flat, mext, w_full)

    if Cout_pad != Cout:
        out = out[:, :Cout, :]
    # Output is channel-major with flattened spatial on lanes -> plain reshape.
    return out.reshape(B, Cout, H, W)


def _reference(x_nchw, weights, biases, num_kernels):
    """Pure-JAX reference mirroring the original multi-branch PyTorch forward."""
    outs = []
    for i in range(num_kernels):
        pad = i
        y = lax.conv_general_dilated(
            x_nchw, weights[i], window_strides=(1, 1),
            padding=[(pad, pad), (pad, pad)],
            dimension_numbers=('NCHW', 'OIHW', 'NCHW'))
        y = y + biases[i][None, :, None, None]
        outs.append(y)
    return jnp.stack(outs, axis=-1).mean(-1)


if __name__ == "__main__":
    B, Cin, H, W = 2, 4, 16, 16
    Cout = 8
    num_kernels = 6

    key = jax.random.PRNGKey(0)
    key, kx = jax.random.split(key)
    x = jax.random.normal(kx, (B, Cin, H, W), dtype=jnp.float32)

    # Deterministic Kaiming-normal init (mode='fan_out', relu gain), zero
    # biases — mirrors _initialize_weights().
    weights, biases = [], []
    for i in range(num_kernels):
        k = 2 * i + 1
        key, kw = jax.random.split(key)
        fan_out = Cout * k * k
        std = float(np.sqrt(2.0 / fan_out))
        w = jax.random.normal(kw, (Cout, Cin, k, k), dtype=jnp.float32) * std
        weights.append(w)
        biases.append(jnp.zeros((Cout,), jnp.float32))

    fwd = jax.jit(lambda xx, ww, bb: inception_block_v1(xx, ww, bb, num_kernels))
    out = jax.block_until_ready(fwd(x, weights, biases))

    ref = jax.block_until_ready(_reference(x, weights, biases, num_kernels))
    # bf16 MXU inputs with f32 accumulation -> a few 1e-3 absolute error.
    np.testing.assert_allclose(np.asarray(out), np.asarray(ref),
                               rtol=3e-2, atol=3e-2)
    print("KERNEL_OK")
</pallas_src>

<mosaic_0001>
module attributes {stable_mosaic.version = 11 : i64} {
  func.func @_fused_inception_kernel(%arg0: i32, %arg1: memref<2x4x512xbf16, #tpu.memory_space<vmem>>, %arg2: memref<11x4x416xbf16, #tpu.memory_space<vmem>>, %arg3: memref<8x512xbf16, #tpu.memory_space<vmem>>, %arg4: memref<2x8x256xf32, #tpu.memory_space<vmem>>, %arg5: memref<44x416xbf16, #tpu.memory_space<vmem>>, %arg6: memref<512x512xbf16, #tpu.memory_space<vmem>>) attributes {dimension_semantics = [#tpu.dimension_semantics<arbitrary>], iteration_bounds = array<i64: 1>, scalar_prefetch = 0 : i64, scratch_operands = 2 : i64, tpu.core_type = #tpu.core_type<tc>, window_params = [{pipeline_mode = #tpu.pipeline_mode<synchronous>, transform_indices = @transform_0, window_bounds = array<i64: 2, 4, 512>}, {pipeline_mode = #tpu.pipeline_mode<synchronous>, transform_indices = @transform_1, window_bounds = array<i64: 11, 4, 416>}, {pipeline_mode = #tpu.pipeline_mode<synchronous>, transform_indices = @transform_2, window_bounds = array<i64: 8, 512>}, {pipeline_mode = #tpu.pipeline_mode<synchronous>, transform_indices = @transform_3, window_bounds = array<i64: 2, 8, 256>}]} {
    %0 = tpu.iota {dimensions = array<i32: 0>} : vector<28x512xi32>
    %c0_i32 = arith.constant 0 : i32
    %1 = vector.broadcast %c0_i32 : i32 to vector<28x512xi32>
    %2 = arith.cmpi eq, %0, %1 : vector<28x512xi32>
    %3 = arith.extui %2 : vector<28x512xi1> to vector<28x512xi32>
    %4 = arith.sitofp %3 : vector<28x512xi32> to vector<28x512xf32>
    %5 = arith.truncf %4 : vector<28x512xf32> to vector<28x512xbf16>
    %c484 = arith.constant 484 : index
    %c0 = arith.constant 0 : index
    %6 = vector.load %arg6[%c484, %c0] : memref<512x512xbf16, #tpu.memory_space<vmem>>, vector<28x512xbf16>
    tpu.vector_store %arg6[%c484, %c0], %5 {strides = array<i32>} : memref<512x512xbf16, #tpu.memory_space<vmem>>, vector<28x512xbf16>,
    %c0_0 = arith.constant 0 : index
    %c0_1 = arith.constant 0 : index
    %c0_2 = arith.constant 0 : index
    %7 = vector.load %arg1[%c0_0, %c0_1, %c0_2] : memref<2x4x512xbf16, #tpu.memory_space<vmem>>, vector<1x4x512xbf16>
    %8 = vector.shape_cast %7 : vector<1x4x512xbf16> to vector<4x512xbf16>
    %9 = vector.extract_strided_slice %8 {offsets = [0, 0], sizes = [4, 416], strides = [1, 1]} : vector<4x512xbf16> to vector<4x416xbf16>
    %c0_3 = arith.constant 0 : index
    %c0_4 = arith.constant 0 : index
    %c0_5 = arith.constant 0 : index
    %10 = vector.load %arg2[%c0_3, %c0_4, %c0_5] : memref<11x4x416xbf16, #tpu.memory_space<vmem>>, vector<1x4x416xbf16>
    %11 = vector.shape_cast %10 : vector<1x4x416xbf16> to vector<4x416xbf16>
    %12 = arith.mulf %9, %11 : vector<4x416xbf16>
    %c0_6 = arith.constant 0 : index
    %c0_7 = arith.constant 0 : index
    %13 = vector.load %arg5[%c0_6, %c0_7] : memref<44x416xbf16, #tpu.memory_space<vmem>>, vector<4x416xbf16>
    tpu.vector_store %arg5[%c0_6, %c0_7], %12 {strides = array<i32>} : memref<44x416xbf16, #tpu.memory_space<vmem>>, vector<4x416xbf16>,
    %14 = vector.extract_strided_slice %8 {offsets = [0, 1], sizes = [4, 416], strides = [1, 1]} : vector<4x512xbf16> to vector<4x416xbf16>
    %c1 = arith.constant 1 : index
    %c0_8 = arith.constant 0 : index
    %c0_9 = arith.constant 0 : index
    %15 = vector.load %arg2[%c1, %c0_8, %c0_9] : memref<11x4x416xbf16, #tpu.memory_space<vmem>>, vector<1x4x416xbf16>
    %16 = vector.shape_cast %15 : vector<1x4x416xbf16> to vector<4x416xbf16>
    %17 = arith.mulf %14, %16 : vector<4x416xbf16>
    %c4 = arith.constant 4 : index
    %c0_10 = arith.constant 0 : index
    %18 = vector.load %arg5[%c4, %c0_10] : memref<44x416xbf16, #tpu.memory_space<vmem>>, vector<4x416xbf16>
    tpu.vector_store %arg5[%c4, %c0_10], %17 {strides = array<i32>} : memref<44x416xbf16, #tpu.memory_space<vmem>>, vector<4x416xbf16>,
    %19 = vector.extract_strided_slice %8 {offsets = [0, 2], sizes = [4, 416], strides = [1, 1]} : vector<4x512xbf16> to vector<4x416xbf16>
    %c2 = arith.constant 2 : index
    %c0_11 = arith.constant 0 : index
    %c0_12 = arith.constant 0 : index
    %20 = vector.load %arg2[%c2, %c0_11, %c0_12] : memref<11x4x416xbf16, #tpu.memory_space<vmem>>, vector<1x4x416xbf16>
    %21 = vector.shape_cast %20 : vector<1x4x416xbf16> to vector<4x416xbf16>
    %22 = arith.mulf %19, %21 : vector<4x416xbf16>
    %c8 = arith.constant 8 : index
    %c0_13 = arith.constant 0 : index
    %23 = vector.load %arg5[%c8, %c0_13] : memref<44x416xbf16, #tpu.memory_space<vmem>>, vector<4x416xbf16>
    tpu.vector_store %arg5[%c8, %c0_13], %22 {strides = array<i32>} : memref<44x416xbf16, #tpu.memory_space<vmem>>, vector<4x416xbf16>,
    %24 = vector.extract_strided_slice %8 {offsets = [0, 3], sizes = [4, 416], strides = [1, 1]} : vector<4x512xbf16> to vector<4x416xbf16>
    %c3 = arith.constant 3 : index
    %c0_14 = arith.constant 0 : index
    %c0_15 = arith.constant 0 : index
    %25 = vector.load %arg2[%c3, %c0_14, %c0_15] : memref<11x4x416xbf16, #tpu.memory_space<vmem>>, vector<1x4x416xbf16>
    %26 = vector.shape_cast %25 : vector<1x4x416xbf16> to vector<4x416xbf16>
    %27 = arith.mulf %24, %26 : vector<4x416xbf16>
    %c12 = arith.constant 12 : index
    %c0_16 = arith.constant 0 : index
    %28 = vector.load %arg5[%c12, %c0_16] : memref<44x416xbf16, #tpu.memory_space<vmem>>, vector<4x416xbf16>
    tpu.vector_store %arg5[%c12, %c0_16], %27 {strides = array<i32>} : memref<44x416xbf16, #tpu.memory_space<vmem>>, vector<4x416xbf16>,
    %29 = vector.extract_strided_slice %8 {offsets = [0, 4], sizes = [4, 416], strides = [1, 1]} : vector<4x512xbf16> to vector<4x416xbf16>
    %c4_17 = arith.constant 4 : index
    %c0_18 = arith.constant 0 : index
    %c0_19 = arith.constant 0 : index
    %30 = vector.load %arg2[%c4_17, %c0_18, %c0_19] : memref<11x4x416xbf16, #tpu.memory_space<vmem>>, vector<1x4x416xbf16>
    %31 = vector.shape_cast %30 : vector<1x4x416xbf16> to vector<4x416xbf16>
    %32 = arith.mulf %29, %31 : vector<4x416xbf16>
    %c16 = arith.constant 16 : index
    %c0_20 = arith.constant 0 : index
    %33 = vector.load %arg5[%c16, %c0_20] : memref<44x416xbf16, #tpu.memory_space<vmem>>, vector<4x416xbf16>
    tpu.vector_store %arg5[%c16, %c0_20], %32 {strides = array<i32>} : memref<44x416xbf16, #tpu.memory_space<vmem>>, vector<4x416xbf16>,
    %34 = vector.extract_strided_slice %8 {offsets = [0, 5], sizes = [4, 416], strides = [1, 1]} : vector<4x512xbf16> to vector<4x416xbf16>
    %c5 = arith.constant 5 : index
    %c0_21 = arith.constant 0 : index
    %c0_22 = arith.constant 0 : index
    %35 = vector.load %arg2[%c5, %c0_21, %c0_22] : memref<11x4x416xbf16, #tpu.memory_space<vmem>>, vector<1x4x416xbf16>
    %36 = vector.shape_cast %35 : vector<1x4x416xbf16> to vector<4x416xbf16>
    %37 = arith.mulf %34, %36 : vector<4x416xbf16>
    %c20 = arith.constant 20 : index
    %c0_23 = arith.constant 0 : index
    %38 = vector.load %arg5[%c20, %c0_23] : memref<44x416xbf16, #tpu.memory_space<vmem>>, vector<4x416xbf16>
    tpu.vector_store %arg5[%c20, %c0_23], %37 {strides = array<i32>} : memref<44x416xbf16, #tpu.memory_space<vmem>>, vector<4x416xbf16>,
    %39 = vector.extract_strided_slice %8 {offsets = [0, 6], sizes = [4, 416], strides = [1, 1]} : vector<4x512xbf16> to vector<4x416xbf16>
    %c6 = arith.constant 6 : index
    %c0_24 = arith.constant 0 : index
    %c0_25 = arith.constant 0 : index
    %40 = vector.load %arg2[%c6, %c0_24, %c0_25] : memref<11x4x416xbf16, #tpu.memory_space<vmem>>, vector<1x4x416xbf16>
    %41 = vector.shape_cast %40 : vector<1x4x416xbf16> to vector<4x416xbf16>
    %42 = arith.mulf %39, %41 : vector<4x416xbf16>
    %c24 = arith.constant 24 : index
    %c0_26 = arith.constant 0 : index
    %43 = vector.load %arg5[%c24, %c0_26] : memref<44x416xbf16, #tpu.memory_space<vmem>>, vector<4x416xbf16>
    tpu.vector_store %arg5[%c24, %c0_26], %42 {strides = array<i32>} : memref<44x416xbf16, #tpu.memory_space<vmem>>, vector<4x416xbf16>,
    %44 = vector.extract_strided_slice %8 {offsets = [0, 7], sizes = [4, 416], strides = [1, 1]} : vector<4x512xbf16> to vector<4x416xbf16>
    %c7 = arith.constant 7 : index
    %c0_27 = arith.constant 0 : index
    %c0_28 = arith.constant 0 : index
    %45 = vector.load %arg2[%c7, %c0_27, %c0_28] : memref<11x4x416xbf16, #tpu.memory_space<vmem>>, vector<1x4x416xbf16>
    %46 = vector.shape_cast %45 : vector<1x4x416xbf16> to vector<4x416xbf16>
    %47 = arith.mulf %44, %46 : vector<4x416xbf16>
    %c28 = arith.constant 28 : index
    %c0_29 = arith.constant 0 : index
    %48 = vector.load %arg5[%c28, %c0_29] : memref<44x416xbf16, #tpu.memory_space<vmem>>, vector<4x416xbf16>
    tpu.vector_store %arg5[%c28, %c0_29], %47 {strides = array<i32>} : memref<44x416xbf16, #tpu.memory_space<vmem>>, vector<4x416xbf16>,
    %49 = vector.extract_strided_slice %8 {offsets = [0, 8], sizes = [4, 416], strides = [1, 1]} : vector<4x512xbf16> to vector<4x416xbf16>
    %c8_30 = arith.constant 8 : index
    %c0_31 = arith.constant 0 : index
    %c0_32 = arith.constant 0 : index
    %50 = vector.load %arg2[%c8_30, %c0_31, %c0_32] : memref<11x4x416xbf16, #tpu.memory_space<vmem>>, vector<1x4x416xbf16>
    %51 = vector.shape_cast %50 : vector<1x4x416xbf16> to vector<4x416xbf16>
    %52 = arith.mulf %49, %51 : vector<4x416xbf16>
    %c32 = arith.constant 32 : index
    %c0_33 = arith.constant 0 : index
    %53 = vector.load %arg5[%c32, %c0_33] : memref<44x416xbf16, #tpu.memory_space<vmem>>, vector<4x416xbf16>
    tpu.vector_store %arg5[%c32, %c0_33], %52 {strides = array<i32>} : memref<44x416xbf16, #tpu.memory_space<vmem>>, vector<4x416xbf16>,
    %54 = vector.extract_strided_slice %8 {offsets = [0, 9], sizes = [4, 416], strides = [1, 1]} : vector<4x512xbf16> to vector<4x416xbf16>
    %c9 = arith.constant 9 : index
    %c0_34 = arith.constant 0 : index
    %c0_35 = arith.constant 0 : index
    %55 = vector.load %arg2[%c9, %c0_34, %c0_35] : memref<11x4x416xbf16, #tpu.memory_space<vmem>>, vector<1x4x416xbf16>
    %56 = vector.shape_cast %55 : vector<1x4x416xbf16> to vector<4x416xbf16>
    %57 = arith.mulf %54, %56 : vector<4x416xbf16>
    %c36 = arith.constant 36 : index
    %c0_36 = arith.constant 0 : index
    %58 = vector.load %arg5[%c36, %c0_36] : memref<44x416xbf16, #tpu.memory_space<vmem>>, vector<4x416xbf16>
    tpu.vector_store %arg5[%c36, %c0_36], %57 {strides = array<i32>} : memref<44x416xbf16, #tpu.memory_space<vmem>>, vector<4x416xbf16>,
    %59 = vector.extract_strided_slice %8 {offsets = [0, 10], sizes = [4, 416], strides = [1, 1]} : vector<4x512xbf16> to vector<4x416xbf16>
    %c10 = arith.constant 10 : index
    %c0_37 = arith.constant 0 : index
    %c0_38 = arith.constant 0 : index
    %60 = vector.load %arg2[%c10, %c0_37, %c0_38] : memref<11x4x416xbf16, #tpu.memory_space<vmem>>, vector<1x4x416xbf16>
    %61 = vector.shape_cast %60 : vector<1x4x416xbf16> to vector<4x416xbf16>
    %62 = arith.mulf %59, %61 : vector<4x416xbf16>
    %c40 = arith.constant 40 : index
    %c0_39 = arith.constant 0 : index
    %63 = vector.load %arg5[%c40, %c0_39] : memref<44x416xbf16, #tpu.memory_space<vmem>>, vector<4x416xbf16>
    tpu.vector_store %arg5[%c40, %c0_39], %62 {strides = array<i32>} : memref<44x416xbf16, #tpu.memory_space<vmem>>, vector<4x416xbf16>,
    %c0_40 = arith.constant 0 : index
    %c0_41 = arith.constant 0 : index
    %64 = vector.load %arg5[%c0_40, %c0_41] : memref<44x416xbf16, #tpu.memory_space<vmem>>, vector<44x256xbf16>
    %c0_42 = arith.constant 0 : index
    %c0_43 = arith.constant 0 : index
    %65 = vector.load %arg6[%c0_42, %c0_43] : memref<512x512xbf16, #tpu.memory_space<vmem>>, vector<44x256xbf16>
    tpu.vector_store %arg6[%c0_42, %c0_43], %64 {strides = array<i32>} : memref<512x512xbf16, #tpu.memory_space<vmem>>, vector<44x256xbf16>,
    %c0_44 = arith.constant 0 : index
    %c16_45 = arith.constant 16 : index
    %66 = vector.load %arg5[%c0_44, %c16_45] : memref<44x416xbf16, #tpu.memory_space<vmem>>, vector<44x256xbf16>
    %c44 = arith.constant 44 : index
    %c0_46 = arith.constant 0 : index
    %67 = vector.load %arg6[%c44, %c0_46] : memref<512x512xbf16, #tpu.memory_space<vmem>>, vector<44x256xbf16>
    tpu.vector_store %arg6[%c44, %c0_46], %66 {strides = array<i32>} : memref<512x512xbf16, #tpu.memory_space<vmem>>, vector<44x256xbf16>,
    %c0_47 = arith.constant 0 : index
    %c32_48 = arith.constant 32 : index
    %68 = vector.load %arg5[%c0_47, %c32_48] : memref<44x416xbf16, #tpu.memory_space<vmem>>, vector<44x256xbf16>
    %c88 = arith.constant 88 : index
    %c0_49 = arith.constant 0 : index
    %69 = vector.load %arg6[%c88, %c0_49] : memref<512x512xbf16, #tpu.memory_space<vmem>>, vector<44x256xbf16>
    tpu.vector_store %arg6[%c88, %c0_49], %68 {strides = array<i32>} : memref<512x512xbf16, #tpu.memory_space<vmem>>, vector<44x256xbf16>,
    %c0_50 = arith.constant 0 : index
    %c48 = arith.constant 48 : index
    %70 = vector.load %arg5[%c0_50, %c48] : memref<44x416xbf16, #tpu.memory_space<vmem>>, vector<44x256xbf16>
    %c132 = arith.constant 132 : index
    %c0_51 = arith.constant 0 : index
    %71 = vector.load %arg6[%c132, %c0_51] : memref<512x512xbf16, #tpu.memory_space<vmem>>, vector<44x256xbf16>
    tpu.vector_store %arg6[%c132, %c0_51], %70 {strides = array<i32>} : memref<512x512xbf16, #tpu.memory_space<vmem>>, vector<44x256xbf16>,
    %c0_52 = arith.constant 0 : index
    %c64 = arith.constant 64 : index
    %72 = vector.load %arg5[%c0_52, %c64] : memref<44x416xbf16, #tpu.memory_space<vmem>>, vector<44x256xbf16>
    %c176 = arith.constant 176 : index
    %c0_53 = arith.constant 0 : index
    %73 = vector.load %arg6[%c176, %c0_53] : memref<512x512xbf16, #tpu.memory_space<vmem>>, vector<44x256xbf16>
    tpu.vector_store %arg6[%c176, %c0_53], %72 {strides = array<i32>} : memref<512x512xbf16, #tpu.memory_space<vmem>>, vector<44x256xbf16>,
    %c0_54 = arith.constant 0 : index
    %c80 = arith.constant 80 : index
    %74 = vector.load %arg5[%c0_54, %c80] : memref<44x416xbf16, #tpu.memory_space<vmem>>, vector<44x256xbf16>
    %c220 = arith.constant 220 : index
    %c0_55 = arith.constant 0 : index
    %75 = vector.load %arg6[%c220, %c0_55] : memref<512x512xbf16, #tpu.memory_space<vmem>>, vector<44x256xbf16>
    tpu.vector_store %arg6[%c220, %c0_55], %74 {strides = array<i32>} : memref<512x512xbf16, #tpu.memory_space<vmem>>, vector<44x256xbf16>,
    %c0_56 = arith.constant 0 : index
    %c96 = arith.constant 96 : index
    %76 = vector.load %arg5[%c0_56, %c96] : memref<44x416xbf16, #tpu.memory_space<vmem>>, vector<44x256xbf16>
    %c264 = arith.constant 264 : index
    %c0_57 = arith.constant 0 : index
    %77 = vector.load %arg6[%c264, %c0_57] : memref<512x512xbf16, #tpu.memory_space<vmem>>, vector<44x256xbf16>
    tpu.vector_store %arg6[%c264, %c0_57], %76 {strides = array<i32>} : memref<512x512xbf16, #tpu.memory_space<vmem>>, vector<44x256xbf16>,
    %c0_58 = arith.constant 0 : index
    %c112 = arith.constant 112 : index
    %78 = vector.load %arg5[%c0_58, %c112] : memref<44x416xbf16, #tpu.memory_space<vmem>>, vector<44x256xbf16>
    %c308 = arith.constant 308 : index
    %c0_59 = arith.constant 0 : index
    %79 = vector.load %arg6[%c308, %c0_59] : memref<512x512xbf16, #tpu.memory_space<vmem>>, vector<44x256xbf16>
    tpu.vector_store %arg6[%c308, %c0_59], %78 {strides = array<i32>} : memref<512x512xbf16, #tpu.memory_space<vmem>>, vector<44x256xbf16>,
    %c0_60 = arith.constant 0 : index
    %c128 = arith.constant 128 : index
    %80 = vector.load %arg5[%c0_60, %c128] : memref<44x416xbf16, #tpu.memory_space<vmem>>, vector<44x256xbf16>
    %c352 = arith.constant 352 : index
    %c0_61 = arith.constant 0 : index
    %81 = vector.load %arg6[%c352, %c0_61] : memref<512x512xbf16, #tpu.memory_space<vmem>>, vector<44x256xbf16>
    tpu.vector_store %arg6[%c352, %c0_61], %80 {strides = array<i32>} : memref<512x512xbf16, #tpu.memory_space<vmem>>, vector<44x256xbf16>,
    %c0_62 = arith.constant 0 : index
    %c144 = arith.constant 144 : index
    %82 = vector.load %arg5[%c0_62, %c144] : memref<44x416xbf16, #tpu.memory_space<vmem>>, vector<44x256xbf16>
    %c396 = arith.constant 396 : index
    %c0_63 = arith.constant 0 : index
    %83 = vector.load %arg6[%c396, %c0_63] : memref<512x512xbf16, #tpu.memory_space<vmem>>, vector<44x256xbf16>
    tpu.vector_store %arg6[%c396, %c0_63], %82 {strides = array<i32>} : memref<512x512xbf16, #tpu.memory_space<vmem>>, vector<44x256xbf16>,
    %c0_64 = arith.constant 0 : index
    %c160 = arith.constant 160 : index
    %84 = vector.load %arg5[%c0_64, %c160] : memref<44x416xbf16, #tpu.memory_space<vmem>>, vector<44x256xbf16>
    %c440 = arith.constant 440 : index
    %c0_65 = arith.constant 0 : index
    %85 = vector.load %arg6[%c440, %c0_65] : memref<512x512xbf16, #tpu.memory_space<vmem>>, vector<44x256xbf16>
    tpu.vector_store %arg6[%c440, %c0_65], %84 {strides = array<i32>} : memref<512x512xbf16, #tpu.memory_space<vmem>>, vector<44x256xbf16>,
    %c1_66 = arith.constant 1 : index
    %c0_67 = arith.constant 0 : index
    %c0_68 = arith.constant 0 : index
    %86 = vector.load %arg1[%c1_66, %c0_67, %c0_68] : memref<2x4x512xbf16, #tpu.memory_space<vmem>>, vector<1x4x512xbf16>
    %87 = vector.shape_cast %86 : vector<1x4x512xbf16> to vector<4x512xbf16>
    %88 = vector.extract_strided_slice %87 {offsets = [0, 0], sizes = [4, 416], strides = [1, 1]} : vector<4x512xbf16> to vector<4x416xbf16>
    %c0_69 = arith.constant 0 : index
    %c0_70 = arith.constant 0 : index
    %c0_71 = arith.constant 0 : index
    %89 = vector.load %arg2[%c0_69, %c0_70, %c0_71] : memref<11x4x416xbf16, #tpu.memory_space<vmem>>, vector<1x4x416xbf16>
    %90 = vector.shape_cast %89 : vector<1x4x416xbf16> to vector<4x416xbf16>
    %91 = arith.mulf %88, %90 : vector<4x416xbf16>
    %c0_72 = arith.constant 0 : index
    %c0_73 = arith.constant 0 : index
    %92 = vector.load %arg5[%c0_72, %c0_73] : memref<44x416xbf16, #tpu.memory_space<vmem>>, vector<4x416xbf16>
    tpu.vector_store %arg5[%c0_72, %c0_73], %91 {strides = array<i32>} : memref<44x416xbf16, #tpu.memory_space<vmem>>, vector<4x416xbf16>,
    %93 = vector.extract_strided_slice %87 {offsets = [0, 1], sizes = [4, 416], strides = [1, 1]} : vector<4x512xbf16> to vector<4x416xbf16>
    %c1_74 = arith.constant 1 : index
    %c0_75 = arith.constant 0 : index
    %c0_76 = arith.constant 0 : index
    %94 = vector.load %arg2[%c1_74, %c0_75, %c0_76] : memref<11x4x416xbf16, #tpu.memory_space<vmem>>, vector<1x4x416xbf16>
    %95 = vector.shape_cast %94 : vector<1x4x416xbf16> to vector<4x416xbf16>
    %96 = arith.mulf %93, %95 : vector<4x416xbf16>
    %c4_77 = arith.constant 4 : index
    %c0_78 = arith.constant 0 : index
    %97 = vector.load %arg5[%c4_77, %c0_78] : memref<44x416xbf16, #tpu.memory_space<vmem>>, vector<4x416xbf16>
    tpu.vector_store %arg5[%c4_77, %c0_78], %96 {strides = array<i32>} : memref<44x416xbf16, #tpu.memory_space<vmem>>, vector<4x416xbf16>,
    %98 = vector.extract_strided_slice %87 {offsets = [0, 2], sizes = [4, 416], strides = [1, 1]} : vector<4x512xbf16> to vector<4x416xbf16>
    %c2_79 = arith.constant 2 : index
    %c0_80 = arith.constant 0 : index
    %c0_81 = arith.constant 0 : index
    %99 = vector.load %arg2[%c2_79, %c0_80, %c0_81] : memref<11x4x416xbf16, #tpu.memory_space<vmem>>, vector<1x4x416xbf16>
    %100 = vector.shape_cast %99 : vector<1x4x416xbf16> to vector<4x416xbf16>
    %101 = arith.mulf %98, %100 : vector<4x416xbf16>
    %c8_82 = arith.constant 8 : index
    %c0_83 = arith.constant 0 : index
    %102 = vector.load %arg5[%c8_82, %c0_83] : memref<44x416xbf16, #tpu.memory_space<vmem>>, vector<4x416xbf16>
    tpu.vector_store %arg5[%c8_82, %c0_83], %101 {strides = array<i32>} : memref<44x416xbf16, #tpu.memory_space<vmem>>, vector<4x416xbf16>,
    %103 = vector.extract_strided_slice %87 {offsets = [0, 3], sizes = [4, 416], strides = [1, 1]} : vector<4x512xbf16> to vector<4x416xbf16>
    %c3_84 = arith.constant 3 : index
    %c0_85 = arith.constant 0 : index
    %c0_86 = arith.constant 0 : index
    %104 = vector.load %arg2[%c3_84, %c0_85, %c0_86] : memref<11x4x416xbf16, #tpu.memory_space<vmem>>, vector<1x4x416xbf16>
    %105 = vector.shape_cast %104 : vector<1x4x416xbf16> to vector<4x416xbf16>
    %106 = arith.mulf %103, %105 : vector<4x416xbf16>
    %c12_87 = arith.constant 12 : index
    %c0_88 = arith.constant 0 : index
    %107 = vector.load %arg5[%c12_87, %c0_88] : memref<44x416xbf16, #tpu.memory_space<vmem>>, vector<4x416xbf16>
    tpu.vector_store %arg5[%c12_87, %c0_88], %106 {strides = array<i32>} : memref<44x416xbf16, #tpu.memory_space<vmem>>, vector<4x416xbf16>,
    %108 = vector.extract_strided_slice %87 {offsets = [0, 4], sizes = [4, 416], strides = [1, 1]} : vector<4x512xbf16> to vector<4x416xbf16>
    %c4_89 = arith.constant 4 : index
    %c0_90 = arith.constant 0 : index
    %c0_91 = arith.constant 0 : index
    %109 = vector.load %arg2[%c4_89, %c0_90, %c0_91] : memref<11x4x416xbf16, #tpu.memory_space<vmem>>, vector<1x4x416xbf16>
    %110 = vector.shape_cast %109 : vector<1x4x416xbf16> to vector<4x416xbf16>
    %111 = arith.mulf %108, %110 : vector<4x416xbf16>
    %c16_92 = arith.constant 16 : index
    %c0_93 = arith.constant 0 : index
    %112 = vector.load %arg5[%c16_92, %c0_93] : memref<44x416xbf16, #tpu.memory_space<vmem>>, vector<4x416xbf16>
    tpu.vector_store %arg5[%c16_92, %c0_93], %111 {strides = array<i32>} : memref<44x416xbf16, #tpu.memory_space<vmem>>, vector<4x416xbf16>,
    %113 = vector.extract_strided_slice %87 {offsets = [0, 5], sizes = [4, 416], strides = [1, 1]} : vector<4x512xbf16> to vector<4x416xbf16>
    %c5_94 = arith.constant 5 : index
    %c0_95 = arith.constant 0 : index
    %c0_96 = arith.constant 0 : index
    %114 = vector.load %arg2[%c5_94, %c0_95, %c0_96] : memref<11x4x416xbf16, #tpu.memory_space<vmem>>, vector<1x4x416xbf16>
    %115 = vector.shape_cast %114 : vector<1x4x416xbf16> to vector<4x416xbf16>
    %116 = arith.mulf %113, %115 : vector<4x416xbf16>
    %c20_97 = arith.constant 20 : index
    %c0_98 = arith.constant 0 : index
    %117 = vector.load %arg5[%c20_97, %c0_98] : memref<44x416xbf16, #tpu.memory_space<vmem>>, vector<4x416xbf16>
    tpu.vector_store %arg5[%c20_97, %c0_98], %116 {strides = array<i32>} : memref<44x416xbf16, #tpu.memory_space<vmem>>, vector<4x416xbf16>,
    %118 = vector.extract_strided_slice %87 {offsets = [0, 6], sizes = [4, 416], strides = [1, 1]} : vector<4x512xbf16> to vector<4x416xbf16>
    %c6_99 = arith.constant 6 : index
    %c0_100 = arith.constant 0 : index
    %c0_101 = arith.constant 0 : index
    %119 = vector.load %arg2[%c6_99, %c0_100, %c0_101] : memref<11x4x416xbf16, #tpu.memory_space<vmem>>, vector<1x4x416xbf16>
    %120 = vector.shape_cast %119 : vector<1x4x416xbf16> to vector<4x416xbf16>
    %121 = arith.mulf %118, %120 : vector<4x416xbf16>
    %c24_102 = arith.constant 24 : index
    %c0_103 = arith.constant 0 : index
    %122 = vector.load %arg5[%c24_102, %c0_103] : memref<44x416xbf16, #tpu.memory_space<vmem>>, vector<4x416xbf16>
    tpu.vector_store %arg5[%c24_102, %c0_103], %121 {strides = array<i32>} : memref<44x416xbf16, #tpu.memory_space<vmem>>, vector<4x416xbf16>,
    %123 = vector.extract_strided_slice %87 {offsets = [0, 7], sizes = [4, 416], strides = [1, 1]} : vector<4x512xbf16> to vector<4x416xbf16>
    %c7_104 = arith.constant 7 : index
    %c0_105 = arith.constant 0 : index
    %c0_106 = arith.constant 0 : index
    %124 = vector.load %arg2[%c7_104, %c0_105, %c0_106] : memref<11x4x416xbf16, #tpu.memory_space<vmem>>, vector<1x4x416xbf16>
    %125 = vector.shape_cast %124 : vector<1x4x416xbf16> to vector<4x416xbf16>
    %126 = arith.mulf %123, %125 : vector<4x416xbf16>
    %c28_107 = arith.constant 28 : index
    %c0_108 = arith.constant 0 : index
    %127 = vector.load %arg5[%c28_107, %c0_108] : memref<44x416xbf16, #tpu.memory_space<vmem>>, vector<4x416xbf16>
    tpu.vector_store %arg5[%c28_107, %c0_108], %126 {strides = array<i32>} : memref<44x416xbf16, #tpu.memory_space<vmem>>, vector<4x416xbf16>,
    %128 = vector.extract_strided_slice %87 {offsets = [0, 8], sizes = [4, 416], strides = [1, 1]} : vector<4x512xbf16> to vector<4x416xbf16>
    %c8_109 = arith.constant 8 : index
    %c0_110 = arith.constant 0 : index
    %c0_111 = arith.constant 0 : index
    %129 = vector.load %arg2[%c8_109, %c0_110, %c0_111] : memref<11x4x416xbf16, #tpu.memory_space<vmem>>, vector<1x4x416xbf16>
    %130 = vector.shape_cast %129 : vector<1x4x416xbf16> to vector<4x416xbf16>
    %131 = arith.mulf %128, %130 : vector<4x416xbf16>
    %c32_112 = arith.constant 32 : index
    %c0_113 = arith.constant 0 : index
    %132 = vector.load %arg5[%c32_112, %c0_113] : memref<44x416xbf16, #tpu.memory_space<vmem>>, vector<4x416xbf16>
    tpu.vector_store %arg5[%c32_112, %c0_113], %131 {strides = array<i32>} : memref<44x416xbf16, #tpu.memory_space<vmem>>, vector<4x416xbf16>,
    %133 = vector.extract_strided_slice %87 {offsets = [0, 9], sizes = [4, 416], strides = [1, 1]} : vector<4x512xbf16> to vector<4x416xbf16>
    %c9_114 = arith.constant 9 : index
    %c0_115 = arith.constant 0 : index
    %c0_116 = arith.constant 0 : index
    %134 = vector.load %arg2[%c9_114, %c0_115, %c0_116] : memref<11x4x416xbf16, #tpu.memory_space<vmem>>, vector<1x4x416xbf16>
    %135 = vector.shape_cast %134 : vector<1x4x416xbf16> to vector<4x416xbf16>
    %136 = arith.mulf %133, %135 : vector<4x416xbf16>
    %c36_117 = arith.constant 36 : index
    %c0_118 = arith.constant 0 : index
    %137 = vector.load %arg5[%c36_117, %c0_118] : memref<44x416xbf16, #tpu.memory_space<vmem>>, vector<4x416xbf16>
    tpu.vector_store %arg5[%c36_117, %c0_118], %136 {strides = array<i32>} : memref<44x416xbf16, #tpu.memory_space<vmem>>, vector<4x416xbf16>,
    %138 = vector.extract_strided_slice %87 {offsets = [0, 10], sizes = [4, 416], strides = [1, 1]} : vector<4x512xbf16> to vector<4x416xbf16>
    %c10_119 = arith.constant 10 : index
    %c0_120 = arith.constant 0 : index
    %c0_121 = arith.constant 0 : index
    %139 = vector.load %arg2[%c10_119, %c0_120, %c0_121] : memref<11x4x416xbf16, #tpu.memory_space<vmem>>, vector<1x4x416xbf16>
    %140 = vector.shape_cast %139 : vector<1x4x416xbf16> to vector<4x416xbf16>
    %141 = arith.mulf %138, %140 : vector<4x416xbf16>
    %c40_122 = arith.constant 40 : index
    %c0_123 = arith.constant 0 : index
    %142 = vector.load %arg5[%c40_122, %c0_123] : memref<44x416xbf16, #tpu.memory_space<vmem>>, vector<4x416xbf16>
    tpu.vector_store %arg5[%c40_122, %c0_123], %141 {strides = array<i32>} : memref<44x416xbf16, #tpu.memory_space<vmem>>, vector<4x416xbf16>,
    %c0_124 = arith.constant 0 : index
    %c0_125 = arith.constant 0 : index
    %143 = vector.load %arg5[%c0_124, %c0_125] : memref<44x416xbf16, #tpu.memory_space<vmem>>, vector<44x256xbf16>
    %c0_126 = arith.constant 0 : index
    %c256 = arith.constant 256 : index
    %144 = vector.load %arg6[%c0_126, %c256] : memref<512x512xbf16, #tpu.memory_space<vmem>>, vector<44x256xbf16>
    tpu.vector_store %arg6[%c0_126, %c256], %143 {strides = array<i32>} : memref<512x512xbf16, #tpu.memory_space<vmem>>, vector<44x256xbf16>,
    %c0_127 = arith.constant 0 : index
    %c16_128 = arith.constant 16 : index
    %145 = vector.load %arg5[%c0_127, %c16_128] : memref<44x416xbf16, #tpu.memory_space<vmem>>, vector<44x256xbf16>
    %c44_129 = arith.constant 44 : index
    %c256_130 = arith.constant 256 : index
    %146 = vector.load %arg6[%c44_129, %c256_130] : memref<512x512xbf16, #tpu.memory_space<vmem>>, vector<44x256xbf16>
    tpu.vector_store %arg6[%c44_129, %c256_130], %145 {strides = array<i32>} : memref<512x512xbf16, #tpu.memory_space<vmem>>, vector<44x256xbf16>,
    %c0_131 = arith.constant 0 : index
    %c32_132 = arith.constant 32 : index
    %147 = vector.load %arg5[%c0_131, %c32_132] : memref<44x416xbf16, #tpu.memory_space<vmem>>, vector<44x256xbf16>
    %c88_133 = arith.constant 88 : index
    %c256_134 = arith.constant 256 : index
    %148 = vector.load %arg6[%c88_133, %c256_134] : memref<512x512xbf16, #tpu.memory_space<vmem>>, vector<44x256xbf16>
    tpu.vector_store %arg6[%c88_133, %c256_134], %147 {strides = array<i32>} : memref<512x512xbf16, #tpu.memory_space<vmem>>, vector<44x256xbf16>,
    %c0_135 = arith.constant 0 : index
    %c48_136 = arith.constant 48 : index
    %149 = vector.load %arg5[%c0_135, %c48_136] : memref<44x416xbf16, #tpu.memory_space<vmem>>, vector<44x256xbf16>
    %c132_137 = arith.constant 132 : index
    %c256_138 = arith.constant 256 : index
    %150 = vector.load %arg6[%c132_137, %c256_138] : memref<512x512xbf16, #tpu.memory_space<vmem>>, vector<44x256xbf16>
    tpu.vector_store %arg6[%c132_137, %c256_138], %149 {strides = array<i32>} : memref<512x512xbf16, #tpu.memory_space<vmem>>, vector<44x256xbf16>,
    %c0_139 = arith.constant 0 : index
    %c64_140 = arith.constant 64 : index
    %151 = vector.load %arg5[%c0_139, %c64_140] : memref<44x416xbf16, #tpu.memory_space<vmem>>, vector<44x256xbf16>
    %c176_141 = arith.constant 176 : index
    %c256_142 = arith.constant 256 : index
    %152 = vector.load %arg6[%c176_141, %c256_142] : memref<512x512xbf16, #tpu.memory_space<vmem>>, vector<44x256xbf16>
    tpu.vector_store %arg6[%c176_141, %c256_142], %151 {strides = array<i32>} : memref<512x512xbf16, #tpu.memory_space<vmem>>, vector<44x256xbf16>,
    %c0_143 = arith.constant 0 : index
    %c80_144 = arith.constant 80 : index
    %153 = vector.load %arg5[%c0_143, %c80_144] : memref<44x416xbf16, #tpu.memory_space<vmem>>, vector<44x256xbf16>
    %c220_145 = arith.constant 220 : index
    %c256_146 = arith.constant 256 : index
    %154 = vector.load %arg6[%c220_145, %c256_146] : memref<512x512xbf16, #tpu.memory_space<vmem>>, vector<44x256xbf16>
    tpu.vector_store %arg6[%c220_145, %c256_146], %153 {strides = array<i32>} : memref<512x512xbf16, #tpu.memory_space<vmem>>, vector<44x256xbf16>,
    %c0_147 = arith.constant 0 : index
    %c96_148 = arith.constant 96 : index
    %155 = vector.load %arg5[%c0_147, %c96_148] : memref<44x416xbf16, #tpu.memory_space<vmem>>, vector<44x256xbf16>
    %c264_149 = arith.constant 264 : index
    %c256_150 = arith.constant 256 : index
    %156 = vector.load %arg6[%c264_149, %c256_150] : memref<512x512xbf16, #tpu.memory_space<vmem>>, vector<44x256xbf16>
    tpu.vector_store %arg6[%c264_149, %c256_150], %155 {strides = array<i32>} : memref<512x512xbf16, #tpu.memory_space<vmem>>, vector<44x256xbf16>,
    %c0_151 = arith.constant 0 : index
    %c112_152 = arith.constant 112 : index
    %157 = vector.load %arg5[%c0_151, %c112_152] : memref<44x416xbf16, #tpu.memory_space<vmem>>, vector<44x256xbf16>
    %c308_153 = arith.constant 308 : index
    %c256_154 = arith.constant 256 : index
    %158 = vector.load %arg6[%c308_153, %c256_154] : memref<512x512xbf16, #tpu.memory_space<vmem>>, vector<44x256xbf16>
    tpu.vector_store %arg6[%c308_153, %c256_154], %157 {strides = array<i32>} : memref<512x512xbf16, #tpu.memory_space<vmem>>, vector<44x256xbf16>,
    %c0_155 = arith.constant 0 : index
    %c128_156 = arith.constant 128 : index
    %159 = vector.load %arg5[%c0_155, %c128_156] : memref<44x416xbf16, #tpu.memory_space<vmem>>, vector<44x256xbf16>
    %c352_157 = arith.constant 352 : index
    %c256_158 = arith.constant 256 : index
    %160 = vector.load %arg6[%c352_157, %c256_158] : memref<512x512xbf16, #tpu.memory_space<vmem>>, vector<44x256xbf16>
    tpu.vector_store %arg6[%c352_157, %c256_158], %159 {strides = array<i32>} : memref<512x512xbf16, #tpu.memory_space<vmem>>, vector<44x256xbf16>,
    %c0_159 = arith.constant 0 : index
    %c144_160 = arith.constant 144 : index
    %161 = vector.load %arg5[%c0_159, %c144_160] : memref<44x416xbf16, #tpu.memory_space<vmem>>, vector<44x256xbf16>
    %c396_161 = arith.constant 396 : index
    %c256_162 = arith.constant 256 : index
    %162 = vector.load %arg6[%c396_161, %c256_162] : memref<512x512xbf16, #tpu.memory_space<vmem>>, vector<44x256xbf16>
    tpu.vector_store %arg6[%c396_161, %c256_162], %161 {strides = array<i32>} : memref<512x512xbf16, #tpu.memory_space<vmem>>, vector<44x256xbf16>,
    %c0_163 = arith.constant 0 : index
    %c160_164 = arith.constant 160 : index
    %163 = vector.load %arg5[%c0_163, %c160_164] : memref<44x416xbf16, #tpu.memory_space<vmem>>, vector<44x256xbf16>
    %c440_165 = arith.constant 440 : index
    %c256_166 = arith.constant 256 : index
    %164 = vector.load %arg6[%c440_165, %c256_166] : memref<512x512xbf16, #tpu.memory_space<vmem>>, vector<44x256xbf16>
    tpu.vector_store %arg6[%c440_165, %c256_166], %163 {strides = array<i32>} : memref<512x512xbf16, #tpu.memory_space<vmem>>, vector<44x256xbf16>,
    %c0_167 = arith.constant 0 : index
    %c0_168 = arith.constant 0 : index
    %165 = vector.load %arg3[%c0_167, %c0_168] : memref<8x512xbf16, #tpu.memory_space<vmem>>, vector<8x512xbf16>
    %c0_169 = arith.constant 0 : index
    %c0_170 = arith.constant 0 : index
    %166 = vector.load %arg6[%c0_169, %c0_170] : memref<512x512xbf16, #tpu.memory_space<vmem>>, vector<512x512xbf16>
    %cst = arith.constant dense<0.000000e+00> : vector<8x512xf32>
    %167 = tpu.matmul %165, %166, %cst {dimension_numbers = #tpu.dot_dimension_numbers<[1], [0], [0], [1], [0, 0, 1, 1], [], []>} : vector<8x512xbf16>, vector<512x512xbf16>, vector<8x512xf32> -> vector<8x512xf32>
    %168 = vector.extract_strided_slice %167 {offsets = [0, 0], sizes = [8, 256], strides = [1, 1]} : vector<8x512xf32> to vector<8x256xf32>
    %c0_171 = arith.constant 0 : index
    %c0_172 = arith.constant 0 : index
    %c0_173 = arith.constant 0 : index
    %169 = vector.load %arg4[%c0_171, %c0_172, %c0_173] : memref<2x8x256xf32, #tpu.memory_space<vmem>>, vector<1x8x256xf32>
    %170 = vector.shape_cast %169 : vector<1x8x256xf32> to vector<8x256xf32>
    %171 = vector.shape_cast %168 : vector<8x256xf32> to vector<1x8x256xf32>
    tpu.vector_store %arg4[%c0_171, %c0_172, %c0_173], %171 {strides = array<i32>} : memref<2x8x256xf32, #tpu.memory_space<vmem>>, vector<1x8x256xf32>,
    %172 = vector.extract_strided_slice %167 {offsets = [0, 256], sizes = [8, 256], strides = [1, 1]} : vector<8x512xf32> to vector<8x256xf32>
    %c1_174 = arith.constant 1 : index
    %c0_175 = arith.constant 0 : index
    %c0_176 = arith.constant 0 : index
    %173 = vector.load %arg4[%c1_174, %c0_175, %c0_176] : memref<2x8x256xf32, #tpu.memory_space<vmem>>, vector<1x8x256xf32>
    %174 = vector.shape_cast %173 : vector<1x8x256xf32> to vector<8x256xf32>
    %175 = vector.shape_cast %172 : vector<8x256xf32> to vector<1x8x256xf32>
    tpu.vector_store %arg4[%c1_174, %c0_175, %c0_176], %175 {strides = array<i32>} : memref<2x8x256xf32, #tpu.memory_space<vmem>>, vector<1x8x256xf32>,
    return
  }
  func.func @transform_0(%arg0: i32) -> (i32, i32, i32) {
    %c0_i32 = arith.constant 0 : i32
    %c0_i32_0 = arith.constant 0 : i32
    %c0_i32_1 = arith.constant 0 : i32
    %c0_i32_2 = arith.constant 0 : i32
    return %c0_i32, %c0_i32_0, %c0_i32_1 : i32, i32, i32
  }
  func.func @transform_1(%arg0: i32) -> (i32, i32, i32) {
    %c0_i32 = arith.constant 0 : i32
    %c0_i32_0 = arith.constant 0 : i32
    %c0_i32_1 = arith.constant 0 : i32
    %c0_i32_2 = arith.constant 0 : i32
    return %c0_i32, %c0_i32_0, %c0_i32_1 : i32, i32, i32
  }
  func.func @transform_2(%arg0: i32) -> (i32, i32) {
    %c0_i32 = arith.constant 0 : i32
    %c0_i32_0 = arith.constant 0 : i32
    %c0_i32_1 = arith.constant 0 : i32
    return %c0_i32, %c0_i32_0 : i32, i32
  }
  func.func @transform_3(%arg0: i32) -> (i32, i32, i32) {
    %c0_i32 = arith.constant 0 : i32
    %c0_i32_0 = arith.constant 0 : i32
    %c0_i32_1 = arith.constant 0 : i32
    %c0_i32_2 = arith.constant 0 : i32
    return %c0_i32, %c0_i32_0, %c0_i32_1 : i32, i32, i32
  }
}

</mosaic_0001>

<llo_original>
// kernel: _lambda_.1
$region0: #{_lambda_.1}
  #allocation0 [shape = 'u32[]', space=smem, size = 0x4, offset = 0x4, fixed_abs, tag = 'smem constant byte address 0x4 - core index']
  #allocation1 [shape = 'u32[144,128]{1,0:T(1,128)}', space=vmem, size = 0x12000, scoped, tag = 'internal scratch']
  #allocation2 [shape = 'bf16[44,416]{1,0:T(8,128)(2,1)}', space=vmem, size = 0xc000, scoped, tag = 'scratch operand']
  #allocation3 [shape = 'bf16[512,512]{1,0:T(16,128)(2,1)}', space=vmem, size = 0x80000, scoped, tag = 'scratch operand']
  %s0 = inlined_call_operand.vmem [shape: bf16[2,4,512], index: 0, kind: input, shape index: {}]
  %s1 = inlined_call_operand.vmem [shape: bf16[11,4,416], index: 1, kind: input, shape index: {}]
  %s2 = inlined_call_operand.vmem [shape: bf16[8,512], index: 2, kind: input, shape index: {}]
  %s3 = inlined_call_operand.vmem [shape: f32[2,8,256], index: 3, kind: output, shape index: {}]
  %s4 = sld [smem:[#allocation0]]
  $region22: #{_lambda_.1} parent=0
    _
  %s6 = ssub.s32 1, %s4
  %s7 = scalar_select 0, %s6, %s4
  // Predicated region
  $region2: #{_lambda_.1} parent=0 // pred_check
    _
  $region3: #{_lambda_.1} parent=0 // pred_check_branch
    %9 = sbr.rel (0) target = $region5
  $region4: #{_lambda_.1} parent=0 // pred_region
    _
  $region5: #{_lambda_.1} parent=0 // pred_fallthru
    _
  // Predicated region
  $region6: #{_lambda_.1} parent=0 // pred_check
    _
  $region7: #{_lambda_.1} parent=0 // pred_check_branch
    %11 = sbr.rel (0) target = $region9
  $region8: #{_lambda_.1} parent=0 // pred_region
    _
  $region9: #{_lambda_.1} parent=0 // pred_fallthru
    _
  // Predicated region
  $region10: #{_lambda_.1} parent=0 // pred_check
    _
  $region11: #{_lambda_.1} parent=0 // pred_check_branch
    %13 = sbr.rel (0) target = $region13
  $region12: #{_lambda_.1} parent=0 // pred_region
    _
  $region13: #{_lambda_.1} parent=0 // pred_fallthru
    _
  %v14 = vlaneseq
  %v15 = vshrl.u32 %v14, 7
  %v16 = vadd.s32 %v15, 8
  %v17 = vadd.s32 %v15, 16
  %v18 = vadd.s32 %v15, 24
  %vm19 = vcmp.eq.s32.totalorder %v15, 0
  %vm20 = vcmp.eq.s32.totalorder %v16, 0
  %vm21 = vcmp.eq.s32.totalorder %v17, 0
  %vm22 = vcmp.eq.s32.totalorder %v18, 0
  %v23 = vsel %vm19, 1, 0
  %v24 = vsel %vm20, 1, 0
  %v25 = vsel %vm21, 1, 0
  %v26 = vsel %vm22, 1, 0
  %v27 = vcvt.s32.f32 %v23
  %v28 = vcvt.s32.f32 %v24
  %v29 = vcvt.s32.f32 %v25
  %v30 = vcvt.s32.f32 %v26
  %v31 = vpack.c.bf16 %v28, %v27
  %v32 = vpack.c.bf16 %v30, %v29
  %vm35 = vcmask 1041408
  %v36 = vrot.slane %v31, 6
  %v37 = vrot.slane %v32, 6
  %v38 = vsel %vm35, %v36, %v37
  %41 = vst [vmem:[#allocation3 + $0x3c0] sm:$0xfc] %v36
  %42 = vst [vmem:[#allocation3 + $0x3c8] sm:$0xfc] %v36
  %43 = vst [vmem:[#allocation3 + $0x3d0] sm:$0xfc] %v36
  %44 = vst [vmem:[#allocation3 + $0x3d8] sm:$0xfc] %v36
  %45 = vst [vmem:[#allocation3 + $0x3e0] sm:$0xff] %v38
  %46 = vst [vmem:[#allocation3 + $0x3e8] sm:$0xff] %v38
  %47 = vst [vmem:[#allocation3 + $0x3f0] sm:$0xff] %v38
  %48 = vst [vmem:[#allocation3 + $0x3f8] sm:$0xff] %v38
  %v49 = vld [vmem:[%s0] sm:$0xff]
  %v50 = vld [vmem:[%s1] sm:$0xff]
  %v51 = vmul.bf16 %v49, %v50
  %v53 = vcombine.high %v51, %v51
  %v55 = vunpack.c.l.s4 1983009808
  %v56 = vunpack.c.0.s8 %v55
  %v57 = vlaneseq
  %v58 = vshrl.u32 %v57, 7
  %v59 = vsub.s32 %v56, %v58
  %v60 = vrot.slane %v51, %v59
  %v62 = vunpack.c.l.s4 1983009808
  %v63 = vunpack.c.0.s8 %v62
  %v64 = vlaneseq
  %v65 = vshrl.u32 %v64, 7
  %v66 = vsub.s32 %v63, %v65
  %v67 = vrot.slane %v53, %v66
  %70 = vst [vmem:[#allocation2] sm:$0x33] %v60
  %vm71 = vcmask 1041408
  %vm72 = vcmask 259076
  %vm73 = vmor %vm72, %vm71
  %74 = vst.msk [vmem:[#allocation2 + $0x8] sm:$0x33] %vm73, %v67
  %s75 = scalar_lea.vmem %s1, 8
  %v76 = vld [vmem:[%s75] sm:$0xff]
  %78 = vrot.lane.b32.xlu0 %v76, 1
  %v79 = vpop.permute.xlu0 %78
  %v80 = vrot.slane %v79, 6
  %vm81 = vcmask 7168
  %v82 = vsel %vm81, %v80, %v79
  %v84 = vmul.bf16 %v49, %v82
  %v86 = vcombine.low %v84, %v84
  %v88 = vunpack.c.l.s4 1983009808
  %v89 = vunpack.c.0.s8 %v88
  %v90 = vlaneseq
  %v91 = vshrl.u32 %v90, 7
  %v92 = vsub.s32 %v89, %v91
  %v93 = vrot.slane %v86, %v92
  %v95 = vunpack.c.l.s4 1983009808
  %v96 = vunpack.c.0.s8 %v95
  %v97 = vlaneseq
  %v98 = vshrl.u32 %v97, 7
  %v99 = vsub.s32 %v96, %v98
  %v100 = vrot.slane %v84, %v99
  %101 = vrot.lane.b32.xlu0 %v93, 127
  %v102 = vpop.permute.xlu0 %101
  %103 = vrot.lane.b32.xlu0 %v100, 127
  %v104 = vpop.permute.xlu0 %103
  %v105 = vrot.slane %v102, 4
  %v106 = vrot.slane %v104, 4
  %vm107 = vcmask 1043456
  %v108 = vsel %vm107, %v105, %v106
  %vm109 = vcmask 1039360
  %v110 = vsel %vm109, %v102, %v108
  %v111 = vsel %vm109, %v104, %v106
  %114 = vst [vmem:[#allocation2] sm:$0xcc] %v110
  %vm115 = vcmask 1043458
  %vm116 = vcmask 261126
  %vm117 = vmor %vm116, %vm115
  %118 = vst.msk [vmem:[#allocation2 + $0x8] sm:$0xcc] %vm117, %v111
  %s119 = scalar_lea.vmem %s1, 16
  %v120 = vld [vmem:[%s119] sm:$0xff]
  %122 = vrot.lane.b32.xlu0 %v120, 2
  %v123 = vpop.permute.xlu0 %122
  %v124 = vrot.slane %v123, 6
  %vm125 = vcmask 15360
  %v126 = vsel %vm125, %v124, %v123
  %v128 = vmul.bf16 %v49, %v126
  %v130 = vcombine.high %v128, %v128
  %v132 = vunpack.c.l.s4 1983009808
  %v133 = vunpack.c.0.s8 %v132
  %v134 = vlaneseq
  %v135 = vshrl.u32 %v134, 7
  %v136 = vsub.s32 %v133, %v135
  %v137 = vrot.slane %v128, %v136
  %v139 = vunpack.c.l.s4 1983009808
  %v140 = vunpack.c.0.s8 %v139
  %v141 = vlaneseq
  %v142 = vshrl.u32 %v141, 7
  %v143 = vsub.s32 %v140, %v142
  %v144 = vrot.slane %v130, %v143
  %145 = vrot.lane.b32.xlu0 %v137, 126
  %v146 = vpop.permute.xlu0 %145
  %147 = vrot.lane.b32.xlu0 %v144, 126
  %v148 = vpop.permute.xlu0 %147
  %v149 = vrot.slane %v146, 4
  %v150 = vrot.slane %v148, 4
  %v151 = vsel %vm107, %v149, %v150
  %vm152 = vcmask 1031168
  %v153 = vsel %vm152, %v146, %v151
  %v154 = vsel %vm152, %v148, %v150
  %157 = vst [vmem:[#allocation2 + $0x10] sm:$0x33] %v153
  %158 = vst.msk [vmem:[#allocation2 + $0x18] sm:$0x33] %vm73, %v154
  %s159 = scalar_lea.vmem %s1, 24
  %v160 = vld [vmem:[%s159] sm:$0xff]
  %162 = vrot.lane.b32.xlu0 %v160, 3
  %v163 = vpop.permute.xlu0 %162
  %v164 = vrot.slane %v163, 6
  %vm165 = vcmask 23552
  %v166 = vsel %vm165, %v164, %v163
  %v168 = vmul.bf16 %v49, %v166
  %v170 = vcombine.low %v168, %v168
  %v172 = vunpack.c.l.s4 1983009808
  %v173 = vunpack.c.0.s8 %v172
  %v174 = vlaneseq
  %v175 = vshrl.u32 %v174, 7
  %v176 = vsub.s32 %v173, %v175
  %v177 = vrot.slane %v170, %v176
  %v179 = vunpack.c.l.s4 1983009808
  %v180 = vunpack.c.0.s8 %v179
  %v181 = vlaneseq
  %v182 = vshrl.u32 %v181, 7
  %v183 = vsub.s32 %v180, %v182
  %v184 = vrot.slane %v168, %v183
  %185 = vrot.lane.b32.xlu0 %v177, 125
  %v186 = vpop.permute.xlu0 %185
  %187 = vrot.lane.b32.xlu0 %v184, 125
  %v188 = vpop.permute.xlu0 %187
  %v189 = vrot.slane %v186, 4
  %v190 = vrot.slane %v188, 4
  %v191 = vsel %vm107, %v189, %v190
  %vm192 = vcmask 1022976
  %v193 = vsel %vm192, %v186, %v191
  %v194 = vsel %vm192, %v188, %v190
  %197 = vst [vmem:[#allocation2 + $0x10] sm:$0xcc] %v193
  %198 = vst.msk [vmem:[#allocation2 + $0x18] sm:$0xcc] %vm117, %v194
  %s199 = scalar_lea.vmem %s1, 32
  %v200 = vld [vmem:[%s199] sm:$0xff]
  %202 = vrot.lane.b32.xlu0 %v200, 4
  %v203 = vpop.permute.xlu0 %202
  %v204 = vrot.slane %v203, 6
  %vm205 = vcmask 31744
  %v206 = vsel %vm205, %v204, %v203
  %v208 = vmul.bf16 %v49, %v206
  %v210 = vcombine.high %v208, %v208
  %v212 = vunpack.c.l.s4 1983009808
  %v213 = vunpack.c.0.s8 %v212
  %v214 = vlaneseq
  %v215 = vshrl.u32 %v214, 7
  %v216 = vsub.s32 %v213, %v215
  %v217 = vrot.slane %v208, %v216
  %v219 = vunpack.c.l.s4 1983009808
  %v220 = vunpack.c.0.s8 %v219
  %v221 = vlaneseq
  %v222 = vshrl.u32 %v221, 7
  %v223 = vsub.s32 %v220, %v222
  %v224 = vrot.slane %v210, %v223
  %225 = vrot.lane.b32.xlu0 %v217, 124
  %v226 = vpop.permute.xlu0 %225
  %227 = vrot.lane.b32.xlu0 %v224, 124
  %v228 = vpop.permute.xlu0 %227
  %v229 = vrot.slane %v226, 4
  %v230 = vrot.slane %v228, 4
  %v231 = vsel %vm107, %v229, %v230
  %vm232 = vcmask 1014784
  %v233 = vsel %vm232, %v226, %v231
  %v234 = vsel %vm232, %v228, %v230
  %237 = vst [vmem:[#allocation2 + $0x20] sm:$0x33] %v233
  %238 = vst.msk [vmem:[#allocation2 + $0x28] sm:$0x33] %vm73, %v234
  %s239 = scalar_lea.vmem %s1, 40
  %v240 = vld [vmem:[%s239] sm:$0xff]
  %242 = vrot.lane.b32.xlu0 %v240, 5
  %v243 = vpop.permute.xlu0 %242
  %v244 = vrot.slane %v243, 6
  %vm245 = vcmask 39936
  %v246 = vsel %vm245, %v244, %v243
  %v248 = vmul.bf16 %v49, %v246
  %v250 = vcombine.low %v248, %v248
  %v252 = vunpack.c.l.s4 1983009808
  %v253 = vunpack.c.0.s8 %v252
  %v254 = vlaneseq
  %v255 = vshrl.u32 %v254, 7
  %v256 = vsub.s32 %v253, %v255
  %v257 = vrot.slane %v250, %v256
  %v259 = vunpack.c.l.s4 1983009808
  %v260 = vunpack.c.0.s8 %v259
  %v261 = vlaneseq
  %v262 = vshrl.u32 %v261, 7
  %v263 = vsub.s32 %v260, %v262
  %v264 = vrot.slane %v248, %v263
  %265 = vrot.lane.b32.xlu0 %v257, 123
  %v266 = vpop.permute.xlu0 %265
  %267 = vrot.lane.b32.xlu0 %v264, 123
  %v268 = vpop.permute.xlu0 %267
  %v269 = vrot.slane %v266, 4
  %v270 = vrot.slane %v268, 4
  %v271 = vsel %vm107, %v269, %v270
  %vm272 = vcmask 1006592
  %v273 = vsel %vm272, %v266, %v271
  %v274 = vsel %vm272, %v268, %v270
  %277 = vst [vmem:[#allocation2 + $0x20] sm:$0xcc] %v273
  %278 = vst.msk [vmem:[#allocation2 + $0x28] sm:$0xcc] %vm117, %v274
  %s279 = scalar_lea.vmem %s1, 48
  %v280 = vld [vmem:[%s279] sm:$0xff]
  %282 = vrot.lane.b32.xlu0 %v280, 6
  %v283 = vpop.permute.xlu0 %282
  %v284 = vrot.slane %v283, 6
  %vm285 = vcmask 48128
  %v286 = vsel %vm285, %v284, %v283
  %v288 = vmul.bf16 %v49, %v286
  %v290 = vcombine.high %v288, %v288
  %v292 = vunpack.c.l.s4 1983009808
  %v293 = vunpack.c.0.s8 %v292
  %v294 = vlaneseq
  %v295 = vshrl.u32 %v294, 7
  %v296 = vsub.s32 %v293, %v295
  %v297 = vrot.slane %v288, %v296
  %v299 = vunpack.c.l.s4 1983009808
  %v300 = vunpack.c.0.s8 %v299
  %v301 = vlaneseq
  %v302 = vshrl.u32 %v301, 7
  %v303 = vsub.s32 %v300, %v302
  %v304 = vrot.slane %v290, %v303
  %305 = vrot.lane.b32.xlu0 %v297, 122
  %v306 = vpop.permute.xlu0 %305
  %307 = vrot.lane.b32.xlu0 %v304, 122
  %v308 = vpop.permute.xlu0 %307
  %v309 = vrot.slane %v306, 4
  %v310 = vrot.slane %v308, 4
  %v311 = vsel %vm107, %v309, %v310
  %vm312 = vcmask 998400
  %v313 = vsel %vm312, %v306, %v311
  %v314 = vsel %vm312, %v308, %v310
  %317 = vst [vmem:[#allocation2 + $0x30] sm:$0x33] %v313
  %318 = vst.msk [vmem:[#allocation2 + $0x38] sm:$0x33] %vm73, %v314
  %s319 = scalar_lea.vmem %s1, 56
  %v320 = vld [vmem:[%s319] sm:$0xff]
  %322 = vrot.lane.b32.xlu0 %v320, 7
  %v323 = vpop.permute.xlu0 %322
  %v324 = vrot.slane %v323, 6
  %vm325 = vcmask 56320
  %v326 = vsel %vm325, %v324, %v323
  %v328 = vmul.bf16 %v49, %v326
  %v330 = vcombine.low %v328, %v328
  %v332 = vunpack.c.l.s4 1983009808
  %v333 = vunpack.c.0.s8 %v332
  %v334 = vlaneseq
  %v335 = vshrl.u32 %v334, 7
  %v336 = vsub.s32 %v333, %v335
  %v337 = vrot.slane %v330, %v336
  %v339 = vunpack.c.l.s4 1983009808
  %v340 = vunpack.c.0.s8 %v339
  %v341 = vlaneseq
  %v342 = vshrl.u32 %v341, 7
  %v343 = vsub.s32 %v340, %v342
  %v344 = vrot.slane %v328, %v343
  %345 = vrot.lane.b32.xlu0 %v337, 121
  %v346 = vpop.permute.xlu0 %345
  %347 = vrot.lane.b32.xlu0 %v344, 121
  %v348 = vpop.permute.xlu0 %347
  %v349 = vrot.slane %v346, 4
  %v350 = vrot.slane %v348, 4
  %v351 = vsel %vm107, %v349, %v350
  %vm352 = vcmask 990208
  %v353 = vsel %vm352, %v346, %v351
  %v354 = vsel %vm352, %v348, %v350
  %357 = vst [vmem:[#allocation2 + $0x30] sm:$0xcc] %v353
  %358 = vst.msk [vmem:[#allocation2 + $0x38] sm:$0xcc] %vm117, %v354
  %s359 = scalar_lea.vmem %s1, 64
  %v360 = vld [vmem:[%s359] sm:$0xff]
  %362 = vrot.lane.b32.xlu0 %v360, 8
  %v363 = vpop.permute.xlu0 %362
  %v364 = vrot.slane %v363, 6
  %vm365 = vcmask 64512
  %v366 = vsel %vm365, %v364, %v363
  %v368 = vmul.bf16 %v49, %v366
  %v370 = vcombine.high %v368, %v368
  %v372 = vunpack.c.l.s4 1983009808
  %v373 = vunpack.c.0.s8 %v372
  %v374 = vlaneseq
  %v375 = vshrl.u32 %v374, 7
  %v376 = vsub.s32 %v373, %v375
  %v377 = vrot.slane %v368, %v376
  %v379 = vunpack.c.l.s4 1983009808
  %v380 = vunpack.c.0.s8 %v379
  %v381 = vlaneseq
  %v382 = vshrl.u32 %v381, 7
  %v383 = vsub.s32 %v380, %v382
  %v384 = vrot.slane %v370, %v383
  %385 = vrot.lane.b32.xlu0 %v377, 120
  %v386 = vpop.permute.xlu0 %385
  %387 = vrot.lane.b32.xlu0 %v384, 120
  %v388 = vpop.permute.xlu0 %387
  %v389 = vrot.slane %v386, 4
  %v390 = vrot.slane %v388, 4
  %v391 = vsel %vm107, %v389, %v390
  %vm392 = vcmask 982016
  %v393 = vsel %vm392, %v386, %v391
  %v394 = vsel %vm392, %v388, %v390
  %397 = vst [vmem:[#allocation2 + $0x40] sm:$0x33] %v393
  %398 = vst.msk [vmem:[#allocation2 + $0x48] sm:$0x33] %vm73, %v394
  %s399 = scalar_lea.vmem %s1, 72
  %v400 = vld [vmem:[%s399] sm:$0xff]
  %402 = vrot.lane.b32.xlu0 %v400, 9
  %v403 = vpop.permute.xlu0 %402
  %v404 = vrot.slane %v403, 6
  %vm405 = vcmask 72704
  %v406 = vsel %vm405, %v404, %v403
  %v408 = vmul.bf16 %v49, %v406
  %v410 = vcombine.low %v408, %v408
  %v412 = vunpack.c.l.s4 1983009808
  %v413 = vunpack.c.0.s8 %v412
  %v414 = vlaneseq
  %v415 = vshrl.u32 %v414, 7
  %v416 = vsub.s32 %v413, %v415
  %v417 = vrot.slane %v410, %v416
  %v419 = vunpack.c.l.s4 1983009808
  %v420 = vunpack.c.0.s8 %v419
  %v421 = vlaneseq
  %v422 = vshrl.u32 %v421, 7
  %v423 = vsub.s32 %v420, %v422
  %v424 = vrot.slane %v408, %v423
  %425 = vrot.lane.b32.xlu0 %v417, 119
  %v426 = vpop.permute.xlu0 %425
  %427 = vrot.lane.b32.xlu0 %v424, 119
  %v428 = vpop.permute.xlu0 %427
  %v429 = vrot.slane %v426, 4
  %v430 = vrot.slane %v428, 4
  %v431 = vsel %vm107, %v429, %v430
  %vm432 = vcmask 973824
  %v433 = vsel %vm432, %v426, %v431
  %v434 = vsel %vm432, %v428, %v430
  %437 = vst [vmem:[#allocation2 + $0x40] sm:$0xcc] %v433
  %438 = vst.msk [vmem:[#allocation2 + $0x48] sm:$0xcc] %vm117, %v434
  %s439 = scalar_lea.vmem %s1, 80
  %v440 = vld [vmem:[%s439] sm:$0xff]
  %442 = vrot.lane.b32.xlu0 %v440, 10
  %v443 = vpop.permute.xlu0 %442
  %v444 = vrot.slane %v443, 6
  %vm445 = vcmask 80896
  %v446 = vsel %vm445, %v444, %v443
  %v448 = vmul.bf16 %v49, %v446
  %v450 = vcombine.high %v448, %v448
  %v452 = vunpack.c.l.s4 1983009808
  %v453 = vunpack.c.0.s8 %v452
  %v454 = vlaneseq
  %v455 = vshrl.u32 %v454, 7
  %v456 = vsub.s32 %v453, %v455
  %v457 = vrot.slane %v448, %v456
  %v459 = vunpack.c.l.s4 1983009808
  %v460 = vunpack.c.0.s8 %v459
  %v461 = vlaneseq
  %v462 = vshrl.u32 %v461, 7
  %v463 = vsub.s32 %v460, %v462
  %v464 = vrot.slane %v450, %v463
  %465 = vrot.lane.b32.xlu0 %v457, 118
  %v466 = vpop.permute.xlu0 %465
  %467 = vrot.lane.b32.xlu0 %v464, 118
  %v468 = vpop.permute.xlu0 %467
  %v469 = vrot.slane %v466, 4
  %v470 = vrot.slane %v468, 4
  %v471 = vsel %vm107, %v469, %v470
  %vm472 = vcmask 965632
  %v473 = vsel %vm472, %v466, %v471
  %v474 = vsel %vm472, %v468, %v470
  %477 = vst [vmem:[#allocation2 + $0x50] sm:$0x33] %v473
  %478 = vst.msk [vmem:[#allocation2 + $0x58] sm:$0x33] %vm73, %v474
  %v479 = vld [vmem:[#allocation2] sm:$0xff]
  %v480 = vld [vmem:[#allocation2 + $0x10] sm:$0xff]
  %v481 = vld [vmem:[#allocation2 + $0x20] sm:$0xff]
  %v482 = vld [vmem:[#allocation2 + $0x30] sm:$0xff]
  %v483 = vld [vmem:[#allocation2 + $0x40] sm:$0xff]
  %v484 = vld [vmem:[#allocation2 + $0x50] sm:$0x33]
  %v491 = vunpack.c.l.b16 %v479
  %v492 = vunpack.c.h.b16 %v479
  %v493 = vunpack.c.l.b16 %v480
  %v494 = vunpack.c.h.b16 %v480
  %v495 = vunpack.c.l.b16 %v481
  %v496 = vunpack.c.h.b16 %v481
  %v497 = vunpack.c.l.b16 %v482
  %v498 = vunpack.c.h.b16 %v482
  %v499 = vunpack.c.l.b16 %v483
  %v500 = vunpack.c.h.b16 %v483
  %v501 = vunpack.c.l.b16 %v484
  %v502 = vunpack.c.h.b16 %v484
  %v503 = vpack.c.b16 %v493, %v491
  %v504 = vpack.c.b16 %v494, %v492
  %v505 = vpack.c.b16 %v497, %v495
  %v506 = vpack.c.b16 %v498, %v496
  %v507 = vpack.c.b16 %v501, %v499
  %v508 = vpack.c.b16 %v502, %v500
  %515 = vst [vmem:[#allocation3] sm:$0xff] %v503
  %516 = vst [vmem:[#allocation3 + $0x8] sm:$0xff] %v504
  %517 = vst [vmem:[#allocation3 + $0x20] sm:$0xff] %v505
  %518 = vst [vmem:[#allocation3 + $0x28] sm:$0xff] %v506
  %519 = vst [vmem:[#allocation3 + $0x40] sm:$0x3f] %v507
  %520 = vst [vmem:[#allocation3 + $0x48] sm:$0x3f] %v508
  %v521 = vld [vmem:[#allocation2] sm:$0xff]
  %v522 = vld [vmem:[#allocation2 + $0x8] sm:$0xf]
  %v523 = vld [vmem:[#allocation2 + $0x10] sm:$0xff]
  %v524 = vld [vmem:[#allocation2 + $0x18] sm:$0xf]
  %v525 = vld [vmem:[#allocation2 + $0x20] sm:$0xff]
  %v526 = vld [vmem:[#allocation2 + $0x28] sm:$0xf]
  %v527 = vld [vmem:[#allocation2 + $0x30] sm:$0xff]
  %v528 = vld [vmem:[#allocation2 + $0x38] sm:$0xf]
  %v529 = vld [vmem:[#allocation2 + $0x40] sm:$0xff]
  %v530 = vld [vmem:[#allocation2 + $0x48] sm:$0xf]
  %v531 = vld [vmem:[#allocation2 + $0x50] sm:$0x33]
  %v532 = vld [vmem:[#allocation2 + $0x58] sm:$0x3]
  %v545 = vunpack.c.l.b16 %v521
  %v546 = vunpack.c.h.b16 %v521
  %v547 = vunpack.c.l.b16 %v522
  %v548 = vunpack.c.l.b16 %v523
  %v549 = vunpack.c.h.b16 %v523
  %v550 = vunpack.c.l.b16 %v524
  %v551 = vunpack.c.l.b16 %v525
  %v552 = vunpack.c.h.b16 %v525
  %v553 = vunpack.c.l.b16 %v526
  %v554 = vunpack.c.l.b16 %v527
  %v555 = vunpack.c.h.b16 %v527
  %v556 = vunpack.c.l.b16 %v528
  %v557 = vunpack.c.l.b16 %v529
  %v558 = vunpack.c.h.b16 %v529
  %v559 = vunpack.c.l.b16 %v530
  %v560 = vunpack.c.l.b16 %v531
  %v561 = vunpack.c.h.b16 %v531
  %v562 = vunpack.c.l.b16 %v532
  %v563 = vpack.c.b16 %v548, %v545
  %v564 = vpack.c.b16 %v549, %v546
  %v565 = vpack.c.b16 %v550, %v547
  %v566 = vpack.c.b16 %v554, %v551
  %v567 = vpack.c.b16 %v555, %v552
  %v568 = vpack.c.b16 %v556, %v553
  %v569 = vpack.c.b16 %v560, %v557
  %v570 = vpack.c.b16 %v561, %v558
  %v571 = vpack.c.b16 %v562, %v559
  %vm572 = vcmask 1045504
  %v573 = vrot.slane %v563, 2
  %v574 = vrot.slane %v564, 2
  %v575 = vrot.slane %v565, 2
  %v576 = vrot.slane %v566, 2
  %v577 = vsel %vm572, %v573, %v576
  %v578 = vrot.slane %v567, 2
  %v579 = vsel %vm572, %v574, %v578
  %v580 = vrot.slane %v568, 2
  %v581 = vsel %vm572, %v575, %v580
  %v582 = vrot.slane %v569, 2
  %v583 = vsel %vm572, %v576, %v582
  %v584 = vrot.slane %v570, 2
  %v585 = vsel %vm572, %v578, %v584
  %v586 = vrot.slane %v571, 2
  %v587 = vsel %vm572, %v580, %v586
  %588 = vrot.lane.b32.xlu0 %v573, 112
  %v589 = vpop.permute.xlu0 %588
  %590 = vrot.lane.b32.xlu0 %v574, 112
  %v591 = vpop.permute.xlu0 %590
  %592 = vrot.lane.b32.xlu0 %v575, 112
  %v593 = vpop.permute.xlu0 %592
  %594 = vrot.lane.b32.xlu0 %v577, 112
  %v595 = vpop.permute.xlu0 %594
  %596 = vrot.lane.b32.xlu0 %v579, 112
  %v597 = vpop.permute.xlu0 %596
  %598 = vrot.lane.b32.xlu0 %v581, 112
  %v599 = vpop.permute.xlu0 %598
  %600 = vrot.lane.b32.xlu0 %v583, 112
  %v601 = vpop.permute.xlu0 %600
  %602 = vrot.lane.b32.xlu0 %v585, 112
  %v603 = vpop.permute.xlu0 %602
  %604 = vrot.lane.b32.xlu0 %v587, 112
  %v605 = vpop.permute.xlu0 %604
  %606 = vrot.lane.b32.xlu0 %v582, 112
  %v607 = vpop.permute.xlu0 %606
  %608 = vrot.lane.b32.xlu0 %v584, 112
  %v609 = vpop.permute.xlu0 %608
  %610 = vrot.lane.b32.xlu0 %v586, 112
  %v611 = vpop.permute.xlu0 %610
  %vm612 = vcmask 916480
  %v613 = vsel %vm612, %v589, %v591
  %v614 = vsel %vm612, %v591, %v593
  %v615 = vsel %vm612, %v595, %v597
  %v616 = vsel %vm612, %v597, %v599
  %v617 = vsel %vm612, %v601, %v603
  %v618 = vsel %vm612, %v603, %v605
  %v619 = vsel %vm612, %v607, %v609
  %v620 = vsel %vm612, %v609, %v611
  %629 = vst [vmem:[#allocation3 + $0x40] sm:$0xc0] %v613
  %630 = vst [vmem:[#allocation3 + $0x48] sm:$0xc0] %v614
  %631 = vst [vmem:[#allocation3 + $0x60] sm:$0xff] %v615
  %632 = vst [vmem:[#allocation3 + $0x68] sm:$0xff] %v616
  %633 = vst [vmem:[#allocation3 + $0x80] sm:$0xff] %v617
  %634 = vst [vmem:[#allocation3 + $0x88] sm:$0xff] %v618
  %635 = vst [vmem:[#allocation3 + $0xa0] sm:$0xf] %v619
  %636 = vst [vmem:[#allocation3 + $0xa8] sm:$0xf] %v620
  %v637 = vld [vmem:[#allocation2] sm:$0xff]
  %v638 = vld [vmem:[#allocation2 + $0x8] sm:$0xf]
  %v639 = vld [vmem:[#allocation2 + $0x10] sm:$0xff]
  %v640 = vld [vmem:[#allocation2 + $0x18] sm:$0xf]
  %v641 = vld [vmem:[#allocation2 + $0x20] sm:$0xff]
  %v642 = vld [vmem:[#allocation2 + $0x28] sm:$0xf]
  %v643 = vld [vmem:[#allocation2 + $0x30] sm:$0xff]
  %v644 = vld [vmem:[#allocation2 + $0x38] sm:$0xf]
  %v645 = vld [vmem:[#allocation2 + $0x40] sm:$0xff]
  %v646 = vld [vmem:[#allocation2 + $0x48] sm:$0xf]
  %v647 = vld [vmem:[#allocation2 + $0x50] sm:$0x33]
  %v648 = vld [vmem:[#allocation2 + $0x58] sm:$0x3]
  %v661 = vunpack.c.l.b16 %v637
  %v662 = vunpack.c.h.b16 %v637
  %v663 = vunpack.c.l.b16 %v638
  %v664 = vunpack.c.l.b16 %v639
  %v665 = vunpack.c.h.b16 %v639
  %v666 = vunpack.c.l.b16 %v640
  %v667 = vunpack.c.l.b16 %v641
  %v668 = vunpack.c.h.b16 %v641
  %v669 = vunpack.c.l.b16 %v642
  %v670 = vunpack.c.l.b16 %v643
  %v671 = vunpack.c.h.b16 %v643
  %v672 = vunpack.c.l.b16 %v644
  %v673 = vunpack.c.l.b16 %v645
  %v674 = vunpack.c.h.b16 %v645
  %v675 = vunpack.c.l.b16 %v646
  %v676 = vunpack.c.l.b16 %v647
  %v677 = vunpack.c.h.b16 %v647
  %v678 = vunpack.c.l.b16 %v648
  %v679 = vpack.c.b16 %v661, %v661
  %v680 = vpack.c.b16 %v662, %v662
  %v681 = vpack.c.b16 %v663, %v663
  %v682 = vpack.c.b16 %v667, %v664
  %v683 = vpack.c.b16 %v668, %v665
  %v684 = vpack.c.b16 %v669, %v666
  %v685 = vpack.c.b16 %v673, %v670
  %v686 = vpack.c.b16 %v674, %v671
  %v687 = vpack.c.b16 %v675, %v672
  %v688 = vpack.c.b16 %v676, %v676
  %v689 = vpack.c.b16 %v677, %v677
  %v690 = vpack.c.b16 %v678, %v678
  %691 = vrot.lane.b32.xlu0 %v679, 96
  %v692 = vpop.permute.xlu0 %691
  %693 = vrot.lane.b32.xlu0 %v680, 96
  %v694 = vpop.permute.xlu0 %693
  %695 = vrot.lane.b32.xlu0 %v681, 96
  %v696 = vpop.permute.xlu0 %695
  %697 = vrot.lane.b32.xlu0 %v682, 96
  %v698 = vpop.permute.xlu0 %697
  %699 = vrot.lane.b32.xlu0 %v683, 96
  %v700 = vpop.permute.xlu0 %699
  %701 = vrot.lane.b32.xlu0 %v684, 96
  %v702 = vpop.permute.xlu0 %701
  %703 = vrot.lane.b32.xlu0 %v685, 96
  %v704 = vpop.permute.xlu0 %703
  %705 = vrot.lane.b32.xlu0 %v686, 96
  %v706 = vpop.permute.xlu0 %705
  %707 = vrot.lane.b32.xlu0 %v687, 96
  %v708 = vpop.permute.xlu0 %707
  %709 = vrot.lane.b32.xlu0 %v688, 96
  %v710 = vpop.permute.xlu0 %709
  %711 = vrot.lane.b32.xlu0 %v689, 96
  %v712 = vpop.permute.xlu0 %711
  %713 = vrot.lane.b32.xlu0 %v690, 96
  %v714 = vpop.permute.xlu0 %713
  %vm715 = vcmask 785408
  %v716 = vsel %vm715, %v692, %v694
  %v717 = vsel %vm715, %v694, %v696
  %v718 = vsel %vm715, %v698, %v700
  %v719 = vsel %vm715, %v700, %v702
  %v720 = vsel %vm715, %v704, %v706
  %v721 = vsel %vm715, %v706, %v708
  %v722 = vsel %vm715, %v710, %v712
  %v723 = vsel %vm715, %v712, %v714
  %732 = vst [vmem:[#allocation3 + $0xa0] sm:$0xf0] %v716
  %733 = vst [vmem:[#allocation3 + $0xa8] sm:$0xf0] %v717
  %734 = vst [vmem:[#allocation3 + $0xc0] sm:$0xff] %v718
  %735 = vst [vmem:[#allocation3 + $0xc8] sm:$0xff] %v719
  %736 = vst [vmem:[#allocation3 + $0xe0] sm:$0xff] %v720
  %737 = vst [vmem:[#allocation3 + $0xe8] sm:$0xff] %v721
  %738 = vst [vmem:[#allocation3 + $0x100] sm:$0x3] %v722
  %739 = vst [vmem:[#allocation3 + $0x108] sm:$0x3] %v723
  %v740 = vld [vmem:[#allocation2] sm:$0xff]
  %v741 = vld [vmem:[#allocation2 + $0x8] sm:$0xf]
  %v742 = vld [vmem:[#allocation2 + $0x10] sm:$0xff]
  %v743 = vld [vmem:[#allocation2 + $0x18] sm:$0xf]
  %v744 = vld [vmem:[#allocation2 + $0x20] sm:$0xff]
  %v745 = vld [vmem:[#allocation2 + $0x28] sm:$0xf]
  %v746 = vld [vmem:[#allocation2 + $0x30] sm:$0xff]
  %v747 = vld [vmem:[#allocation2 + $0x38] sm:$0xf]
  %v748 = vld [vmem:[#allocation2 + $0x40] sm:$0xff]
  %v749 = vld [vmem:[#allocation2 + $0x48] sm:$0xf]
  %v750 = vld [vmem:[#allocation2 + $0x50] sm:$0x33]
  %v751 = vld [vmem:[#allocation2 + $0x58] sm:$0x3]
  %v764 = vunpack.c.l.b16 %v740
  %v765 = vunpack.c.h.b16 %v740
  %v766 = vunpack.c.l.b16 %v741
  %v767 = vunpack.c.l.b16 %v742
  %v768 = vunpack.c.h.b16 %v742
  %v769 = vunpack.c.l.b16 %v743
  %v770 = vunpack.c.l.b16 %v744
  %v771 = vunpack.c.h.b16 %v744
  %v772 = vunpack.c.l.b16 %v745
  %v773 = vunpack.c.l.b16 %v746
  %v774 = vunpack.c.h.b16 %v746
  %v775 = vunpack.c.l.b16 %v747
  %v776 = vunpack.c.l.b16 %v748
  %v777 = vunpack.c.h.b16 %v748
  %v778 = vunpack.c.l.b16 %v749
  %v779 = vunpack.c.l.b16 %v750
  %v780 = vunpack.c.h.b16 %v750
  %v781 = vunpack.c.l.b16 %v751
  %v782 = vpack.c.b16 %v767, %v764
  %v783 = vpack.c.b16 %v768, %v765
  %v784 = vpack.c.b16 %v769, %v766
  %v785 = vpack.c.b16 %v773, %v770
  %v786 = vpack.c.b16 %v774, %v771
  %v787 = vpack.c.b16 %v775, %v772
  %v788 = vpack.c.b16 %v779, %v776
  %v789 = vpack.c.b16 %v780, %v777
  %v790 = vpack.c.b16 %v781, %v778
  %v791 = vrot.slane %v782, 6
  %v792 = vrot.slane %v783, 6
  %v793 = vrot.slane %v784, 6
  %v794 = vrot.slane %v785, 6
  %v795 = vsel %vm35, %v791, %v794
  %v796 = vrot.slane %v786, 6
  %v797 = vsel %vm35, %v792, %v796
  %v798 = vrot.slane %v787, 6
  %v799 = vsel %vm35, %v793, %v798
  %v800 = vrot.slane %v788, 6
  %v801 = vsel %vm35, %v794, %v800
  %v802 = vrot.slane %v789, 6
  %v803 = vsel %vm35, %v796, %v802
  %v804 = vrot.slane %v790, 6
  %v805 = vsel %vm35, %v798, %v804
  %806 = vrot.lane.b32.xlu0 %v791, 80
  %v807 = vpop.permute.xlu0 %806
  %808 = vrot.lane.b32.xlu0 %v792, 80
  %v809 = vpop.permute.xlu0 %808
  %810 = vrot.lane.b32.xlu0 %v793, 80
  %v811 = vpop.permute.xlu0 %810
  %812 = vrot.lane.b32.xlu0 %v795, 80
  %v813 = vpop.permute.xlu0 %812
  %814 = vrot.lane.b32.xlu0 %v797, 80
  %v815 = vpop.permute.xlu0 %814
  %816 = vrot.lane.b32.xlu0 %v799, 80
  %v817 = vpop.permute.xlu0 %816
  %818 = vrot.lane.b32.xlu0 %v801, 80
  %v819 = vpop.permute.xlu0 %818
  %820 = vrot.lane.b32.xlu0 %v803, 80
  %v821 = vpop.permute.xlu0 %820
  %822 = vrot.lane.b32.xlu0 %v805, 80
  %v823 = vpop.permute.xlu0 %822
  %vm824 = vcmask 654336
  %v825 = vsel %vm824, %v807, %v809
  %v826 = vsel %vm824, %v809, %v811
  %v827 = vsel %vm824, %v813, %v815
  %v828 = vsel %vm824, %v815, %v817
  %v829 = vsel %vm824, %v819, %v821
  %v830 = vsel %vm824, %v821, %v823
  %837 = vst [vmem:[#allocation3 + $0x100] sm:$0xfc] %v825
  %838 = vst [vmem:[#allocation3 + $0x108] sm:$0xfc] %v826
  %839 = vst [vmem:[#allocation3 + $0x120] sm:$0xff] %v827
  %840 = vst [vmem:[#allocation3 + $0x128] sm:$0xff] %v828
  %841 = vst [vmem:[#allocation3 + $0x140] sm:$0xff] %v829
  %842 = vst [vmem:[#allocation3 + $0x148] sm:$0xff] %v830
  %v843 = vld [vmem:[#allocation2] sm:$0xff]
  %v844 = vld [vmem:[#allocation2 + $0x8] sm:$0xf]
  %v845 = vld [vmem:[#allocation2 + $0x10] sm:$0xff]
  %v846 = vld [vmem:[#allocation2 + $0x18] sm:$0xf]
  %v847 = vld [vmem:[#allocation2 + $0x20] sm:$0xff]
  %v848 = vld [vmem:[#allocation2 + $0x28] sm:$0xf]
  %v849 = vld [vmem:[#allocation2 + $0x30] sm:$0xff]
  %v850 = vld [vmem:[#allocation2 + $0x38] sm:$0xf]
  %v851 = vld [vmem:[#allocation2 + $0x40] sm:$0xff]
  %v852 = vld [vmem:[#allocation2 + $0x48] sm:$0xf]
  %v853 = vld [vmem:[#allocation2 + $0x50] sm:$0x33]
  %v854 = vld [vmem:[#allocation2 + $0x58] sm:$0x3]
  %v867 = vunpack.c.l.b16 %v843
  %v868 = vunpack.c.h.b16 %v843
  %v869 = vunpack.c.l.b16 %v844
  %v870 = vunpack.c.l.b16 %v845
  %v871 = vunpack.c.h.b16 %v845
  %v872 = vunpack.c.l.b16 %v846
  %v873 = vunpack.c.l.b16 %v847
  %v874 = vunpack.c.h.b16 %v847
  %v875 = vunpack.c.l.b16 %v848
  %v876 = vunpack.c.l.b16 %v849
  %v877 = vunpack.c.h.b16 %v849
  %v878 = vunpack.c.l.b16 %v850
  %v879 = vunpack.c.l.b16 %v851
  %v880 = vunpack.c.h.b16 %v851
  %v881 = vunpack.c.l.b16 %v852
  %v882 = vunpack.c.l.b16 %v853
  %v883 = vunpack.c.h.b16 %v853
  %v884 = vunpack.c.l.b16 %v854
  %v885 = vpack.c.b16 %v870, %v867
  %v886 = vpack.c.b16 %v871, %v868
  %v887 = vpack.c.b16 %v872, %v869
  %v888 = vpack.c.b16 %v876, %v873
  %v889 = vpack.c.b16 %v877, %v874
  %v890 = vpack.c.b16 %v878, %v875
  %v891 = vpack.c.b16 %v882, %v879
  %v892 = vpack.c.b16 %v883, %v880
  %v893 = vpack.c.b16 %v884, %v881
  %894 = vrot.lane.b32.xlu0 %v885, 64
  %v895 = vpop.permute.xlu0 %894
  %896 = vrot.lane.b32.xlu0 %v886, 64
  %v897 = vpop.permute.xlu0 %896
  %898 = vrot.lane.b32.xlu0 %v887, 64
  %v899 = vpop.permute.xlu0 %898
  %900 = vrot.lane.b32.xlu0 %v888, 64
  %v901 = vpop.permute.xlu0 %900
  %902 = vrot.lane.b32.xlu0 %v889, 64
  %v903 = vpop.permute.xlu0 %902
  %904 = vrot.lane.b32.xlu0 %v890, 64
  %v905 = vpop.permute.xlu0 %904
  %906 = vrot.lane.b32.xlu0 %v891, 64
  %v907 = vpop.permute.xlu0 %906
  %908 = vrot.lane.b32.xlu0 %v892, 64
  %v909 = vpop.permute.xlu0 %908
  %910 = vrot.lane.b32.xlu0 %v893, 64
  %v911 = vpop.permute.xlu0 %910
  %vm912 = vcmask 523264
  %v913 = vsel %vm912, %v895, %v897
  %v914 = vsel %vm912, %v897, %v899
  %v915 = vsel %vm912, %v901, %v903
  %v916 = vsel %vm912, %v903, %v905
  %v917 = vsel %vm912, %v907, %v909
  %v918 = vsel %vm912, %v909, %v911
  %925 = vst [vmem:[#allocation3 + $0x160] sm:$0xff] %v913
  %926 = vst [vmem:[#allocation3 + $0x168] sm:$0xff] %v914
  %927 = vst [vmem:[#allocation3 + $0x180] sm:$0xff] %v915
  %928 = vst [vmem:[#allocation3 + $0x188] sm:$0xff] %v916
  %929 = vst [vmem:[#allocation3 + $0x1a0] sm:$0x3f] %v917
  %930 = vst [vmem:[#allocation3 + $0x1a8] sm:$0x3f] %v918
  %v931 = vld [vmem:[#allocation2] sm:$0xff]
  %v932 = vld [vmem:[#allocation2 + $0x8] sm:$0xf]
  %v933 = vld [vmem:[#allocation2 + $0x10] sm:$0xff]
  %v934 = vld [vmem:[#allocation2 + $0x18] sm:$0xf]
  %v935 = vld [vmem:[#allocation2 + $0x20] sm:$0xff]
  %v936 = vld [vmem:[#allocation2 + $0x28] sm:$0xf]
  %v937 = vld [vmem:[#allocation2 + $0x30] sm:$0xff]
  %v938 = vld [vmem:[#allocation2 + $0x38] sm:$0xf]
  %v939 = vld [vmem:[#allocation2 + $0x40] sm:$0xff]
  %v940 = vld [vmem:[#allocation2 + $0x48] sm:$0xf]
  %v941 = vld [vmem:[#allocation2 + $0x50] sm:$0x33]
  %v942 = vld [vmem:[#allocation2 + $0x58] sm:$0x3]
  %v955 = vunpack.c.l.b16 %v931
  %v956 = vunpack.c.h.b16 %v931
  %v957 = vunpack.c.l.b16 %v932
  %v958 = vunpack.c.l.b16 %v933
  %v959 = vunpack.c.h.b16 %v933
  %v960 = vunpack.c.l.b16 %v934
  %v961 = vunpack.c.l.b16 %v935
  %v962 = vunpack.c.h.b16 %v935
  %v963 = vunpack.c.l.b16 %v936
  %v964 = vunpack.c.l.b16 %v937
  %v965 = vunpack.c.h.b16 %v937
  %v966 = vunpack.c.l.b16 %v938
  %v967 = vunpack.c.l.b16 %v939
  %v968 = vunpack.c.h.b16 %v939
  %v969 = vunpack.c.l.b16 %v940
  %v970 = vunpack.c.l.b16 %v941
  %v971 = vunpack.c.h.b16 %v941
  %v972 = vunpack.c.l.b16 %v942
  %v973 = vpack.c.b16 %v958, %v955
  %v974 = vpack.c.b16 %v959, %v956
  %v975 = vpack.c.b16 %v960, %v957
  %v976 = vpack.c.b16 %v964, %v961
  %v977 = vpack.c.b16 %v965, %v962
  %v978 = vpack.c.b16 %v966, %v963
  %v979 = vpack.c.b16 %v970, %v967
  %v980 = vpack.c.b16 %v971, %v968
  %v981 = vpack.c.b16 %v972, %v969
  %v982 = vrot.slane %v973, 2
  %v983 = vrot.slane %v974, 2
  %v984 = vrot.slane %v975, 2
  %v985 = vrot.slane %v976, 2
  %v986 = vsel %vm572, %v982, %v985
  %v987 = vrot.slane %v977, 2
  %v988 = vsel %vm572, %v983, %v987
  %v989 = vrot.slane %v978, 2
  %v990 = vsel %vm572, %v984, %v989
  %v991 = vrot.slane %v979, 2
  %v992 = vsel %vm572, %v985, %v991
  %v993 = vrot.slane %v980, 2
  %v994 = vsel %vm572, %v987, %v993
  %v995 = vrot.slane %v981, 2
  %v996 = vsel %vm572, %v989, %v995
  %997 = vrot.lane.b32.xlu0 %v982, 48
  %v998 = vpop.permute.xlu0 %997
  %999 = vrot.lane.b32.xlu0 %v983, 48
  %v1000 = vpop.permute.xlu0 %999
  %1001 = vrot.lane.b32.xlu0 %v984, 48
  %v1002 = vpop.permute.xlu0 %1001
  %1003 = vrot.lane.b32.xlu0 %v986, 48
  %v1004 = vpop.permute.xlu0 %1003
  %1005 = vrot.lane.b32.xlu0 %v988, 48
  %v1006 = vpop.permute.xlu0 %1005
  %1007 = vrot.lane.b32.xlu0 %v990, 48
  %v1008 = vpop.permute.xlu0 %1007
  %1009 = vrot.lane.b32.xlu0 %v992, 48
  %v1010 = vpop.permute.xlu0 %1009
  %1011 = vrot.lane.b32.xlu0 %v994, 48
  %v1012 = vpop.permute.xlu0 %1011
  %1013 = vrot.lane.b32.xlu0 %v996, 48
  %v1014 = vpop.permute.xlu0 %1013
  %1015 = vrot.lane.b32.xlu0 %v991, 48
  %v1016 = vpop.permute.xlu0 %1015
  %1017 = vrot.lane.b32.xlu0 %v993, 48
  %v1018 = vpop.permute.xlu0 %1017
  %1019 = vrot.lane.b32.xlu0 %v995, 48
  %v1020 = vpop.permute.xlu0 %1019
  %vm1021 = vcmask 392192
  %v1022 = vsel %vm1021, %v998, %v1000
  %v1023 = vsel %vm1021, %v1000, %v1002
  %v1024 = vsel %vm1021, %v1004, %v1006
  %v1025 = vsel %vm1021, %v1006, %v1008
  %v1026 = vsel %vm1021, %v1010, %v1012
  %v1027 = vsel %vm1021, %v1012, %v1014
  %v1028 = vsel %vm1021, %v1016, %v1018
  %v1029 = vsel %vm1021, %v1018, %v1020
  %1038 = vst [vmem:[#allocation3 + $0x1a0] sm:$0xc0] %v1022
  %1039 = vst [vmem:[#allocation3 + $0x1a8] sm:$0xc0] %v1023
  %1040 = vst [vmem:[#allocation3 + $0x1c0] sm:$0xff] %v1024
  %1041 = vst [vmem:[#allocation3 + $0x1c8] sm:$0xff] %v1025
  %1042 = vst [vmem:[#allocation3 + $0x1e0] sm:$0xff] %v1026
  %1043 = vst [vmem:[#allocation3 + $0x1e8] sm:$0xff] %v1027
  %1044 = vst [vmem:[#allocation3 + $0x200] sm:$0xf] %v1028
  %1045 = vst [vmem:[#allocation3 + $0x208] sm:$0xf] %v1029
  %v1046 = vld [vmem:[#allocation2] sm:$0xff]
  %v1047 = vld [vmem:[#allocation2 + $0x8] sm:$0xf]
  %v1048 = vld [vmem:[#allocation2 + $0x10] sm:$0xff]
  %v1049 = vld [vmem:[#allocation2 + $0x18] sm:$0xf]
  %v1050 = vld [vmem:[#allocation2 + $0x20] sm:$0xff]
  %v1051 = vld [vmem:[#allocation2 + $0x28] sm:$0xf]
  %v1052 = vld [vmem:[#allocation2 + $0x30] sm:$0xff]
  %v1053 = vld [vmem:[#allocation2 + $0x38] sm:$0xf]
  %v1054 = vld [vmem:[#allocation2 + $0x40] sm:$0xff]
  %v1055 = vld [vmem:[#allocation2 + $0x48] sm:$0xf]
  %v1056 = vld [vmem:[#allocation2 + $0x50] sm:$0x33]
  %v1057 = vld [vmem:[#allocation2 + $0x58] sm:$0x3]
  %v1070 = vunpack.c.l.b16 %v1046
  %v1071 = vunpack.c.h.b16 %v1046
  %v1072 = vunpack.c.l.b16 %v1047
  %v1073 = vunpack.c.l.b16 %v1048
  %v1074 = vunpack.c.h.b16 %v1048
  %v1075 = vunpack.c.l.b16 %v1049
  %v1076 = vunpack.c.l.b16 %v1050
  %v1077 = vunpack.c.h.b16 %v1050
  %v1078 = vunpack.c.l.b16 %v1051
  %v1079 = vunpack.c.l.b16 %v1052
  %v1080 = vunpack.c.h.b16 %v1052
  %v1081 = vunpack.c.l.b16 %v1053
  %v1082 = vunpack.c.l.b16 %v1054
  %v1083 = vunpack.c.h.b16 %v1054
  %v1084 = vunpack.c.l.b16 %v1055
  %v1085 = vunpack.c.l.b16 %v1056
  %v1086 = vunpack.c.h.b16 %v1056
  %v1087 = vunpack.c.l.b16 %v1057
  %v1088 = vpack.c.b16 %v1070, %v1070
  %v1089 = vpack.c.b16 %v1071, %v1071
  %v1090 = vpack.c.b16 %v1072, %v1072
  %v1091 = vpack.c.b16 %v1076, %v1073
  %v1092 = vpack.c.b16 %v1077, %v1074
  %v1093 = vpack.c.b16 %v1078, %v1075
  %v1094 = vpack.c.b16 %v1082, %v1079
  %v1095 = vpack.c.b16 %v1083, %v1080
  %v1096 = vpack.c.b16 %v1084, %v1081
  %v1097 = vpack.c.b16 %v1085, %v1085
  %v1098 = vpack.c.b16 %v1086, %v1086
  %v1099 = vpack.c.b16 %v1087, %v1087
  %1100 = vrot.lane.b32.xlu0 %v1088, 32
  %v1101 = vpop.permute.xlu0 %1100
  %1102 = vrot.lane.b32.xlu0 %v1089, 32
  %v1103 = vpop.permute.xlu0 %1102
  %1104 = vrot.lane.b32.xlu0 %v1090, 32
  %v1105 = vpop.permute.xlu0 %1104
  %1106 = vrot.lane.b32.xlu0 %v1091, 32
  %v1107 = vpop.permute.xlu0 %1106
  %1108 = vrot.lane.b32.xlu0 %v1092, 32
  %v1109 = vpop.permute.xlu0 %1108
  %1110 = vrot.lane.b32.xlu0 %v1093, 32
  %v1111 = vpop.permute.xlu0 %1110
  %1112 = vrot.lane.b32.xlu0 %v1094, 32
  %v1113 = vpop.permute.xlu0 %1112
  %1114 = vrot.lane.b32.xlu0 %v1095, 32
  %v1115 = vpop.permute.xlu0 %1114
  %1116 = vrot.lane.b32.xlu0 %v1096, 32
  %v1117 = vpop.permute.xlu0 %1116
  %1118 = vrot.lane.b32.xlu0 %v1097, 32
  %v1119 = vpop.permute.xlu0 %1118
  %1120 = vrot.lane.b32.xlu0 %v1098, 32
  %v1121 = vpop.permute.xlu0 %1120
  %1122 = vrot.lane.b32.xlu0 %v1099, 32
  %v1123 = vpop.permute.xlu0 %1122
  %vm1124 = vcmask 261120
  %v1125 = vsel %vm1124, %v1101, %v1103
  %v1126 = vsel %vm1124, %v1103, %v1105
  %v1127 = vsel %vm1124, %v1107, %v1109
  %v1128 = vsel %vm1124, %v1109, %v1111
  %v1129 = vsel %vm1124, %v1113, %v1115
  %v1130 = vsel %vm1124, %v1115, %v1117
  %v1131 = vsel %vm1124, %v1119, %v1121
  %v1132 = vsel %vm1124, %v1121, %v1123
  %1141 = vst [vmem:[#allocation3 + $0x200] sm:$0xf0] %v1125
  %1142 = vst [vmem:[#allocation3 + $0x208] sm:$0xf0] %v1126
  %1143 = vst [vmem:[#allocation3 + $0x220] sm:$0xff] %v1127
  %1144 = vst [vmem:[#allocation3 + $0x228] sm:$0xff] %v1128
  %1145 = vst [vmem:[#allocation3 + $0x240] sm:$0xff] %v1129
  %1146 = vst [vmem:[#allocation3 + $0x248] sm:$0xff] %v1130
  %1147 = vst [vmem:[#allocation3 + $0x260] sm:$0x3] %v1131
  %1148 = vst [vmem:[#allocation3 + $0x268] sm:$0x3] %v1132
  %v1149 = vld [vmem:[#allocation2] sm:$0xff]
  %v1150 = vld [vmem:[#allocation2 + $0x8] sm:$0xf]
  %v1151 = vld [vmem:[#allocation2 + $0x10] sm:$0xff]
  %v1152 = vld [vmem:[#allocation2 + $0x18] sm:$0xf]
  %v1153 = vld [vmem:[#allocation2 + $0x20] sm:$0xff]
  %v1154 = vld [vmem:[#allocation2 + $0x28] sm:$0xf]
  %v1155 = vld [vmem:[#allocation2 + $0x30] sm:$0xff]
  %v1156 = vld [vmem:[#allocation2 + $0x38] sm:$0xf]
  %v1157 = vld [vmem:[#allocation2 + $0x40] sm:$0xff]
  %v1158 = vld [vmem:[#allocation2 + $0x48] sm:$0xf]
  %v1159 = vld [vmem:[#allocation2 + $0x50] sm:$0x33]
  %v1160 = vld [vmem:[#allocation2 + $0x58] sm:$0x3]
  %v1173 = vunpack.c.l.b16 %v1149
  %v1174 = vunpack.c.h.b16 %v1149
  %v1175 = vunpack.c.l.b16 %v1150
  %v1176 = vunpack.c.l.b16 %v1151
  %v1177 = vunpack.c.h.b16 %v1151
  %v1178 = vunpack.c.l.b16 %v1152
  %v1179 = vunpack.c.l.b16 %v1153
  %v1180 = vunpack.c.h.b16 %v1153
  %v1181 = vunpack.c.l.b16 %v1154
  %v1182 = vunpack.c.l.b16 %v1155
  %v1183 = vunpack.c.h.b16 %v1155
  %v1184 = vunpack.c.l.b16 %v1156
  %v1185 = vunpack.c.l.b16 %v1157
  %v1186 = vunpack.c.h.b16 %v1157
  %v1187 = vunpack.c.l.b16 %v1158
  %v1188 = vunpack.c.l.b16 %v1159
  %v1189 = vunpack.c.h.b16 %v1159
  %v1190 = vunpack.c.l.b16 %v1160
  %v1191 = vpack.c.b16 %v1176, %v1173
  %v1192 = vpack.c.b16 %v1177, %v1174
  %v1193 = vpack.c.b16 %v1178, %v1175
  %v1194 = vpack.c.b16 %v1182, %v1179
  %v1195 = vpack.c.b16 %v1183, %v1180
  %v1196 = vpack.c.b16 %v1184, %v1181
  %v1197 = vpack.c.b16 %v1188, %v1185
  %v1198 = vpack.c.b16 %v1189, %v1186
  %v1199 = vpack.c.b16 %v1190, %v1187
  %v1200 = vrot.slane %v1191, 6
  %v1201 = vrot.slane %v1192, 6
  %v1202 = vrot.slane %v1193, 6
  %v1203 = vrot.slane %v1194, 6
  %v1204 = vsel %vm35, %v1200, %v1203
  %v1205 = vrot.slane %v1195, 6
  %v1206 = vsel %vm35, %v1201, %v1205
  %v1207 = vrot.slane %v1196, 6
  %v1208 = vsel %vm35, %v1202, %v1207
  %v1209 = vrot.slane %v1197, 6
  %v1210 = vsel %vm35, %v1203, %v1209
  %v1211 = vrot.slane %v1198, 6
  %v1212 = vsel %vm35, %v1205, %v1211
  %v1213 = vrot.slane %v1199, 6
  %v1214 = vsel %vm35, %v1207, %v1213
  %1215 = vrot.lane.b32.xlu0 %v1200, 16
  %v1216 = vpop.permute.xlu0 %1215
  %1217 = vrot.lane.b32.xlu0 %v1201, 16
  %v1218 = vpop.permute.xlu0 %1217
  %1219 = vrot.lane.b32.xlu0 %v1202, 16
  %v1220 = vpop.permute.xlu0 %1219
  %1221 = vrot.lane.b32.xlu0 %v1204, 16
  %v1222 = vpop.permute.xlu0 %1221
  %1223 = vrot.lane.b32.xlu0 %v1206, 16
  %v1224 = vpop.permute.xlu0 %1223
  %1225 = vrot.lane.b32.xlu0 %v1208, 16
  %v1226 = vpop.permute.xlu0 %1225
  %1227 = vrot.lane.b32.xlu0 %v1210, 16
  %v1228 = vpop.permute.xlu0 %1227
  %1229 = vrot.lane.b32.xlu0 %v1212, 16
  %v1230 = vpop.permute.xlu0 %1229
  %1231 = vrot.lane.b32.xlu0 %v1214, 16
  %v1232 = vpop.permute.xlu0 %1231
  %vm1233 = vcmask 130048
  %v1234 = vsel %vm1233, %v1216, %v1218
  %v1235 = vsel %vm1233, %v1218, %v1220
  %v1236 = vsel %vm1233, %v1222, %v1224
  %v1237 = vsel %vm1233, %v1224, %v1226
  %v1238 = vsel %vm1233, %v1228, %v1230
  %v1239 = vsel %vm1233, %v1230, %v1232
  %1246 = vst [vmem:[#allocation3 + $0x260] sm:$0xfc] %v1234
  %1247 = vst [vmem:[#allocation3 + $0x268] sm:$0xfc] %v1235
  %1248 = vst [vmem:[#allocation3 + $0x280] sm:$0xff] %v1236
  %1249 = vst [vmem:[#allocation3 + $0x288] sm:$0xff] %v1237
  %1250 = vst [vmem:[#allocation3 + $0x2a0] sm:$0xff] %v1238
  %1251 = vst [vmem:[#allocation3 + $0x2a8] sm:$0xff] %v1239
  %v1252 = vld [vmem:[#allocation2 + $0x4] sm:$0xff]
  %v1253 = vld [vmem:[#allocation2 + $0x14] sm:$0xff]
  %v1254 = vld [vmem:[#allocation2 + $0x24] sm:$0xff]
  %v1255 = vld [vmem:[#allocation2 + $0x34] sm:$0xff]
  %v1256 = vld [vmem:[#allocation2 + $0x44] sm:$0xff]
  %v1257 = vld [vmem:[#allocation2 + $0x54] sm:$0x33]
  %v1264 = vunpack.c.l.b16 %v1252
  %v1265 = vunpack.c.h.b16 %v1252
  %v1266 = vunpack.c.l.b16 %v1253
  %v1267 = vunpack.c.h.b16 %v1253
  %v1268 = vunpack.c.l.b16 %v1254
  %v1269 = vunpack.c.h.b16 %v1254
  %v1270 = vunpack.c.l.b16 %v1255
  %v1271 = vunpack.c.h.b16 %v1255
  %v1272 = vunpack.c.l.b16 %v1256
  %v1273 = vunpack.c.h.b16 %v1256
  %v1274 = vunpack.c.l.b16 %v1257
  %v1275 = vunpack.c.h.b16 %v1257
  %v1276 = vpack.c.b16 %v1266, %v1264
  %v1277 = vpack.c.b16 %v1267, %v1265
  %v1278 = vpack.c.b16 %v1270, %v1268
  %v1279 = vpack.c.b16 %v1271, %v1269
  %v1280 = vpack.c.b16 %v1274, %v1272
  %v1281 = vpack.c.b16 %v1275, %v1273
  %1288 = vst [vmem:[#allocation3 + $0x2c0] sm:$0xff] %v1276
  %1289 = vst [vmem:[#allocation3 + $0x2c8] sm:$0xff] %v1277
  %1290 = vst [vmem:[#allocation3 + $0x2e0] sm:$0xff] %v1278
  %1291 = vst [vmem:[#allocation3 + $0x2e8] sm:$0xff] %v1279
  %1292 = vst [vmem:[#allocation3 + $0x300] sm:$0x3f] %v1280
  %1293 = vst [vmem:[#allocation3 + $0x308] sm:$0x3f] %v1281
  %v1294 = vld [vmem:[#allocation2 + $0x4] sm:$0xff]
  %v1295 = vld [vmem:[#allocation2 + $0xc] sm:$0xf]
  %v1296 = vld [vmem:[#allocation2 + $0x14] sm:$0xff]
  %v1297 = vld [vmem:[#allocation2 + $0x1c] sm:$0xf]
  %v1298 = vld [vmem:[#allocation2 + $0x24] sm:$0xff]
  %v1299 = vld [vmem:[#allocation2 + $0x2c] sm:$0xf]
  %v1300 = vld [vmem:[#allocation2 + $0x34] sm:$0xff]
  %v1301 = vld [vmem:[#allocation2 + $0x3c] sm:$0xf]
  %v1302 = vld [vmem:[#allocation2 + $0x44] sm:$0xff]
  %v1303 = vld [vmem:[#allocation2 + $0x4c] sm:$0xf]
  %v1304 = vld [vmem:[#allocation2 + $0x54] sm:$0x33]
  %v1305 = vld [vmem:[#allocation2 + $0x5c] sm:$0x3]
  %v1318 = vunpack.c.l.b16 %v1294
  %v1319 = vunpack.c.h.b16 %v1294
  %v1320 = vunpack.c.l.b16 %v1295
  %v1321 = vunpack.c.l.b16 %v1296
  %v1322 = vunpack.c.h.b16 %v1296
  %v1323 = vunpack.c.l.b16 %v1297
  %v1324 = vunpack.c.l.b16 %v1298
  %v1325 = vunpack.c.h.b16 %v1298
  %v1326 = vunpack.c.l.b16 %v1299
  %v1327 = vunpack.c.l.b16 %v1300
  %v1328 = vunpack.c.h.b16 %v1300
  %v1329 = vunpack.c.l.b16 %v1301
  %v1330 = vunpack.c.l.b16 %v1302
  %v1331 = vunpack.c.h.b16 %v1302
  %v1332 = vunpack.c.l.b16 %v1303
  %v1333 = vunpack.c.l.b16 %v1304
  %v1334 = vunpack.c.h.b16 %v1304
  %v1335 = vunpack.c.l.b16 %v1305
  %v1336 = vpack.c.b16 %v1321, %v1318
  %v1337 = vpack.c.b16 %v1322, %v1319
  %v1338 = vpack.c.b16 %v1323, %v1320
  %v1339 = vpack.c.b16 %v1327, %v1324
  %v1340 = vpack.c.b16 %v1328, %v1325
  %v1341 = vpack.c.b16 %v1329, %v1326
  %v1342 = vpack.c.b16 %v1333, %v1330
  %v1343 = vpack.c.b16 %v1334, %v1331
  %v1344 = vpack.c.b16 %v1335, %v1332
  %v1345 = vrot.slane %v1336, 2
  %v1346 = vrot.slane %v1337, 2
  %v1347 = vrot.slane %v1338, 2
  %v1348 = vrot.slane %v1339, 2
  %v1349 = vsel %vm572, %v1345, %v1348
  %v1350 = vrot.slane %v1340, 2
  %v1351 = vsel %vm572, %v1346, %v1350
  %v1352 = vrot.slane %v1341, 2
  %v1353 = vsel %vm572, %v1347, %v1352
  %v1354 = vrot.slane %v1342, 2
  %v1355 = vsel %vm572, %v1348, %v1354
  %v1356 = vrot.slane %v1343, 2
  %v1357 = vsel %vm572, %v1350, %v1356
  %v1358 = vrot.slane %v1344, 2
  %v1359 = vsel %vm572, %v1352, %v1358
  %1360 = vrot.lane.b32.xlu0 %v1345, 112
  %v1361 = vpop.permute.xlu0 %1360
  %1362 = vrot.lane.b32.xlu0 %v1346, 112
  %v1363 = vpop.permute.xlu0 %1362
  %1364 = vrot.lane.b32.xlu0 %v1347, 112
  %v1365 = vpop.permute.xlu0 %1364
  %1366 = vrot.lane.b32.xlu0 %v1349, 112
  %v1367 = vpop.permute.xlu0 %1366
  %1368 = vrot.lane.b32.xlu0 %v1351, 112
  %v1369 = vpop.permute.xlu0 %1368
  %1370 = vrot.lane.b32.xlu0 %v1353, 112
  %v1371 = vpop.permute.xlu0 %1370
  %1372 = vrot.lane.b32.xlu0 %v1355, 112
  %v1373 = vpop.permute.xlu0 %1372
  %1374 = vrot.lane.b32.xlu0 %v1357, 112
  %v1375 = vpop.permute.xlu0 %1374
  %1376 = vrot.lane.b32.xlu0 %v1359, 112
  %v1377 = vpop.permute.xlu0 %1376
  %1378 = vrot.lane.b32.xlu0 %v1354, 112
  %v1379 = vpop.permute.xlu0 %1378
  %1380 = vrot.lane.b32.xlu0 %v1356, 112
  %v1381 = vpop.permute.xlu0 %1380
  %1382 = vrot.lane.b32.xlu0 %v1358, 112
  %v1383 = vpop.permute.xlu0 %1382
  %v1384 = vsel %vm612, %v1361, %v1363
  %v1385 = vsel %vm612, %v1363, %v1365
  %v1386 = vsel %vm612, %v1367, %v1369
  %v1387 = vsel %vm612, %v1369, %v1371
  %v1388 = vsel %vm612, %v1373, %v1375
  %v1389 = vsel %vm612, %v1375, %v1377
  %v1390 = vsel %vm612, %v1379, %v1381
  %v1391 = vsel %vm612, %v1381, %v1383
  %1400 = vst [vmem:[#allocation3 + $0x300] sm:$0xc0] %v1384
  %1401 = vst [vmem:[#allocation3 + $0x308] sm:$0xc0] %v1385
  %1402 = vst [vmem:[#allocation3 + $0x320] sm:$0xff] %v1386
  %1403 = vst [vmem:[#allocation3 + $0x328] sm:$0xff] %v1387
  %1404 = vst [vmem:[#allocation3 + $0x340] sm:$0xff] %v1388
  %1405 = vst [vmem:[#allocation3 + $0x348] sm:$0xff] %v1389
  %1406 = vst [vmem:[#allocation3 + $0x360] sm:$0xf] %v1390
  %1407 = vst [vmem:[#allocation3 + $0x368] sm:$0xf] %v1391
  %v1408 = vld [vmem:[#allocation2 + $0x4] sm:$0xff]
  %v1409 = vld [vmem:[#allocation2 + $0xc] sm:$0xf]
  %v1410 = vld [vmem:[#allocation2 + $0x14] sm:$0xff]
  %v1411 = vld [vmem:[#allocation2 + $0x1c] sm:$0xf]
  %v1412 = vld [vmem:[#allocation2 + $0x24] sm:$0xff]
  %v1413 = vld [vmem:[#allocation2 + $0x2c] sm:$0xf]
  %v1414 = vld [vmem:[#allocation2 + $0x34] sm:$0xff]
  %v1415 = vld [vmem:[#allocation2 + $0x3c] sm:$0xf]
  %v1416 = vld [vmem:[#allocation2 + $0x44] sm:$0xff]
  %v1417 = vld [vmem:[#allocation2 + $0x4c] sm:$0xf]
  %v1418 = vld [vmem:[#allocation2 + $0x54] sm:$0x33]
  %v1419 = vld [vmem:[#allocation2 + $0x5c] sm:$0x3]
  %v1432 = vunpack.c.l.b16 %v1408
  %v1433 = vunpack.c.h.b16 %v1408
  %v1434 = vunpack.c.l.b16 %v1409
  %v1435 = vunpack.c.l.b16 %v1410
  %v1436 = vunpack.c.h.b16 %v1410
  %v1437 = vunpack.c.l.b16 %v1411
  %v1438 = vunpack.c.l.b16 %v1412
  %v1439 = vunpack.c.h.b16 %v1412
  %v1440 = vunpack.c.l.b16 %v1413
  %v1441 = vunpack.c.l.b16 %v1414
  %v1442 = vunpack.c.h.b16 %v1414
  %v1443 = vunpack.c.l.b16 %v1415
  %v1444 = vunpack.c.l.b16 %v1416
  %v1445 = vunpack.c.h.b16 %v1416
  %v1446 = vunpack.c.l.b16 %v1417
  %v1447 = vunpack.c.l.b16 %v1418
  %v1448 = vunpack.c.h.b16 %v1418
  %v1449 = vunpack.c.l.b16 %v1419
  %v1450 = vpack.c.b16 %v1432, %v1432
  %v1451 = vpack.c.b16 %v1433, %v1433
  %v1452 = vpack.c.b16 %v1434, %v1434
  %v1453 = vpack.c.b16 %v1438, %v1435
  %v1454 = vpack.c.b16 %v1439, %v1436
  %v1455 = vpack.c.b16 %v1440, %v1437
  %v1456 = vpack.c.b16 %v1444, %v1441
  %v1457 = vpack.c.b16 %v1445, %v1442
  %v1458 = vpack.c.b16 %v1446, %v1443
  %v1459 = vpack.c.b16 %v1447, %v1447
  %v1460 = vpack.c.b16 %v1448, %v1448
  %v1461 = vpack.c.b16 %v1449, %v1449
  %1462 = vrot.lane.b32.xlu0 %v1450, 96
  %v1463 = vpop.permute.xlu0 %1462
  %1464 = vrot.lane.b32.xlu0 %v1451, 96
  %v1465 = vpop.permute.xlu0 %1464
  %1466 = vrot.lane.b32.xlu0 %v1452, 96
  %v1467 = vpop.permute.xlu0 %1466
  %1468 = vrot.lane.b32.xlu0 %v1453, 96
  %v1469 = vpop.permute.xlu0 %1468
  %1470 = vrot.lane.b32.xlu0 %v1454, 96
  %v1471 = vpop.permute.xlu0 %1470
  %1472 = vrot.lane.b32.xlu0 %v1455, 96
  %v1473 = vpop.permute.xlu0 %1472
  %1474 = vrot.lane.b32.xlu0 %v1456, 96
  %v1475 = vpop.permute.xlu0 %1474
  %1476 = vrot.lane.b32.xlu0 %v1457, 96
  %v1477 = vpop.permute.xlu0 %1476
  %1478 = vrot.lane.b32.xlu0 %v1458, 96
  %v1479 = vpop.permute.xlu0 %1478
  %1480 = vrot.lane.b32.xlu0 %v1459, 96
  %v1481 = vpop.permute.xlu0 %1480
  %1482 = vrot.lane.b32.xlu0 %v1460, 96
  %v1483 = vpop.permute.xlu0 %1482
  %1484 = vrot.lane.b32.xlu0 %v1461, 96
  %v1485 = vpop.permute.xlu0 %1484
  %v1486 = vsel %vm715, %v1463, %v1465
  %v1487 = vsel %vm715, %v1465, %v1467
  %v1488 = vsel %vm715, %v1469, %v1471
  %v1489 = vsel %vm715, %v1471, %v1473
  %v1490 = vsel %vm715, %v1475, %v1477
  %v1491 = vsel %vm715, %v1477, %v1479
  %v1492 = vsel %vm715, %v1481, %v1483
  %v1493 = vsel %vm715, %v1483, %v1485
  %1502 = vst [vmem:[#allocation3 + $0x360] sm:$0xf0] %v1486
  %1503 = vst [vmem:[#allocation3 + $0x368] sm:$0xf0] %v1487
  %1504 = vst [vmem:[#allocation3 + $0x380] sm:$0xff] %v1488
  %1505 = vst [vmem:[#allocation3 + $0x388] sm:$0xff] %v1489
  %1506 = vst [vmem:[#allocation3 + $0x3a0] sm:$0xff] %v1490
  %1507 = vst [vmem:[#allocation3 + $0x3a8] sm:$0xff] %v1491
  %1508 = vst [vmem:[#allocation3 + $0x3c0] sm:$0x3] %v1492
  %1509 = vst [vmem:[#allocation3 + $0x3c8] sm:$0x3] %v1493
  %s1510 = scalar_lea.vmem %s0, 8
  %v1511 = vld [vmem:[%s1510] sm:$0xff]
  %v1512 = vld [vmem:[%s1] sm:$0xff]
  %v1513 = vmul.bf16 %v1511, %v1512
  %v1515 = vcombine.high %v1513, %v1513
  %v1517 = vunpack.c.l.s4 1983009808
  %v1518 = vunpack.c.0.s8 %v1517
  %v1519 = vlaneseq
  %v1520 = vshrl.u32 %v1519, 7
  %v1521 = vsub.s32 %v1518, %v1520
  %v1522 = vrot.slane %v1513, %v1521
  %v1524 = vunpack.c.l.s4 1983009808
  %v1525 = vunpack.c.0.s8 %v1524
  %v1526 = vlaneseq
  %v1527 = vshrl.u32 %v1526, 7
  %v1528 = vsub.s32 %v1525, %v1527
  %v1529 = vrot.slane %v1515, %v1528
  %1532 = vst [vmem:[#allocation2] sm:$0x33] %v1522
  %1533 = vst.msk [vmem:[#allocation2 + $0x8] sm:$0x33] %vm73, %v1529
  %v1534 = vld [vmem:[%s75] sm:$0xff]
  %1536 = vrot.lane.b32.xlu0 %v1534, 1
  %v1537 = vpop.permute.xlu0 %1536
  %v1538 = vrot.slane %v1537, 6
  %v1539 = vsel %vm81, %v1538, %v1537
  %v1541 = vmul.bf16 %v1511, %v1539
  %v1543 = vcombine.low %v1541, %v1541
  %v1545 = vunpack.c.l.s4 1983009808
  %v1546 = vunpack.c.0.s8 %v1545
  %v1547 = vlaneseq
  %v1548 = vshrl.u32 %v1547, 7
  %v1549 = vsub.s32 %v1546, %v1548
  %v1550 = vrot.slane %v1543, %v1549
  %v1552 = vunpack.c.l.s4 1983009808
  %v1553 = vunpack.c.0.s8 %v1552
  %v1554 = vlaneseq
  %v1555 = vshrl.u32 %v1554, 7
  %v1556 = vsub.s32 %v1553, %v1555
  %v1557 = vrot.slane %v1541, %v1556
  %1558 = vrot.lane.b32.xlu0 %v1550, 127
  %v1559 = vpop.permute.xlu0 %1558
  %1560 = vrot.lane.b32.xlu0 %v1557, 127
  %v1561 = vpop.permute.xlu0 %1560
  %v1562 = vrot.slane %v1559, 4
  %v1563 = vrot.slane %v1561, 4
  %v1564 = vsel %vm107, %v1562, %v1563
  %v1565 = vsel %vm109, %v1559, %v1564
  %v1566 = vsel %vm109, %v1561, %v1563
  %1569 = vst [vmem:[#allocation2] sm:$0xcc] %v1565
  %1570 = vst.msk [vmem:[#allocation2 + $0x8] sm:$0xcc] %vm117, %v1566
  %v1571 = vld [vmem:[%s119] sm:$0xff]
  %1573 = vrot.lane.b32.xlu0 %v1571, 2
  %v1574 = vpop.permute.xlu0 %1573
  %v1575 = vrot.slane %v1574, 6
  %v1576 = vsel %vm125, %v1575, %v1574
  %v1578 = vmul.bf16 %v1511, %v1576
  %v1580 = vcombine.high %v1578, %v1578
  %v1582 = vunpack.c.l.s4 1983009808
  %v1583 = vunpack.c.0.s8 %v1582
  %v1584 = vlaneseq
  %v1585 = vshrl.u32 %v1584, 7
  %v1586 = vsub.s32 %v1583, %v1585
  %v1587 = vrot.slane %v1578, %v1586
  %v1589 = vunpack.c.l.s4 1983009808
  %v1590 = vunpack.c.0.s8 %v1589
  %v1591 = vlaneseq
  %v1592 = vshrl.u32 %v1591, 7
  %v1593 = vsub.s32 %v1590, %v1592
  %v1594 = vrot.slane %v1580, %v1593
  %1595 = vrot.lane.b32.xlu0 %v1587, 126
  %v1596 = vpop.permute.xlu0 %1595
  %1597 = vrot.lane.b32.xlu0 %v1594, 126
  %v1598 = vpop.permute.xlu0 %1597
  %v1599 = vrot.slane %v1596, 4
  %v1600 = vrot.slane %v1598, 4
  %v1601 = vsel %vm107, %v1599, %v1600
  %v1602 = vsel %vm152, %v1596, %v1601
  %v1603 = vsel %vm152, %v1598, %v1600
  %1606 = vst [vmem:[#allocation2 + $0x10] sm:$0x33] %v1602
  %1607 = vst.msk [vmem:[#allocation2 + $0x18] sm:$0x33] %vm73, %v1603
  %v1608 = vld [vmem:[%s159] sm:$0xff]
  %1610 = vrot.lane.b32.xlu0 %v1608, 3
  %v1611 = vpop.permute.xlu0 %1610
  %v1612 = vrot.slane %v1611, 6
  %v1613 = vsel %vm165, %v1612, %v1611
  %v1615 = vmul.bf16 %v1511, %v1613
  %v1617 = vcombine.low %v1615, %v1615
  %v1619 = vunpack.c.l.s4 1983009808
  %v1620 = vunpack.c.0.s8 %v1619
  %v1621 = vlaneseq
  %v1622 = vshrl.u32 %v1621, 7
  %v1623 = vsub.s32 %v1620, %v1622
  %v1624 = vrot.slane %v1617, %v1623
  %v1626 = vunpack.c.l.s4 1983009808
  %v1627 = vunpack.c.0.s8 %v1626
  %v1628 = vlaneseq
  %v1629 = vshrl.u32 %v1628, 7
  %v1630 = vsub.s32 %v1627, %v1629
  %v1631 = vrot.slane %v1615, %v1630
  %1632 = vrot.lane.b32.xlu0 %v1624, 125
  %v1633 = vpop.permute.xlu0 %1632
  %1634 = vrot.lane.b32.xlu0 %v1631, 125
  %v1635 = vpop.permute.xlu0 %1634
  %v1636 = vrot.slane %v1633, 4
  %v1637 = vrot.slane %v1635, 4
  %v1638 = vsel %vm107, %v1636, %v1637
  %v1639 = vsel %vm192, %v1633, %v1638
  %v1640 = vsel %vm192, %v1635, %v1637
  %1643 = vst [vmem:[#allocation2 + $0x10] sm:$0xcc] %v1639
  %1644 = vst.msk [vmem:[#allocation2 + $0x18] sm:$0xcc] %vm117, %v1640
  %v1645 = vld [vmem:[%s199] sm:$0xff]
  %1647 = vrot.lane.b32.xlu0 %v1645, 4
  %v1648 = vpop.permute.xlu0 %1647
  %v1649 = vrot.slane %v1648, 6
  %v1650 = vsel %vm205, %v1649, %v1648
  %v1652 = vmul.bf16 %v1511, %v1650
  %v1654 = vcombine.high %v1652, %v1652
  %v1656 = vunpack.c.l.s4 1983009808
  %v1657 = vunpack.c.0.s8 %v1656
  %v1658 = vlaneseq
  %v1659 = vshrl.u32 %v1658, 7
  %v1660 = vsub.s32 %v1657, %v1659
  %v1661 = vrot.slane %v1652, %v1660
  %v1663 = vunpack.c.l.s4 1983009808
  %v1664 = vunpack.c.0.s8 %v1663
  %v1665 = vlaneseq
  %v1666 = vshrl.u32 %v1665, 7
  %v1667 = vsub.s32 %v1664, %v1666
  %v1668 = vrot.slane %v1654, %v1667
  %1669 = vrot.lane.b32.xlu0 %v1661, 124
  %v1670 = vpop.permute.xlu0 %1669
  %1671 = vrot.lane.b32.xlu0 %v1668, 124
  %v1672 = vpop.permute.xlu0 %1671
  %v1673 = vrot.slane %v1670, 4
  %v1674 = vrot.slane %v1672, 4
  %v1675 = vsel %vm107, %v1673, %v1674
  %v1676 = vsel %vm232, %v1670, %v1675
  %v1677 = vsel %vm232, %v1672, %v1674
  %1680 = vst [vmem:[#allocation2 + $0x20] sm:$0x33] %v1676
  %1681 = vst.msk [vmem:[#allocation2 + $0x28] sm:$0x33] %vm73, %v1677
  %v1682 = vld [vmem:[%s239] sm:$0xff]
  %1684 = vrot.lane.b32.xlu0 %v1682, 5
  %v1685 = vpop.permute.xlu0 %1684
  %v1686 = vrot.slane %v1685, 6
  %v1687 = vsel %vm245, %v1686, %v1685
  %v1689 = vmul.bf16 %v1511, %v1687
  %v1691 = vcombine.low %v1689, %v1689
  %v1693 = vunpack.c.l.s4 1983009808
  %v1694 = vunpack.c.0.s8 %v1693
  %v1695 = vlaneseq
  %v1696 = vshrl.u32 %v1695, 7
  %v1697 = vsub.s32 %v1694, %v1696
  %v1698 = vrot.slane %v1691, %v1697
  %v1700 = vunpack.c.l.s4 1983009808
  %v1701 = vunpack.c.0.s8 %v1700
  %v1702 = vlaneseq
  %v1703 = vshrl.u32 %v1702, 7
  %v1704 = vsub.s32 %v1701, %v1703
  %v1705 = vrot.slane %v1689, %v1704
  %1706 = vrot.lane.b32.xlu0 %v1698, 123
  %v1707 = vpop.permute.xlu0 %1706
  %1708 = vrot.lane.b32.xlu0 %v1705, 123
  %v1709 = vpop.permute.xlu0 %1708
  %v1710 = vrot.slane %v1707, 4
  %v1711 = vrot.slane %v1709, 4
  %v1712 = vsel %vm107, %v1710, %v1711
  %v1713 = vsel %vm272, %v1707, %v1712
  %v1714 = vsel %vm272, %v1709, %v1711
  %1717 = vst [vmem:[#allocation2 + $0x20] sm:$0xcc] %v1713
  %1718 = vst.msk [vmem:[#allocation2 + $0x28] sm:$0xcc] %vm117, %v1714
  %v1719 = vld [vmem:[%s279] sm:$0xff]
  %1721 = vrot.lane.b32.xlu0 %v1719, 6
  %v1722 = vpop.permute.xlu0 %1721
  %v1723 = vrot.slane %v1722, 6
  %v1724 = vsel %vm285, %v1723, %v1722
  %v1726 = vmul.bf16 %v1511, %v1724
  %v1728 = vcombine.high %v1726, %v1726
  %v1730 = vunpack.c.l.s4 1983009808
  %v1731 = vunpack.c.0.s8 %v1730
  %v1732 = vlaneseq
  %v1733 = vshrl.u32 %v1732, 7
  %v1734 = vsub.s32 %v1731, %v1733
  %v1735 = vrot.slane %v1726, %v1734
  %v1737 = vunpack.c.l.s4 1983009808
  %v1738 = vunpack.c.0.s8 %v1737
  %v1739 = vlaneseq
  %v1740 = vshrl.u32 %v1739, 7
  %v1741 = vsub.s32 %v1738, %v1740
  %v1742 = vrot.slane %v1728, %v1741
  %1743 = vrot.lane.b32.xlu0 %v1735, 122
  %v1744 = vpop.permute.xlu0 %1743
  %1745 = vrot.lane.b32.xlu0 %v1742, 122
  %v1746 = vpop.permute.xlu0 %1745
  %v1747 = vrot.slane %v1744, 4
  %v1748 = vrot.slane %v1746, 4
  %v1749 = vsel %vm107, %v1747, %v1748
  %v1750 = vsel %vm312, %v1744, %v1749
  %v1751 = vsel %vm312, %v1746, %v1748
  %1754 = vst [vmem:[#allocation2 + $0x30] sm:$0x33] %v1750
  %1755 = vst.msk [vmem:[#allocation2 + $0x38] sm:$0x33] %vm73, %v1751
  %v1756 = vld [vmem:[%s319] sm:$0xff]
  %1758 = vrot.lane.b32.xlu0 %v1756, 7
  %v1759 = vpop.permute.xlu0 %1758
  %v1760 = vrot.slane %v1759, 6
  %v1761 = vsel %vm325, %v1760, %v1759
  %v1763 = vmul.bf16 %v1511, %v1761
  %v1765 = vcombine.low %v1763, %v1763
  %v1767 = vunpack.c.l.s4 1983009808
  %v1768 = vunpack.c.0.s8 %v1767
  %v1769 = vlaneseq
  %v1770 = vshrl.u32 %v1769, 7
  %v1771 = vsub.s32 %v1768, %v1770
  %v1772 = vrot.slane %v1765, %v1771
  %v1774 = vunpack.c.l.s4 1983009808
  %v1775 = vunpack.c.0.s8 %v1774
  %v1776 = vlaneseq
  %v1777 = vshrl.u32 %v1776, 7
  %v1778 = vsub.s32 %v1775, %v1777
  %v1779 = vrot.slane %v1763, %v1778
  %1780 = vrot.lane.b32.xlu0 %v1772, 121
  %v1781 = vpop.permute.xlu0 %1780
  %1782 = vrot.lane.b32.xlu0 %v1779, 121
  %v1783 = vpop.permute.xlu0 %1782
  %v1784 = vrot.slane %v1781, 4
  %v1785 = vrot.slane %v1783, 4
  %v1786 = vsel %vm107, %v1784, %v1785
  %v1787 = vsel %vm352, %v1781, %v1786
  %v1788 = vsel %vm352, %v1783, %v1785
  %1791 = vst [vmem:[#allocation2 + $0x30] sm:$0xcc] %v1787
  %1792 = vst.msk [vmem:[#allocation2 + $0x38] sm:$0xcc] %vm117, %v1788
  %v1793 = vld [vmem:[%s359] sm:$0xff]
  %1795 = vrot.lane.b32.xlu0 %v1793, 8
  %v1796 = vpop.permute.xlu0 %1795
  %v1797 = vrot.slane %v1796, 6
  %v1798 = vsel %vm365, %v1797, %v1796
  %v1800 = vmul.bf16 %v1511, %v1798
  %v1802 = vcombine.high %v1800, %v1800
  %v1804 = vunpack.c.l.s4 1983009808
  %v1805 = vunpack.c.0.s8 %v1804
  %v1806 = vlaneseq
  %v1807 = vshrl.u32 %v1806, 7
  %v1808 = vsub.s32 %v1805, %v1807
  %v1809 = vrot.slane %v1800, %v1808
  %v1811 = vunpack.c.l.s4 1983009808
  %v1812 = vunpack.c.0.s8 %v1811
  %v1813 = vlaneseq
  %v1814 = vshrl.u32 %v1813, 7
  %v1815 = vsub.s32 %v1812, %v1814
  %v1816 = vrot.slane %v1802, %v1815
  %1817 = vrot.lane.b32.xlu0 %v1809, 120
  %v1818 = vpop.permute.xlu0 %1817
  %1819 = vrot.lane.b32.xlu0 %v1816, 120
  %v1820 = vpop.permute.xlu0 %1819
  %v1821 = vrot.slane %v1818, 4
  %v1822 = vrot.slane %v1820, 4
  %v1823 = vsel %vm107, %v1821, %v1822
  %v1824 = vsel %vm392, %v1818, %v1823
  %v1825 = vsel %vm392, %v1820, %v1822
  %1828 = vst [vmem:[#allocation2 + $0x40] sm:$0x33] %v1824
  %1829 = vst.msk [vmem:[#allocation2 + $0x48] sm:$0x33] %vm73, %v1825
  %v1830 = vld [vmem:[%s399] sm:$0xff]
  %1832 = vrot.lane.b32.xlu0 %v1830, 9
  %v1833 = vpop.permute.xlu0 %1832
  %v1834 = vrot.slane %v1833, 6
  %v1835 = vsel %vm405, %v1834, %v1833
  %v1837 = vmul.bf16 %v1511, %v1835
  %v1839 = vcombine.low %v1837, %v1837
  %v1841 = vunpack.c.l.s4 1983009808
  %v1842 = vunpack.c.0.s8 %v1841
  %v1843 = vlaneseq
  %v1844 = vshrl.u32 %v1843, 7
  %v1845 = vsub.s32 %v1842, %v1844
  %v1846 = vrot.slane %v1839, %v1845
  %v1848 = vunpack.c.l.s4 1983009808
  %v1849 = vunpack.c.0.s8 %v1848
  %v1850 = vlaneseq
  %v1851 = vshrl.u32 %v1850, 7
  %v1852 = vsub.s32 %v1849, %v1851
  %v1853 = vrot.slane %v1837, %v1852
  %1854 = vrot.lane.b32.xlu0 %v1846, 119
  %v1855 = vpop.permute.xlu0 %1854
  %1856 = vrot.lane.b32.xlu0 %v1853, 119
  %v1857 = vpop.permute.xlu0 %1856
  %v1858 = vrot.slane %v1855, 4
  %v1859 = vrot.slane %v1857, 4
  %v1860 = vsel %vm107, %v1858, %v1859
  %v1861 = vsel %vm432, %v1855, %v1860
  %v1862 = vsel %vm432, %v1857, %v1859
  %1865 = vst [vmem:[#allocation2 + $0x40] sm:$0xcc] %v1861
  %1866 = vst.msk [vmem:[#allocation2 + $0x48] sm:$0xcc] %vm117, %v1862
  %v1867 = vld [vmem:[%s439] sm:$0xff]
  %1869 = vrot.lane.b32.xlu0 %v1867, 10
  %v1870 = vpop.permute.xlu0 %1869
  %v1871 = vrot.slane %v1870, 6
  %v1872 = vsel %vm445, %v1871, %v1870
  %v1874 = vmul.bf16 %v1511, %v1872
  %v1876 = vcombine.high %v1874, %v1874
  %v1878 = vunpack.c.l.s4 1983009808
  %v1879 = vunpack.c.0.s8 %v1878
  %v1880 = vlaneseq
  %v1881 = vshrl.u32 %v1880, 7
  %v1882 = vsub.s32 %v1879, %v1881
  %v1883 = vrot.slane %v1874, %v1882
  %v1885 = vunpack.c.l.s4 1983009808
  %v1886 = vunpack.c.0.s8 %v1885
  %v1887 = vlaneseq
  %v1888 = vshrl.u32 %v1887, 7
  %v1889 = vsub.s32 %v1886, %v1888
  %v1890 = vrot.slane %v1876, %v1889
  %1891 = vrot.lane.b32.xlu0 %v1883, 118
  %v1892 = vpop.permute.xlu0 %1891
  %1893 = vrot.lane.b32.xlu0 %v1890, 118
  %v1894 = vpop.permute.xlu0 %1893
  %v1895 = vrot.slane %v1892, 4
  %v1896 = vrot.slane %v1894, 4
  %v1897 = vsel %vm107, %v1895, %v1896
  %v1898 = vsel %vm472, %v1892, %v1897
  %v1899 = vsel %vm472, %v1894, %v1896
  %1902 = vst [vmem:[#allocation2 + $0x50] sm:$0x33] %v1898
  %1903 = vst.msk [vmem:[#allocation2 + $0x58] sm:$0x33] %vm73, %v1899
  %v1904 = vld [vmem:[#allocation2] sm:$0xff]
  %v1905 = vld [vmem:[#allocation2 + $0x10] sm:$0xff]
  %v1906 = vld [vmem:[#allocation2 + $0x20] sm:$0xff]
  %v1907 = vld [vmem:[#allocation2 + $0x30] sm:$0xff]
  %v1908 = vld [vmem:[#allocation2 + $0x40] sm:$0xff]
  %v1909 = vld [vmem:[#allocation2 + $0x50] sm:$0x33]
  %v1916 = vunpack.c.l.b16 %v1904
  %v1917 = vunpack.c.h.b16 %v1904
  %v1918 = vunpack.c.l.b16 %v1905
  %v1919 = vunpack.c.h.b16 %v1905
  %v1920 = vunpack.c.l.b16 %v1906
  %v1921 = vunpack.c.h.b16 %v1906
  %v1922 = vunpack.c.l.b16 %v1907
  %v1923 = vunpack.c.h.b16 %v1907
  %v1924 = vunpack.c.l.b16 %v1908
  %v1925 = vunpack.c.h.b16 %v1908
  %v1926 = vunpack.c.l.b16 %v1909
  %v1927 = vunpack.c.h.b16 %v1909
  %v1928 = vpack.c.b16 %v1918, %v1916
  %v1929 = vpack.c.b16 %v1919, %v1917
  %v1930 = vpack.c.b16 %v1922, %v1920
  %v1931 = vpack.c.b16 %v1923, %v1921
  %v1932 = vpack.c.b16 %v1926, %v1924
  %v1933 = vpack.c.b16 %v1927, %v1925
  %1940 = vst [vmem:[#allocation3 + $0x10] sm:$0xff] %v1928
  %1941 = vst [vmem:[#allocation3 + $0x18] sm:$0xff] %v1929
  %1942 = vst [vmem:[#allocation3 + $0x30] sm:$0xff] %v1930
  %1943 = vst [vmem:[#allocation3 + $0x38] sm:$0xff] %v1931
  %1944 = vst [vmem:[#allocation3 + $0x50] sm:$0x3f] %v1932
  %1945 = vst [vmem:[#allocation3 + $0x58] sm:$0x3f] %v1933
  %v1946 = vld [vmem:[#allocation2] sm:$0xff]
  %v1947 = vld [vmem:[#allocation2 + $0x8] sm:$0xf]
  %v1948 = vld [vmem:[#allocation2 + $0x10] sm:$0xff]
  %v1949 = vld [vmem:[#allocation2 + $0x18] sm:$0xf]
  %v1950 = vld [vmem:[#allocation2 + $0x20] sm:$0xff]
  %v1951 = vld [vmem:[#allocation2 + $0x28] sm:$0xf]
  %v1952 = vld [vmem:[#allocation2 + $0x30] sm:$0xff]
  %v1953 = vld [vmem:[#allocation2 + $0x38] sm:$0xf]
  %v1954 = vld [vmem:[#allocation2 + $0x40] sm:$0xff]
  %v1955 = vld [vmem:[#allocation2 + $0x48] sm:$0xf]
  %v1956 = vld [vmem:[#allocation2 + $0x50] sm:$0x33]
  %v1957 = vld [vmem:[#allocation2 + $0x58] sm:$0x3]
  %v1970 = vunpack.c.l.b16 %v1946
  %v1971 = vunpack.c.h.b16 %v1946
  %v1972 = vunpack.c.l.b16 %v1947
  %v1973 = vunpack.c.l.b16 %v1948
  %v1974 = vunpack.c.h.b16 %v1948
  %v1975 = vunpack.c.l.b16 %v1949
  %v1976 = vunpack.c.l.b16 %v1950
  %v1977 = vunpack.c.h.b16 %v1950
  %v1978 = vunpack.c.l.b16 %v1951
  %v1979 = vunpack.c.l.b16 %v1952
  %v1980 = vunpack.c.h.b16 %v1952
  %v1981 = vunpack.c.l.b16 %v1953
  %v1982 = vunpack.c.l.b16 %v1954
  %v1983 = vunpack.c.h.b16 %v1954
  %v1984 = vunpack.c.l.b16 %v1955
  %v1985 = vunpack.c.l.b16 %v1956
  %v1986 = vunpack.c.h.b16 %v1956
  %v1987 = vunpack.c.l.b16 %v1957
  %v1988 = vpack.c.b16 %v1973, %v1970
  %v1989 = vpack.c.b16 %v1974, %v1971
  %v1990 = vpack.c.b16 %v1975, %v1972
  %v1991 = vpack.c.b16 %v1979, %v1976
  %v1992 = vpack.c.b16 %v1980, %v1977
  %v1993 = vpack.c.b16 %v1981, %v1978
  %v1994 = vpack.c.b16 %v1985, %v1982
  %v1995 = vpack.c.b16 %v1986, %v1983
  %v1996 = vpack.c.b16 %v1987, %v1984
  %v1997 = vrot.slane %v1988, 2
  %v1998 = vrot.slane %v1989, 2
  %v1999 = vrot.slane %v1990, 2
  %v2000 = vrot.slane %v1991, 2
  %v2001 = vsel %vm572, %v1997, %v2000
  %v2002 = vrot.slane %v1992, 2
  %v2003 = vsel %vm572, %v1998, %v2002
  %v2004 = vrot.slane %v1993, 2
  %v2005 = vsel %vm572, %v1999, %v2004
  %v2006 = vrot.slane %v1994, 2
  %v2007 = vsel %vm572, %v2000, %v2006
  %v2008 = vrot.slane %v1995, 2
  %v2009 = vsel %vm572, %v2002, %v2008
  %v2010 = vrot.slane %v1996, 2
  %v2011 = vsel %vm572, %v2004, %v2010
  %2012 = vrot.lane.b32.xlu0 %v1997, 112
  %v2013 = vpop.permute.xlu0 %2012
  %2014 = vrot.lane.b32.xlu0 %v1998, 112
  %v2015 = vpop.permute.xlu0 %2014
  %2016 = vrot.lane.b32.xlu0 %v1999, 112
  %v2017 = vpop.permute.xlu0 %2016
  %2018 = vrot.lane.b32.xlu0 %v2001, 112
  %v2019 = vpop.permute.xlu0 %2018
  %2020 = vrot.lane.b32.xlu0 %v2003, 112
  %v2021 = vpop.permute.xlu0 %2020
  %2022 = vrot.lane.b32.xlu0 %v2005, 112
  %v2023 = vpop.permute.xlu0 %2022
  %2024 = vrot.lane.b32.xlu0 %v2007, 112
  %v2025 = vpop.permute.xlu0 %2024
  %2026 = vrot.lane.b32.xlu0 %v2009, 112
  %v2027 = vpop.permute.xlu0 %2026
  %2028 = vrot.lane.b32.xlu0 %v2011, 112
  %v2029 = vpop.permute.xlu0 %2028
  %2030 = vrot.lane.b32.xlu0 %v2006, 112
  %v2031 = vpop.permute.xlu0 %2030
  %2032 = vrot.lane.b32.xlu0 %v2008, 112
  %v2033 = vpop.permute.xlu0 %2032
  %2034 = vrot.lane.b32.xlu0 %v2010, 112
  %v2035 = vpop.permute.xlu0 %2034
  %v2036 = vsel %vm612, %v2013, %v2015
  %v2037 = vsel %vm612, %v2015, %v2017
  %v2038 = vsel %vm612, %v2019, %v2021
  %v2039 = vsel %vm612, %v2021, %v2023
  %v2040 = vsel %vm612, %v2025, %v2027
  %v2041 = vsel %vm612, %v2027, %v2029
  %v2042 = vsel %vm612, %v2031, %v2033
  %v2043 = vsel %vm612, %v2033, %v2035
  %2052 = vst [vmem:[#allocation3 + $0x50] sm:$0xc0] %v2036
  %2053 = vst [vmem:[#allocation3 + $0x58] sm:$0xc0] %v2037
  %2054 = vst [vmem:[#allocation3 + $0x70] sm:$0xff] %v2038
  %2055 = vst [vmem:[#allocation3 + $0x78] sm:$0xff] %v2039
  %2056 = vst [vmem:[#allocation3 + $0x90] sm:$0xff] %v2040
  %2057 = vst [vmem:[#allocation3 + $0x98] sm:$0xff] %v2041
  %2058 = vst [vmem:[#allocation3 + $0xb0] sm:$0xf] %v2042
  %2059 = vst [vmem:[#allocation3 + $0xb8] sm:$0xf] %v2043
  %v2060 = vld [vmem:[#allocation2] sm:$0xff]
  %v2061 = vld [vmem:[#allocation2 + $0x8] sm:$0xf]
  %v2062 = vld [vmem:[#allocation2 + $0x10] sm:$0xff]
  %v2063 = vld [vmem:[#allocation2 + $0x18] sm:$0xf]
  %v2064 = vld [vmem:[#allocation2 + $0x20] sm:$0xff]
  %v2065 = vld [vmem:[#allocation2 + $0x28] sm:$0xf]
  %v2066 = vld [vmem:[#allocation2 + $0x30] sm:$0xff]
  %v2067 = vld [vmem:[#allocation2 + $0x38] sm:$0xf]
  %v2068 = vld [vmem:[#allocation2 + $0x40] sm:$0xff]
  %v2069 = vld [vmem:[#allocation2 + $0x48] sm:$0xf]
  %v2070 = vld [vmem:[#allocation2 + $0x50] sm:$0x33]
  %v2071 = vld [vmem:[#allocation2 + $0x58] sm:$0x3]
  %v2084 = vunpack.c.l.b16 %v2060
  %v2085 = vunpack.c.h.b16 %v2060
  %v2086 = vunpack.c.l.b16 %v2061
  %v2087 = vunpack.c.l.b16 %v2062
  %v2088 = vunpack.c.h.b16 %v2062
  %v2089 = vunpack.c.l.b16 %v2063
  %v2090 = vunpack.c.l.b16 %v2064
  %v2091 = vunpack.c.h.b16 %v2064
  %v2092 = vunpack.c.l.b16 %v2065
  %v2093 = vunpack.c.l.b16 %v2066
  %v2094 = vunpack.c.h.b16 %v2066
  %v2095 = vunpack.c.l.b16 %v2067
  %v2096 = vunpack.c.l.b16 %v2068
  %v2097 = vunpack.c.h.b16 %v2068
  %v2098 = vunpack.c.l.b16 %v2069
  %v2099 = vunpack.c.l.b16 %v2070
  %v2100 = vunpack.c.h.b16 %v2070
  %v2101 = vunpack.c.l.b16 %v2071
  %v2102 = vpack.c.b16 %v2084, %v2084
  %v2103 = vpack.c.b16 %v2085, %v2085
  %v2104 = vpack.c.b16 %v2086, %v2086
  %v2105 = vpack.c.b16 %v2090, %v2087
  %v2106 = vpack.c.b16 %v2091, %v2088
  %v2107 = vpack.c.b16 %v2092, %v2089
  %v2108 = vpack.c.b16 %v2096, %v2093
  %v2109 = vpack.c.b16 %v2097, %v2094
  %v2110 = vpack.c.b16 %v2098, %v2095
  %v2111 = vpack.c.b16 %v2099, %v2099
  %v2112 = vpack.c.b16 %v2100, %v2100
  %v2113 = vpack.c.b16 %v2101, %v2101
  %2114 = vrot.lane.b32.xlu0 %v2102, 96
  %v2115 = vpop.permute.xlu0 %2114
  %2116 = vrot.lane.b32.xlu0 %v2103, 96
  %v2117 = vpop.permute.xlu0 %2116
  %2118 = vrot.lane.b32.xlu0 %v2104, 96
  %v2119 = vpop.permute.xlu0 %2118
  %2120 = vrot.lane.b32.xlu0 %v2105, 96
  %v2121 = vpop.permute.xlu0 %2120
  %2122 = vrot.lane.b32.xlu0 %v2106, 96
  %v2123 = vpop.permute.xlu0 %2122
  %2124 = vrot.lane.b32.xlu0 %v2107, 96
  %v2125 = vpop.permute.xlu0 %2124
  %2126 = vrot.lane.b32.xlu0 %v2108, 96
  %v2127 = vpop.permute.xlu0 %2126
  %2128 = vrot.lane.b32.xlu0 %v2109, 96
  %v2129 = vpop.permute.xlu0 %2128
  %2130 = vrot.lane.b32.xlu0 %v2110, 96
  %v2131 = vpop.permute.xlu0 %2130
  %2132 = vrot.lane.b32.xlu0 %v2111, 96
  %v2133 = vpop.permute.xlu0 %2132
  %2134 = vrot.lane.b32.xlu0 %v2112, 96
  %v2135 = vpop.permute.xlu0 %2134
  %2136 = vrot.lane.b32.xlu0 %v2113, 96
  %v2137 = vpop.permute.xlu0 %2136
  %v2138 = vsel %vm715, %v2115, %v2117
  %v2139 = vsel %vm715, %v2117, %v2119
  %v2140 = vsel %vm715, %v2121, %v2123
  %v2141 = vsel %vm715, %v2123, %v2125
  %v2142 = vsel %vm715, %v2127, %v2129
  %v2143 = vsel %vm715, %v2129, %v2131
  %v2144 = vsel %vm715, %v2133, %v2135
  %v2145 = vsel %vm715, %v2135, %v2137
  %2154 = vst [vmem:[#allocation3 + $0xb0] sm:$0xf0] %v2138
  %2155 = vst [vmem:[#allocation3 + $0xb8] sm:$0xf0] %v2139
  %2156 = vst [vmem:[#allocation3 + $0xd0] sm:$0xff] %v2140
  %2157 = vst [vmem:[#allocation3 + $0xd8] sm:$0xff] %v2141
  %2158 = vst [vmem:[#allocation3 + $0xf0] sm:$0xff] %v2142
  %2159 = vst [vmem:[#allocation3 + $0xf8] sm:$0xff] %v2143
  %2160 = vst [vmem:[#allocation3 + $0x110] sm:$0x3] %v2144
  %2161 = vst [vmem:[#allocation3 + $0x118] sm:$0x3] %v2145
  %v2162 = vld [vmem:[#allocation2] sm:$0xff]
  %v2163 = vld [vmem:[#allocation2 + $0x8] sm:$0xf]
  %v2164 = vld [vmem:[#allocation2 + $0x10] sm:$0xff]
  %v2165 = vld [vmem:[#allocation2 + $0x18] sm:$0xf]
  %v2166 = vld [vmem:[#allocation2 + $0x20] sm:$0xff]
  %v2167 = vld [vmem:[#allocation2 + $0x28] sm:$0xf]
  %v2168 = vld [vmem:[#allocation2 + $0x30] sm:$0xff]
  %v2169 = vld [vmem:[#allocation2 + $0x38] sm:$0xf]
  %v2170 = vld [vmem:[#allocation2 + $0x40] sm:$0xff]
  %v2171 = vld [vmem:[#allocation2 + $0x48] sm:$0xf]
  %v2172 = vld [vmem:[#allocation2 + $0x50] sm:$0x33]
  %v2173 = vld [vmem:[#allocation2 + $0x58] sm:$0x3]
  %v2186 = vunpack.c.l.b16 %v2162
  %v2187 = vunpack.c.h.b16 %v2162
  %v2188 = vunpack.c.l.b16 %v2163
  %v2189 = vunpack.c.l.b16 %v2164
  %v2190 = vunpack.c.h.b16 %v2164
  %v2191 = vunpack.c.l.b16 %v2165
  %v2192 = vunpack.c.l.b16 %v2166
  %v2193 = vunpack.c.h.b16 %v2166
  %v2194 = vunpack.c.l.b16 %v2167
  %v2195 = vunpack.c.l.b16 %v2168
  %v2196 = vunpack.c.h.b16 %v2168
  %v2197 = vunpack.c.l.b16 %v2169
  %v2198 = vunpack.c.l.b16 %v2170
  %v2199 = vunpack.c.h.b16 %v2170
  %v2200 = vunpack.c.l.b16 %v2171
  %v2201 = vunpack.c.l.b16 %v2172
  %v2202 = vunpack.c.h.b16 %v2172
  %v2203 = vunpack.c.l.b16 %v2173
  %v2204 = vpack.c.b16 %v2189, %v2186
  %v2205 = vpack.c.b16 %v2190, %v2187
  %v2206 = vpack.c.b16 %v2191, %v2188
  %v2207 = vpack.c.b16 %v2195, %v2192
  %v2208 = vpack.c.b16 %v2196, %v2193
  %v2209 = vpack.c.b16 %v2197, %v2194
  %v2210 = vpack.c.b16 %v2201, %v2198
  %v2211 = vpack.c.b16 %v2202, %v2199
  %v2212 = vpack.c.b16 %v2203, %v2200
  %v2213 = vrot.slane %v2204, 6
  %v2214 = vrot.slane %v2205, 6
  %v2215 = vrot.slane %v2206, 6
  %v2216 = vrot.slane %v2207, 6
  %v2217 = vsel %vm35, %v2213, %v2216
  %v2218 = vrot.slane %v2208, 6
  %v2219 = vsel %vm35, %v2214, %v2218
  %v2220 = vrot.slane %v2209, 6
  %v2221 = vsel %vm35, %v2215, %v2220
  %v2222 = vrot.slane %v2210, 6
  %v2223 = vsel %vm35, %v2216, %v2222
  %v2224 = vrot.slane %v2211, 6
  %v2225 = vsel %vm35, %v2218, %v2224
  %v2226 = vrot.slane %v2212, 6
  %v2227 = vsel %vm35, %v2220, %v2226
  %2228 = vrot.lane.b32.xlu0 %v2213, 80
  %v2229 = vpop.permute.xlu0 %2228
  %2230 = vrot.lane.b32.xlu0 %v2214, 80
  %v2231 = vpop.permute.xlu0 %2230
  %2232 = vrot.lane.b32.xlu0 %v2215, 80
  %v2233 = vpop.permute.xlu0 %2232
  %2234 = vrot.lane.b32.xlu0 %v2217, 80
  %v2235 = vpop.permute.xlu0 %2234
  %2236 = vrot.lane.b32.xlu0 %v2219, 80
  %v2237 = vpop.permute.xlu0 %2236
  %2238 = vrot.lane.b32.xlu0 %v2221, 80
  %v2239 = vpop.permute.xlu0 %2238
  %2240 = vrot.lane.b32.xlu0 %v2223, 80
  %v2241 = vpop.permute.xlu0 %2240
  %2242 = vrot.lane.b32.xlu0 %v2225, 80
  %v2243 = vpop.permute.xlu0 %2242
  %2244 = vrot.lane.b32.xlu0 %v2227, 80
  %v2245 = vpop.permute.xlu0 %2244
  %v2246 = vsel %vm824, %v2229, %v2231
  %v2247 = vsel %vm824, %v2231, %v2233
  %v2248 = vsel %vm824, %v2235, %v2237
  %v2249 = vsel %vm824, %v2237, %v2239
  %v2250 = vsel %vm824, %v2241, %v2243
  %v2251 = vsel %vm824, %v2243, %v2245
  %2258 = vst [vmem:[#allocation3 + $0x110] sm:$0xfc] %v2246
  %2259 = vst [vmem:[#allocation3 + $0x118] sm:$0xfc] %v2247
  %2260 = vst [vmem:[#allocation3 + $0x130] sm:$0xff] %v2248
  %2261 = vst [vmem:[#allocation3 + $0x138] sm:$0xff] %v2249
  %2262 = vst [vmem:[#allocation3 + $0x150] sm:$0xff] %v2250
  %2263 = vst [vmem:[#allocation3 + $0x158] sm:$0xff] %v2251
  %v2264 = vld [vmem:[#allocation2] sm:$0xff]
  %v2265 = vld [vmem:[#allocation2 + $0x8] sm:$0xf]
  %v2266 = vld [vmem:[#allocation2 + $0x10] sm:$0xff]
  %v2267 = vld [vmem:[#allocation2 + $0x18] sm:$0xf]
  %v2268 = vld [vmem:[#allocation2 + $0x20] sm:$0xff]
  %v2269 = vld [vmem:[#allocation2 + $0x28] sm:$0xf]
  %v2270 = vld [vmem:[#allocation2 + $0x30] sm:$0xff]
  %v2271 = vld [vmem:[#allocation2 + $0x38] sm:$0xf]
  %v2272 = vld [vmem:[#allocation2 + $0x40] sm:$0xff]
  %v2273 = vld [vmem:[#allocation2 + $0x48] sm:$0xf]
  %v2274 = vld [vmem:[#allocation2 + $0x50] sm:$0x33]
  %v2275 = vld [vmem:[#allocation2 + $0x58] sm:$0x3]
  %v2288 = vunpack.c.l.b16 %v2264
  %v2289 = vunpack.c.h.b16 %v2264
  %v2290 = vunpack.c.l.b16 %v2265
  %v2291 = vunpack.c.l.b16 %v2266
  %v2292 = vunpack.c.h.b16 %v2266
  %v2293 = vunpack.c.l.b16 %v2267
  %v2294 = vunpack.c.l.b16 %v2268
  %v2295 = vunpack.c.h.b16 %v2268
  %v2296 = vunpack.c.l.b16 %v2269
  %v2297 = vunpack.c.l.b16 %v2270
  %v2298 = vunpack.c.h.b16 %v2270
  %v2299 = vunpack.c.l.b16 %v2271
  %v2300 = vunpack.c.l.b16 %v2272
  %v2301 = vunpack.c.h.b16 %v2272
  %v2302 = vunpack.c.l.b16 %v2273
  %v2303 = vunpack.c.l.b16 %v2274
  %v2304 = vunpack.c.h.b16 %v2274
  %v2305 = vunpack.c.l.b16 %v2275
  %v2306 = vpack.c.b16 %v2291, %v2288
  %v2307 = vpack.c.b16 %v2292, %v2289
  %v2308 = vpack.c.b16 %v2293, %v2290
  %v2309 = vpack.c.b16 %v2297, %v2294
  %v2310 = vpack.c.b16 %v2298, %v2295
  %v2311 = vpack.c.b16 %v2299, %v2296
  %v2312 = vpack.c.b16 %v2303, %v2300
  %v2313 = vpack.c.b16 %v2304, %v2301
  %v2314 = vpack.c.b16 %v2305, %v2302
  %2315 = vrot.lane.b32.xlu0 %v2306, 64
  %v2316 = vpop.permute.xlu0 %2315
  %2317 = vrot.lane.b32.xlu0 %v2307, 64
  %v2318 = vpop.permute.xlu0 %2317
  %2319 = vrot.lane.b32.xlu0 %v2308, 64
  %v2320 = vpop.permute.xlu0 %2319
  %2321 = vrot.lane.b32.xlu0 %v2309, 64
  %v2322 = vpop.permute.xlu0 %2321
  %2323 = vrot.lane.b32.xlu0 %v2310, 64
  %v2324 = vpop.permute.xlu0 %2323
  %2325 = vrot.lane.b32.xlu0 %v2311, 64
  %v2326 = vpop.permute.xlu0 %2325
  %2327 = vrot.lane.b32.xlu0 %v2312, 64
  %v2328 = vpop.permute.xlu0 %2327
  %2329 = vrot.lane.b32.xlu0 %v2313, 64
  %v2330 = vpop.permute.xlu0 %2329
  %2331 = vrot.lane.b32.xlu0 %v2314, 64
  %v2332 = vpop.permute.xlu0 %2331
  %v2333 = vsel %vm912, %v2316, %v2318
  %v2334 = vsel %vm912, %v2318, %v2320
  %v2335 = vsel %vm912, %v2322, %v2324
  %v2336 = vsel %vm912, %v2324, %v2326
  %v2337 = vsel %vm912, %v2328, %v2330
  %v2338 = vsel %vm912, %v2330, %v2332
  %2345 = vst [vmem:[#allocation3 + $0x170] sm:$0xff] %v2333
  %2346 = vst [vmem:[#allocation3 + $0x178] sm:$0xff] %v2334
  %2347 = vst [vmem:[#allocation3 + $0x190] sm:$0xff] %v2335
  %2348 = vst [vmem:[#allocation3 + $0x198] sm:$0xff] %v2336
  %2349 = vst [vmem:[#allocation3 + $0x1b0] sm:$0x3f] %v2337
  %2350 = vst [vmem:[#allocation3 + $0x1b8] sm:$0x3f] %v2338
  %v2351 = vld [vmem:[#allocation2] sm:$0xff]
  %v2352 = vld [vmem:[#allocation2 + $0x8] sm:$0xf]
  %v2353 = vld [vmem:[#allocation2 + $0x10] sm:$0xff]
  %v2354 = vld [vmem:[#allocation2 + $0x18] sm:$0xf]
  %v2355 = vld [vmem:[#allocation2 + $0x20] sm:$0xff]
  %v2356 = vld [vmem:[#allocation2 + $0x28] sm:$0xf]
  %v2357 = vld [vmem:[#allocation2 + $0x30] sm:$0xff]
  %v2358 = vld [vmem:[#allocation2 + $0x38] sm:$0xf]
  %v2359 = vld [vmem:[#allocation2 + $0x40] sm:$0xff]
  %v2360 = vld [vmem:[#allocation2 + $0x48] sm:$0xf]
  %v2361 = vld [vmem:[#allocation2 + $0x50] sm:$0x33]
  %v2362 = vld [vmem:[#allocation2 + $0x58] sm:$0x3]
  %v2375 = vunpack.c.l.b16 %v2351
  %v2376 = vunpack.c.h.b16 %v2351
  %v2377 = vunpack.c.l.b16 %v2352
  %v2378 = vunpack.c.l.b16 %v2353
  %v2379 = vunpack.c.h.b16 %v2353
  %v2380 = vunpack.c.l.b16 %v2354
  %v2381 = vunpack.c.l.b16 %v2355
  %v2382 = vunpack.c.h.b16 %v2355
  %v2383 = vunpack.c.l.b16 %v2356
  %v2384 = vunpack.c.l.b16 %v2357
  %v2385 = vunpack.c.h.b16 %v2357
  %v2386 = vunpack.c.l.b16 %v2358
  %v2387 = vunpack.c.l.b16 %v2359
  %v2388 = vunpack.c.h.b16 %v2359
  %v2389 = vunpack.c.l.b16 %v2360
  %v2390 = vunpack.c.l.b16 %v2361
  %v2391 = vunpack.c.h.b16 %v2361
  %v2392 = vunpack.c.l.b16 %v2362
  %v2393 = vpack.c.b16 %v2378, %v2375
  %v2394 = vpack.c.b16 %v2379, %v2376
  %v2395 = vpack.c.b16 %v2380, %v2377
  %v2396 = vpack.c.b16 %v2384, %v2381
  %v2397 = vpack.c.b16 %v2385, %v2382
  %v2398 = vpack.c.b16 %v2386, %v2383
  %v2399 = vpack.c.b16 %v2390, %v2387
  %v2400 = vpack.c.b16 %v2391, %v2388
  %v2401 = vpack.c.b16 %v2392, %v2389
  %v2402 = vrot.slane %v2393, 2
  %v2403 = vrot.slane %v2394, 2
  %v2404 = vrot.slane %v2395, 2
  %v2405 = vrot.slane %v2396, 2
  %v2406 = vsel %vm572, %v2402, %v2405
  %v2407 = vrot.slane %v2397, 2
  %v2408 = vsel %vm572, %v2403, %v2407
  %v2409 = vrot.slane %v2398, 2
  %v2410 = vsel %vm572, %v2404, %v2409
  %v2411 = vrot.slane %v2399, 2
  %v2412 = vsel %vm572, %v2405, %v2411
  %v2413 = vrot.slane %v2400, 2
  %v2414 = vsel %vm572, %v2407, %v2413
  %v2415 = vrot.slane %v2401, 2
  %v2416 = vsel %vm572, %v2409, %v2415
  %2417 = vrot.lane.b32.xlu0 %v2402, 48
  %v2418 = vpop.permute.xlu0 %2417
  %2419 = vrot.lane.b32.xlu0 %v2403, 48
  %v2420 = vpop.permute.xlu0 %2419
  %2421 = vrot.lane.b32.xlu0 %v2404, 48
  %v2422 = vpop.permute.xlu0 %2421
  %2423 = vrot.lane.b32.xlu0 %v2406, 48
  %v2424 = vpop.permute.xlu0 %2423
  %2425 = vrot.lane.b32.xlu0 %v2408, 48
  %v2426 = vpop.permute.xlu0 %2425
  %2427 = vrot.lane.b32.xlu0 %v2410, 48
  %v2428 = vpop.permute.xlu0 %2427
  %2429 = vrot.lane.b32.xlu0 %v2412, 48
  %v2430 = vpop.permute.xlu0 %2429
  %2431 = vrot.lane.b32.xlu0 %v2414, 48
  %v2432 = vpop.permute.xlu0 %2431
  %2433 = vrot.lane.b32.xlu0 %v2416, 48
  %v2434 = vpop.permute.xlu0 %2433
  %2435 = vrot.lane.b32.xlu0 %v2411, 48
  %v2436 = vpop.permute.xlu0 %2435
  %2437 = vrot.lane.b32.xlu0 %v2413, 48
  %v2438 = vpop.permute.xlu0 %2437
  %2439 = vrot.lane.b32.xlu0 %v2415, 48
  %v2440 = vpop.permute.xlu0 %2439
  %v2441 = vsel %vm1021, %v2418, %v2420
  %v2442 = vsel %vm1021, %v2420, %v2422
  %v2443 = vsel %vm1021, %v2424, %v2426
  %v2444 = vsel %vm1021, %v2426, %v2428
  %v2445 = vsel %vm1021, %v2430, %v2432
  %v2446 = vsel %vm1021, %v2432, %v2434
  %v2447 = vsel %vm1021, %v2436, %v2438
  %v2448 = vsel %vm1021, %v2438, %v2440
  %2457 = vst [vmem:[#allocation3 + $0x1b0] sm:$0xc0] %v2441
  %2458 = vst [vmem:[#allocation3 + $0x1b8] sm:$0xc0] %v2442
  %2459 = vst [vmem:[#allocation3 + $0x1d0] sm:$0xff] %v2443
  %2460 = vst [vmem:[#allocation3 + $0x1d8] sm:$0xff] %v2444
  %2461 = vst [vmem:[#allocation3 + $0x1f0] sm:$0xff] %v2445
  %2462 = vst [vmem:[#allocation3 + $0x1f8] sm:$0xff] %v2446
  %2463 = vst [vmem:[#allocation3 + $0x210] sm:$0xf] %v2447
  %2464 = vst [vmem:[#allocation3 + $0x218] sm:$0xf] %v2448
  %v2465 = vld [vmem:[#allocation2] sm:$0xff]
  %v2466 = vld [vmem:[#allocation2 + $0x8] sm:$0xf]
  %v2467 = vld [vmem:[#allocation2 + $0x10] sm:$0xff]
  %v2468 = vld [vmem:[#allocation2 + $0x18] sm:$0xf]
  %v2469 = vld [vmem:[#allocation2 + $0x20] sm:$0xff]
  %v2470 = vld [vmem:[#allocation2 + $0x28] sm:$0xf]
  %v2471 = vld [vmem:[#allocation2 + $0x30] sm:$0xff]
  %v2472 = vld [vmem:[#allocation2 + $0x38] sm:$0xf]
  %v2473 = vld [vmem:[#allocation2 + $0x40] sm:$0xff]
  %v2474 = vld [vmem:[#allocation2 + $0x48] sm:$0xf]
  %v2475 = vld [vmem:[#allocation2 + $0x50] sm:$0x33]
  %v2476 = vld [vmem:[#allocation2 + $0x58] sm:$0x3]
  %v2489 = vunpack.c.l.b16 %v2465
  %v2490 = vunpack.c.h.b16 %v2465
  %v2491 = vunpack.c.l.b16 %v2466
  %v2492 = vunpack.c.l.b16 %v2467
  %v2493 = vunpack.c.h.b16 %v2467
  %v2494 = vunpack.c.l.b16 %v2468
  %v2495 = vunpack.c.l.b16 %v2469
  %v2496 = vunpack.c.h.b16 %v2469
  %v2497 = vunpack.c.l.b16 %v2470
  %v2498 = vunpack.c.l.b16 %v2471
  %v2499 = vunpack.c.h.b16 %v2471
  %v2500 = vunpack.c.l.b16 %v2472
  %v2501 = vunpack.c.l.b16 %v2473
  %v2502 = vunpack.c.h.b16 %v2473
  %v2503 = vunpack.c.l.b16 %v2474
  %v2504 = vunpack.c.l.b16 %v2475
  %v2505 = vunpack.c.h.b16 %v2475
  %v2506 = vunpack.c.l.b16 %v2476
  %v2507 = vpack.c.b16 %v2489, %v2489
  %v2508 = vpack.c.b16 %v2490, %v2490
  %v2509 = vpack.c.b16 %v2491, %v2491
  %v2510 = vpack.c.b16 %v2495, %v2492
  %v2511 = vpack.c.b16 %v2496, %v2493
  %v2512 = vpack.c.b16 %v2497, %v2494
  %v2513 = vpack.c.b16 %v2501, %v2498
  %v2514 = vpack.c.b16 %v2502, %v2499
  %v2515 = vpack.c.b16 %v2503, %v2500
  %v2516 = vpack.c.b16 %v2504, %v2504
  %v2517 = vpack.c.b16 %v2505, %v2505
  %v2518 = vpack.c.b16 %v2506, %v2506
  %2519 = vrot.lane.b32.xlu0 %v2507, 32
  %v2520 = vpop.permute.xlu0 %2519
  %2521 = vrot.lane.b32.xlu0 %v2508, 32
  %v2522 = vpop.permute.xlu0 %2521
  %2523 = vrot.lane.b32.xlu0 %v2509, 32
  %v2524 = vpop.permute.xlu0 %2523
  %2525 = vrot.lane.b32.xlu0 %v2510, 32
  %v2526 = vpop.permute.xlu0 %2525
  %2527 = vrot.lane.b32.xlu0 %v2511, 32
  %v2528 = vpop.permute.xlu0 %2527
  %2529 = vrot.lane.b32.xlu0 %v2512, 32
  %v2530 = vpop.permute.xlu0 %2529
  %2531 = vrot.lane.b32.xlu0 %v2513, 32
  %v2532 = vpop.permute.xlu0 %2531
  %2533 = vrot.lane.b32.xlu0 %v2514, 32
  %v2534 = vpop.permute.xlu0 %2533
  %2535 = vrot.lane.b32.xlu0 %v2515, 32
  %v2536 = vpop.permute.xlu0 %2535
  %2537 = vrot.lane.b32.xlu0 %v2516, 32
  %v2538 = vpop.permute.xlu0 %2537
  %2539 = vrot.lane.b32.xlu0 %v2517, 32
  %v2540 = vpop.permute.xlu0 %2539
  %2541 = vrot.lane.b32.xlu0 %v2518, 32
  %v2542 = vpop.permute.xlu0 %2541
  %v2543 = vsel %vm1124, %v2520, %v2522
  %v2544 = vsel %vm1124, %v2522, %v2524
  %v2545 = vsel %vm1124, %v2526, %v2528
  %v2546 = vsel %vm1124, %v2528, %v2530
  %v2547 = vsel %vm1124, %v2532, %v2534
  %v2548 = vsel %vm1124, %v2534, %v2536
  %v2549 = vsel %vm1124, %v2538, %v2540
  %v2550 = vsel %vm1124, %v2540, %v2542
  %2559 = vst [vmem:[#allocation3 + $0x210] sm:$0xf0] %v2543
  %2560 = vst [vmem:[#allocation3 + $0x218] sm:$0xf0] %v2544
  %2561 = vst [vmem:[#allocation3 + $0x230] sm:$0xff] %v2545
  %2562 = vst [vmem:[#allocation3 + $0x238] sm:$0xff] %v2546
  %2563 = vst [vmem:[#allocation3 + $0x250] sm:$0xff] %v2547
  %2564 = vst [vmem:[#allocation3 + $0x258] sm:$0xff] %v2548
  %2565 = vst [vmem:[#allocation3 + $0x270] sm:$0x3] %v2549
  %2566 = vst [vmem:[#allocation3 + $0x278] sm:$0x3] %v2550
  %v2567 = vld [vmem:[#allocation2] sm:$0xff]
  %v2568 = vld [vmem:[#allocation2 + $0x8] sm:$0xf]
  %v2569 = vld [vmem:[#allocation2 + $0x10] sm:$0xff]
  %v2570 = vld [vmem:[#allocation2 + $0x18] sm:$0xf]
  %v2571 = vld [vmem:[#allocation2 + $0x20] sm:$0xff]
  %v2572 = vld [vmem:[#allocation2 + $0x28] sm:$0xf]
  %v2573 = vld [vmem:[#allocation2 + $0x30] sm:$0xff]
  %v2574 = vld [vmem:[#allocation2 + $0x38] sm:$0xf]
  %v2575 = vld [vmem:[#allocation2 + $0x40] sm:$0xff]
  %v2576 = vld [vmem:[#allocation2 + $0x48] sm:$0xf]
  %v2577 = vld [vmem:[#allocation2 + $0x50] sm:$0x33]
  %v2578 = vld [vmem:[#allocation2 + $0x58] sm:$0x3]
  %v2591 = vunpack.c.l.b16 %v2567
  %v2592 = vunpack.c.h.b16 %v2567
  %v2593 = vunpack.c.l.b16 %v2568
  %v2594 = vunpack.c.l.b16 %v2569
  %v2595 = vunpack.c.h.b16 %v2569
  %v2596 = vunpack.c.l.b16 %v2570
  %v2597 = vunpack.c.l.b16 %v2571
  %v2598 = vunpack.c.h.b16 %v2571
  %v2599 = vunpack.c.l.b16 %v2572
  %v2600 = vunpack.c.l.b16 %v2573
  %v2601 = vunpack.c.h.b16 %v2573
  %v2602 = vunpack.c.l.b16 %v2574
  %v2603 = vunpack.c.l.b16 %v2575
  %v2604 = vunpack.c.h.b16 %v2575
  %v2605 = vunpack.c.l.b16 %v2576
  %v2606 = vunpack.c.l.b16 %v2577
  %v2607 = vunpack.c.h.b16 %v2577
  %v2608 = vunpack.c.l.b16 %v2578
  %v2609 = vpack.c.b16 %v2594, %v2591
  %v2610 = vpack.c.b16 %v2595, %v2592
  %v2611 = vpack.c.b16 %v2596, %v2593
  %v2612 = vpack.c.b16 %v2600, %v2597
  %v2613 = vpack.c.b16 %v2601, %v2598
  %v2614 = vpack.c.b16 %v2602, %v2599
  %v2615 = vpack.c.b16 %v2606, %v2603
  %v2616 = vpack.c.b16 %v2607, %v2604
  %v2617 = vpack.c.b16 %v2608, %v2605
  %v2618 = vrot.slane %v2609, 6
  %v2619 = vrot.slane %v2610, 6
  %v2620 = vrot.slane %v2611, 6
  %v2621 = vrot.slane %v2612, 6
  %v2622 = vsel %vm35, %v2618, %v2621
  %v2623 = vrot.slane %v2613, 6
  %v2624 = vsel %vm35, %v2619, %v2623
  %v2625 = vrot.slane %v2614, 6
  %v2626 = vsel %vm35, %v2620, %v2625
  %v2627 = vrot.slane %v2615, 6
  %v2628 = vsel %vm35, %v2621, %v2627
  %v2629 = vrot.slane %v2616, 6
  %v2630 = vsel %vm35, %v2623, %v2629
  %v2631 = vrot.slane %v2617, 6
  %v2632 = vsel %vm35, %v2625, %v2631
  %2633 = vrot.lane.b32.xlu0 %v2618, 16
  %v2634 = vpop.permute.xlu0 %2633
  %2635 = vrot.lane.b32.xlu0 %v2619, 16
  %v2636 = vpop.permute.xlu0 %2635
  %2637 = vrot.lane.b32.xlu0 %v2620, 16
  %v2638 = vpop.permute.xlu0 %2637
  %2639 = vrot.lane.b32.xlu0 %v2622, 16
  %v2640 = vpop.permute.xlu0 %2639
  %2641 = vrot.lane.b32.xlu0 %v2624, 16
  %v2642 = vpop.permute.xlu0 %2641
  %2643 = vrot.lane.b32.xlu0 %v2626, 16
  %v2644 = vpop.permute.xlu0 %2643
  %2645 = vrot.lane.b32.xlu0 %v2628, 16
  %v2646 = vpop.permute.xlu0 %2645
  %2647 = vrot.lane.b32.xlu0 %v2630, 16
  %v2648 = vpop.permute.xlu0 %2647
  %2649 = vrot.lane.b32.xlu0 %v2632, 16
  %v2650 = vpop.permute.xlu0 %2649
  %v2651 = vsel %vm1233, %v2634, %v2636
  %v2652 = vsel %vm1233, %v2636, %v2638
  %v2653 = vsel %vm1233, %v2640, %v2642
  %v2654 = vsel %vm1233, %v2642, %v2644
  %v2655 = vsel %vm1233, %v2646, %v2648
  %v2656 = vsel %vm1233, %v2648, %v2650
  %2663 = vst [vmem:[#allocation3 + $0x270] sm:$0xfc] %v2651
  %2664 = vst [vmem:[#allocation3 + $0x278] sm:$0xfc] %v2652
  %2665 = vst [vmem:[#allocation3 + $0x290] sm:$0xff] %v2653
  %2666 = vst [vmem:[#allocation3 + $0x298] sm:$0xff] %v2654
  %2667 = vst [vmem:[#allocation3 + $0x2b0] sm:$0xff] %v2655
  %2668 = vst [vmem:[#allocation3 + $0x2b8] sm:$0xff] %v2656
  %v2669 = vld [vmem:[#allocation2 + $0x4] sm:$0xff]
  %v2670 = vld [vmem:[#allocation2 + $0x14] sm:$0xff]
  %v2671 = vld [vmem:[#allocation2 + $0x24] sm:$0xff]
  %v2672 = vld [vmem:[#allocation2 + $0x34] sm:$0xff]
  %v2673 = vld [vmem:[#allocation2 + $0x44] sm:$0xff]
  %v2674 = vld [vmem:[#allocation2 + $0x54] sm:$0x33]
  %v2681 = vunpack.c.l.b16 %v2669
  %v2682 = vunpack.c.h.b16 %v2669
  %v2683 = vunpack.c.l.b16 %v2670
  %v2684 = vunpack.c.h.b16 %v2670
  %v2685 = vunpack.c.l.b16 %v2671
  %v2686 = vunpack.c.h.b16 %v2671
  %v2687 = vunpack.c.l.b16 %v2672
  %v2688 = vunpack.c.h.b16 %v2672
  %v2689 = vunpack.c.l.b16 %v2673
  %v2690 = vunpack.c.h.b16 %v2673
  %v2691 = vunpack.c.l.b16 %v2674
  %v2692 = vunpack.c.h.b16 %v2674
  %v2693 = vpack.c.b16 %v2683, %v2681
  %v2694 = vpack.c.b16 %v2684, %v2682
  %v2695 = vpack.c.b16 %v2687, %v2685
  %v2696 = vpack.c.b16 %v2688, %v2686
  %v2697 = vpack.c.b16 %v2691, %v2689
  %v2698 = vpack.c.b16 %v2692, %v2690
  %2705 = vst [vmem:[#allocation3 + $0x2d0] sm:$0xff] %v2693
  %2706 = vst [vmem:[#allocation3 + $0x2d8] sm:$0xff] %v2694
  %2707 = vst [vmem:[#allocation3 + $0x2f0] sm:$0xff] %v2695
  %2708 = vst [vmem:[#allocation3 + $0x2f8] sm:$0xff] %v2696
  %2709 = vst [vmem:[#allocation3 + $0x310] sm:$0x3f] %v2697
  %2710 = vst [vmem:[#allocation3 + $0x318] sm:$0x3f] %v2698
  %v2711 = vld [vmem:[#allocation2 + $0x4] sm:$0xff]
  %v2712 = vld [vmem:[#allocation2 + $0xc] sm:$0xf]
  %v2713 = vld [vmem:[#allocation2 + $0x14] sm:$0xff]
  %v2714 = vld [vmem:[#allocation2 + $0x1c] sm:$0xf]
  %v2715 = vld [vmem:[#allocation2 + $0x24] sm:$0xff]
  %v2716 = vld [vmem:[#allocation2 + $0x2c] sm:$0xf]
  %v2717 = vld [vmem:[#allocation2 + $0x34] sm:$0xff]
  %v2718 = vld [vmem:[#allocation2 + $0x3c] sm:$0xf]
  %v2719 = vld [vmem:[#allocation2 + $0x44] sm:$0xff]
  %v2720 = vld [vmem:[#allocation2 + $0x4c] sm:$0xf]
  %v2721 = vld [vmem:[#allocation2 + $0x54] sm:$0x33]
  %v2722 = vld [vmem:[#allocation2 + $0x5c] sm:$0x3]
  %v2735 = vunpack.c.l.b16 %v2711
  %v2736 = vunpack.c.h.b16 %v2711
  %v2737 = vunpack.c.l.b16 %v2712
  %v2738 = vunpack.c.l.b16 %v2713
  %v2739 = vunpack.c.h.b16 %v2713
  %v2740 = vunpack.c.l.b16 %v2714
  %v2741 = vunpack.c.l.b16 %v2715
  %v2742 = vunpack.c.h.b16 %v2715
  %v2743 = vunpack.c.l.b16 %v2716
  %v2744 = vunpack.c.l.b16 %v2717
  %v2745 = vunpack.c.h.b16 %v2717
  %v2746 = vunpack.c.l.b16 %v2718
  %v2747 = vunpack.c.l.b16 %v2719
  %v2748 = vunpack.c.h.b16 %v2719
  %v2749 = vunpack.c.l.b16 %v2720
  %v2750 = vunpack.c.l.b16 %v2721
  %v2751 = vunpack.c.h.b16 %v2721
  %v2752 = vunpack.c.l.b16 %v2722
  %v2753 = vpack.c.b16 %v2738, %v2735
  %v2754 = vpack.c.b16 %v2739, %v2736
  %v2755 = vpack.c.b16 %v2740, %v2737
  %v2756 = vpack.c.b16 %v2744, %v2741
  %v2757 = vpack.c.b16 %v2745, %v2742
  %v2758 = vpack.c.b16 %v2746, %v2743
  %v2759 = vpack.c.b16 %v2750, %v2747
  %v2760 = vpack.c.b16 %v2751, %v2748
  %v2761 = vpack.c.b16 %v2752, %v2749
  %v2762 = vrot.slane %v2753, 2
  %v2763 = vrot.slane %v2754, 2
  %v2764 = vrot.slane %v2755, 2
  %v2765 = vrot.slane %v2756, 2
  %v2766 = vsel %vm572, %v2762, %v2765
  %v2767 = vrot.slane %v2757, 2
  %v2768 = vsel %vm572, %v2763, %v2767
  %v2769 = vrot.slane %v2758, 2
  %v2770 = vsel %vm572, %v2764, %v2769
  %v2771 = vrot.slane %v2759, 2
  %v2772 = vsel %vm572, %v2765, %v2771
  %v2773 = vrot.slane %v2760, 2
  %v2774 = vsel %vm572, %v2767, %v2773
  %v2775 = vrot.slane %v2761, 2
  %v2776 = vsel %vm572, %v2769, %v2775
  %2777 = vrot.lane.b32.xlu0 %v2762, 112
  %v2778 = vpop.permute.xlu0 %2777
  %2779 = vrot.lane.b32.xlu0 %v2763, 112
  %v2780 = vpop.permute.xlu0 %2779
  %2781 = vrot.lane.b32.xlu0 %v2764, 112
  %v2782 = vpop.permute.xlu0 %2781
  %2783 = vrot.lane.b32.xlu0 %v2766, 112
  %v2784 = vpop.permute.xlu0 %2783
  %2785 = vrot.lane.b32.xlu0 %v2768, 112
  %v2786 = vpop.permute.xlu0 %2785
  %2787 = vrot.lane.b32.xlu0 %v2770, 112
  %v2788 = vpop.permute.xlu0 %2787
  %2789 = vrot.lane.b32.xlu0 %v2772, 112
  %v2790 = vpop.permute.xlu0 %2789
  %2791 = vrot.lane.b32.xlu0 %v2774, 112
  %v2792 = vpop.permute.xlu0 %2791
  %2793 = vrot.lane.b32.xlu0 %v2776, 112
  %v2794 = vpop.permute.xlu0 %2793
  %2795 = vrot.lane.b32.xlu0 %v2771, 112
  %v2796 = vpop.permute.xlu0 %2795
  %2797 = vrot.lane.b32.xlu0 %v2773, 112
  %v2798 = vpop.permute.xlu0 %2797
  %2799 = vrot.lane.b32.xlu0 %v2775, 112
  %v2800 = vpop.permute.xlu0 %2799
  %v2801 = vsel %vm612, %v2778, %v2780
  %v2802 = vsel %vm612, %v2780, %v2782
  %v2803 = vsel %vm612, %v2784, %v2786
  %v2804 = vsel %vm612, %v2786, %v2788
  %v2805 = vsel %vm612, %v2790, %v2792
  %v2806 = vsel %vm612, %v2792, %v2794
  %v2807 = vsel %vm612, %v2796, %v2798
  %v2808 = vsel %vm612, %v2798, %v2800
  %2817 = vst [vmem:[#allocation3 + $0x310] sm:$0xc0] %v2801
  %2818 = vst [vmem:[#allocation3 + $0x318] sm:$0xc0] %v2802
  %2819 = vst [vmem:[#allocation3 + $0x330] sm:$0xff] %v2803
  %2820 = vst [vmem:[#allocation3 + $0x338] sm:$0xff] %v2804
  %2821 = vst [vmem:[#allocation3 + $0x350] sm:$0xff] %v2805
  %2822 = vst [vmem:[#allocation3 + $0x358] sm:$0xff] %v2806
  %2823 = vst [vmem:[#allocation3 + $0x370] sm:$0xf] %v2807
  %2824 = vst [vmem:[#allocation3 + $0x378] sm:$0xf] %v2808
  %v2825 = vld [vmem:[#allocation2 + $0x4] sm:$0xff]
  %v2826 = vld [vmem:[#allocation2 + $0xc] sm:$0xf]
  %v2827 = vld [vmem:[#allocation2 + $0x14] sm:$0xff]
  %v2828 = vld [vmem:[#allocation2 + $0x1c] sm:$0xf]
  %v2829 = vld [vmem:[#allocation2 + $0x24] sm:$0xff]
  %v2830 = vld [vmem:[#allocation2 + $0x2c] sm:$0xf]
  %v2831 = vld [vmem:[#allocation2 + $0x34] sm:$0xff]
  %v2832 = vld [vmem:[#allocation2 + $0x3c] sm:$0xf]
  %v2833 = vld [vmem:[#allocation2 + $0x44] sm:$0xff]
  %v2834 = vld [vmem:[#allocation2 + $0x4c] sm:$0xf]
  %v2835 = vld [vmem:[#allocation2 + $0x54] sm:$0x33]
  %v2836 = vld [vmem:[#allocation2 + $0x5c] sm:$0x3]
  %v2849 = vunpack.c.l.b16 %v2825
  %v2850 = vunpack.c.h.b16 %v2825
  %v2851 = vunpack.c.l.b16 %v2826
  %v2852 = vunpack.c.l.b16 %v2827
  %v2853 = vunpack.c.h.b16 %v2827
  %v2854 = vunpack.c.l.b16 %v2828
  %v2855 = vunpack.c.l.b16 %v2829
  %v2856 = vunpack.c.h.b16 %v2829
  %v2857 = vunpack.c.l.b16 %v2830
  %v2858 = vunpack.c.l.b16 %v2831
  %v2859 = vunpack.c.h.b16 %v2831
  %v2860 = vunpack.c.l.b16 %v2832
  %v2861 = vunpack.c.l.b16 %v2833
  %v2862 = vunpack.c.h.b16 %v2833
  %v2863 = vunpack.c.l.b16 %v2834
  %v2864 = vunpack.c.l.b16 %v2835
  %v2865 = vunpack.c.h.b16 %v2835
  %v2866 = vunpack.c.l.b16 %v2836
  %v2867 = vpack.c.b16 %v2849, %v2849
  %v2868 = vpack.c.b16 %v2850, %v2850
  %v2869 = vpack.c.b16 %v2851, %v2851
  %v2870 = vpack.c.b16 %v2855, %v2852
  %v2871 = vpack.c.b16 %v2856, %v2853
  %v2872 = vpack.c.b16 %v2857, %v2854
  %v2873 = vpack.c.b16 %v2861, %v2858
  %v2874 = vpack.c.b16 %v2862, %v2859
  %v2875 = vpack.c.b16 %v2863, %v2860
  %v2876 = vpack.c.b16 %v2864, %v2864
  %v2877 = vpack.c.b16 %v2865, %v2865
  %v2878 = vpack.c.b16 %v2866, %v2866
  %2879 = vrot.lane.b32.xlu0 %v2867, 96
  %v2880 = vpop.permute.xlu0 %2879
  %2881 = vrot.lane.b32.xlu0 %v2868, 96
  %v2882 = vpop.permute.xlu0 %2881
  %2883 = vrot.lane.b32.xlu0 %v2869, 96
  %v2884 = vpop.permute.xlu0 %2883
  %2885 = vrot.lane.b32.xlu0 %v2870, 96
  %v2886 = vpop.permute.xlu0 %2885
  %2887 = vrot.lane.b32.xlu0 %v2871, 96
  %v2888 = vpop.permute.xlu0 %2887
  %2889 = vrot.lane.b32.xlu0 %v2872, 96
  %v2890 = vpop.permute.xlu0 %2889
  %2891 = vrot.lane.b32.xlu0 %v2873, 96
  %v2892 = vpop.permute.xlu0 %2891
  %2893 = vrot.lane.b32.xlu0 %v2874, 96
  %v2894 = vpop.permute.xlu0 %2893
  %2895 = vrot.lane.b32.xlu0 %v2875, 96
  %v2896 = vpop.permute.xlu0 %2895
  %2897 = vrot.lane.b32.xlu0 %v2876, 96
  %v2898 = vpop.permute.xlu0 %2897
  %2899 = vrot.lane.b32.xlu0 %v2877, 96
  %v2900 = vpop.permute.xlu0 %2899
  %2901 = vrot.lane.b32.xlu0 %v2878, 96
  %v2902 = vpop.permute.xlu0 %2901
  %v2903 = vsel %vm715, %v2880, %v2882
  %v2904 = vsel %vm715, %v2882, %v2884
  %v2905 = vsel %vm715, %v2886, %v2888
  %v2906 = vsel %vm715, %v2888, %v2890
  %v2907 = vsel %vm715, %v2892, %v2894
  %v2908 = vsel %vm715, %v2894, %v2896
  %v2909 = vsel %vm715, %v2898, %v2900
  %v2910 = vsel %vm715, %v2900, %v2902
  %2919 = vst [vmem:[#allocation3 + $0x370] sm:$0xf0] %v2903
  %2920 = vst [vmem:[#allocation3 + $0x378] sm:$0xf0] %v2904
  %2921 = vst [vmem:[#allocation3 + $0x390] sm:$0xff] %v2905
  %2922 = vst [vmem:[#allocation3 + $0x398] sm:$0xff] %v2906
  %2923 = vst [vmem:[#allocation3 + $0x3b0] sm:$0xff] %v2907
  %2924 = vst [vmem:[#allocation3 + $0x3b8] sm:$0xff] %v2908
  %2925 = vst [vmem:[#allocation3 + $0x3d0] sm:$0x3] %v2909
  %2926 = vst [vmem:[#allocation3 + $0x3d8] sm:$0x3] %v2910
  %v2927 = vld [vmem:[%s2] sm:$0xff]
  %v2928 = vld [vmem:[%s2 + $0x8] sm:$0xff]
  %v2929 = vld [vmem:[#allocation3] sm:$0xff]
  %v2930 = vld [vmem:[#allocation3 + $0x8] sm:$0xff]
  %v2931 = vld [vmem:[#allocation3 + $0x10] sm:$0xff]
  %v2932 = vld [vmem:[#allocation3 + $0x18] sm:$0xff]
  %v2933 = vld [vmem:[#allocation3 + $0x20] sm:$0xff]
  %v2934 = vld [vmem:[#allocation3 + $0x28] sm:$0xff]
  %v2935 = vld [vmem:[#allocation3 + $0x30] sm:$0xff]
  %v2936 = vld [vmem:[#allocation3 + $0x38] sm:$0xff]
  %v2937 = vld [vmem:[#allocation3 + $0x40] sm:$0xff]
  %v2938 = vld [vmem:[#allocation3 + $0x48] sm:$0xff]
  %v2939 = vld [vmem:[#allocation3 + $0x50] sm:$0xff]
  %v2940 = vld [vmem:[#allocation3 + $0x58] sm:$0xff]
  %v2941 = vld [vmem:[#allocation3 + $0x60] sm:$0xff]
  %v2942 = vld [vmem:[#allocation3 + $0x68] sm:$0xff]
  %v2943 = vld [vmem:[#allocation3 + $0x70] sm:$0xff]
  %v2944 = vld [vmem:[#allocation3 + $0x78] sm:$0xff]
  %v2945 = vld [vmem:[#allocation3 + $0x80] sm:$0xff]
  %v2946 = vld [vmem:[#allocation3 + $0x88] sm:$0xff]
  %v2947 = vld [vmem:[#allocation3 + $0x90] sm:$0xff]
  %v2948 = vld [vmem:[#allocation3 + $0x98] sm:$0xff]
  %v2949 = vld [vmem:[#allocation3 + $0xa0] sm:$0xff]
  %v2950 = vld [vmem:[#allocation3 + $0xa8] sm:$0xff]
  %v2951 = vld [vmem:[#allocation3 + $0xb0] sm:$0xff]
  %v2952 = vld [vmem:[#allocation3 + $0xb8] sm:$0xff]
  %v2953 = vld [vmem:[#allocation3 + $0xc0] sm:$0xff]
  %v2954 = vld [vmem:[#allocation3 + $0xc8] sm:$0xff]
  %v2955 = vld [vmem:[#allocation3 + $0xd0] sm:$0xff]
  %v2956 = vld [vmem:[#allocation3 + $0xd8] sm:$0xff]
  %v2957 = vld [vmem:[#allocation3 + $0xe0] sm:$0xff]
  %v2958 = vld [vmem:[#allocation3 + $0xe8] sm:$0xff]
  %v2959 = vld [vmem:[#allocation3 + $0xf0] sm:$0xff]
  %v2960 = vld [vmem:[#allocation3 + $0xf8] sm:$0xff]
  %v2961 = vld [vmem:[#allocation3 + $0x100] sm:$0xff]
  %v2962 = vld [vmem:[#allocation3 + $0x108] sm:$0xff]
  %v2963 = vld [vmem:[#allocation3 + $0x110] sm:$0xff]
  %v2964 = vld [vmem:[#allocation3 + $0x118] sm:$0xff]
  %v2965 = vld [vmem:[#allocation3 + $0x120] sm:$0xff]
  %v2966 = vld [vmem:[#allocation3 + $0x128] sm:$0xff]
  %v2967 = vld [vmem:[#allocation3 + $0x130] sm:$0xff]
  %v2968 = vld [vmem:[#allocation3 + $0x138] sm:$0xff]
  %v2969 = vld [vmem:[#allocation3 + $0x140] sm:$0xff]
  %v2970 = vld [vmem:[#allocation3 + $0x148] sm:$0xff]
  %v2971 = vld [vmem:[#allocation3 + $0x150] sm:$0xff]
  %v2972 = vld [vmem:[#allocation3 + $0x158] sm:$0xff]
  %v2973 = vld [vmem:[#allocation3 + $0x160] sm:$0xff]
  %v2974 = vld [vmem:[#allocation3 + $0x168] sm:$0xff]
  %v2975 = vld [vmem:[#allocation3 + $0x170] sm:$0xff]
  %v2976 = vld [vmem:[#allocation3 + $0x178] sm:$0xff]
  %v2977 = vld [vmem:[#allocation3 + $0x180] sm:$0xff]
  %v2978 = vld [vmem:[#allocation3 + $0x188] sm:$0xff]
  %v2979 = vld [vmem:[#allocation3 + $0x190] sm:$0xff]
  %v2980 = vld [vmem:[#allocation3 + $0x198] sm:$0xff]
  %v2981 = vld [vmem:[#allocation3 + $0x1a0] sm:$0xff]
  %v2982 = vld [vmem:[#allocation3 + $0x1a8] sm:$0xff]
  %v2983 = vld [vmem:[#allocation3 + $0x1b0] sm:$0xff]
  %v2984 = vld [vmem:[#allocation3 + $0x1b8] sm:$0xff]
  %v2985 = vld [vmem:[#allocation3 + $0x1c0] sm:$0xff]
  %v2986 = vld [vmem:[#allocation3 + $0x1c8] sm:$0xff]
  %v2987 = vld [vmem:[#allocation3 + $0x1d0] sm:$0xff]
  %v2988 = vld [vmem:[#allocation3 + $0x1d8] sm:$0xff]
  %v2989 = vld [vmem:[#allocation3 + $0x1e0] sm:$0xff]
  %v2990 = vld [vmem:[#allocation3 + $0x1e8] sm:$0xff]
  %v2991 = vld [vmem:[#allocation3 + $0x1f0] sm:$0xff]
  %v2992 = vld [vmem:[#allocation3 + $0x1f8] sm:$0xff]
  %v2993 = vld [vmem:[#allocation3 + $0x200] sm:$0xff]
  %v2994 = vld [vmem:[#allocation3 + $0x208] sm:$0xff]
  %v2995 = vld [vmem:[#allocation3 + $0x210] sm:$0xff]
  %v2996 = vld [vmem:[#allocation3 + $0x218] sm:$0xff]
  %v2997 = vld [vmem:[#allocation3 + $0x220] sm:$0xff]
  %v2998 = vld [vmem:[#allocation3 + $0x228] sm:$0xff]
  %v2999 = vld [vmem:[#allocation3 + $0x230] sm:$0xff]
  %v3000 = vld [vmem:[#allocation3 + $0x238] sm:$0xff]
  %v3001 = vld [vmem:[#allocation3 + $0x240] sm:$0xff]
  %v3002 = vld [vmem:[#allocation3 + $0x248] sm:$0xff]
  %v3003 = vld [vmem:[#allocation3 + $0x250] sm:$0xff]
  %v3004 = vld [vmem:[#allocation3 + $0x258] sm:$0xff]
  %v3005 = vld [vmem:[#allocation3 + $0x260] sm:$0xff]
  %v3006 = vld [vmem:[#allocation3 + $0x268] sm:$0xff]
  %v3007 = vld [vmem:[#allocation3 + $0x270] sm:$0xff]
  %v3008 = vld [vmem:[#allocation3 + $0x278] sm:$0xff]
  %v3009 = vld [vmem:[#allocation3 + $0x280] sm:$0xff]
  %v3010 = vld [vmem:[#allocation3 + $0x288] sm:$0xff]
  %v3011 = vld [vmem:[#allocation3 + $0x290] sm:$0xff]
  %v3012 = vld [vmem:[#allocation3 + $0x298] sm:$0xff]
  %v3013 = vld [vmem:[#allocation3 + $0x2a0] sm:$0xff]
  %v3014 = vld [vmem:[#allocation3 + $0x2a8] sm:$0xff]
  %v3015 = vld [vmem:[#allocation3 + $0x2b0] sm:$0xff]
  %v3016 = vld [vmem:[#allocation3 + $0x2b8] sm:$0xff]
  %v3017 = vld [vmem:[#allocation3 + $0x2c0] sm:$0xff]
  %v3018 = vld [vmem:[#allocation3 + $0x2c8] sm:$0xff]
  %v3019 = vld [vmem:[#allocation3 + $0x2d0] sm:$0xff]
  %v3020 = vld [vmem:[#allocation3 + $0x2d8] sm:$0xff]
  %v3021 = vld [vmem:[#allocation3 + $0x2e0] sm:$0xff]
  %v3022 = vld [vmem:[#allocation3 + $0x2e8] sm:$0xff]
  %v3023 = vld [vmem:[#allocation3 + $0x2f0] sm:$0xff]
  %v3024 = vld [vmem:[#allocation3 + $0x2f8] sm:$0xff]
  %v3025 = vld [vmem:[#allocation3 + $0x300] sm:$0xff]
  %v3026 = vld [vmem:[#allocation3 + $0x308] sm:$0xff]
  %v3027 = vld [vmem:[#allocation3 + $0x310] sm:$0xff]
  %v3028 = vld [vmem:[#allocation3 + $0x318] sm:$0xff]
  %v3029 = vld [vmem:[#allocation3 + $0x320] sm:$0xff]
  %v3030 = vld [vmem:[#allocation3 + $0x328] sm:$0xff]
  %v3031 = vld [vmem:[#allocation3 + $0x330] sm:$0xff]
  %v3032 = vld [vmem:[#allocation3 + $0x338] sm:$0xff]
  %v3033 = vld [vmem:[#allocation3 + $0x340] sm:$0xff]
  %v3034 = vld [vmem:[#allocation3 + $0x348] sm:$0xff]
  %v3035 = vld [vmem:[#allocation3 + $0x350] sm:$0xff]
  %v3036 = vld [vmem:[#allocation3 + $0x358] sm:$0xff]
  %v3037 = vld [vmem:[#allocation3 + $0x360] sm:$0xff]
  %v3038 = vld [vmem:[#allocation3 + $0x368] sm:$0xff]
  %v3039 = vld [vmem:[#allocation3 + $0x370] sm:$0xff]
  %v3040 = vld [vmem:[#allocation3 + $0x378] sm:$0xff]
  %v3041 = vld [vmem:[#allocation3 + $0x380] sm:$0xff]
  %v3042 = vld [vmem:[#allocation3 + $0x388] sm:$0xff]
  %v3043 = vld [vmem:[#allocation3 + $0x390] sm:$0xff]
  %v3044 = vld [vmem:[#allocation3 + $0x398] sm:$0xff]
  %v3045 = vld [vmem:[#allocation3 + $0x3a0] sm:$0xff]
  %v3046 = vld [vmem:[#allocation3 + $0x3a8] sm:$0xff]
  %v3047 = vld [vmem:[#allocation3 + $0x3b0] sm:$0xff]
  %v3048 = vld [vmem:[#allocation3 + $0x3b8] sm:$0xff]
  %v3049 = vld [vmem:[#allocation3 + $0x3c0] sm:$0xff]
  %v3050 = vld [vmem:[#allocation3 + $0x3c8] sm:$0xff]
  %v3051 = vld [vmem:[#allocation3 + $0x3d0] sm:$0xff]
  %v3052 = vld [vmem:[#allocation3 + $0x3d8] sm:$0xff]
  %v3053 = vld [vmem:[#allocation3 + $0x3e0] sm:$0xff]
  %v3054 = vld [vmem:[#allocation3 + $0x3e8] sm:$0xff]
  %v3055 = vld [vmem:[#allocation3 + $0x3f0] sm:$0xff]
  %v3056 = vld [vmem:[#allocation3 + $0x3f8] sm:$0xff]
  %v3059 = vunpack.c.l.b16 %v2927
  %v3060 = vunpack.c.h.b16 %v2927
  %v3061 = vunpack.c.l.b16 %v2928
  %v3062 = vunpack.c.h.b16 %v2928
  %v3063 = vpack.c.b16 %v3059, %v3059
  %v3064 = vpack.c.b16 %v3060, %v3060
  %v3065 = vpack.c.b16 %v3061, %v3061
  %v3066 = vpack.c.b16 %v3062, %v3062
  %3071 = vmatprep.subr.bf16.mxu0 %v2930
  %3072 = vmatpush1.bf16.msra.mxu0 %v2929
  %3073 = vmatprep.subr.bf16.mxu0 %v2934
  %3074 = vmatpush1.bf16.msra.mxu0 %v2933
  %3075 = vmatprep.subr.bf16.mxu0 %v2938
  %3076 = vmatpush1.bf16.msra.mxu0 %v2937
  %3077 = vmatprep.subr.bf16.mxu0 %v2942
  %3078 = vmatpush1.bf16.msra.mxu0 %v2941
  %3079 = vmatprep.subr.bf16.mxu0 %v2946
  %3080 = vmatpush1.bf16.msra.mxu0 %v2945
  %3081 = vmatprep.subr.bf16.mxu0 %v2950
  %3082 = vmatpush1.bf16.msra.mxu0 %v2949
  %3083 = vmatprep.subr.bf16.mxu0 %v2954
  %3084 = vmatpush1.bf16.msra.mxu0 %v2953
  %3085 = vmatprep.subr.bf16.mxu0 %v2958
  %3086 = vmatpush1.bf16.msra.mxu0 %v2957
  %3087 = vmatprep.subr.bf16.mxu0 %v2962
  %3088 = vmatpush1.bf16.msra.mxu0 %v2961
  %3089 = vmatprep.subr.bf16.mxu0 %v2966
  %3090 = vmatpush1.bf16.msra.mxu0 %v2965
  %3091 = vmatprep.subr.bf16.mxu0 %v2970
  %3092 = vmatpush1.bf16.msra.mxu0 %v2969
  %3093 = vmatprep.subr.bf16.mxu0 %v2974
  %3094 = vmatpush1.bf16.msra.mxu0 %v2973
  %3095 = vmatprep.subr.bf16.mxu0 %v2978
  %3096 = vmatpush1.bf16.msra.mxu0 %v2977
  %3097 = vmatprep.subr.bf16.mxu0 %v2982
  %3098 = vmatpush1.bf16.msra.mxu0 %v2981
  %3099 = vmatprep.subr.bf16.mxu0 %v2986
  %3100 = vmatpush1.bf16.msra.mxu0 %v2985
  %3101 = vmatprep.subr.bf16.mxu0 %v2990
  %3102 = vmatpush1.bf16.msra.mxu0 %v2989
  %3103 = vmatprep.mubr.bf16.mxu0 %v3064
  %3104 = vmatmul.mubr.bf16.gmra.mrb[0].mxu0 %v3063
  %v3105 = vpop.f32.mrb[0].mxu0
  %v3106 = vadd.f32 0.0, %v3105
  %v3107 = vpop.f32.mrb[0].mxu0
  %v3108 = vadd.f32 0.0, %v3107
  %v3109 = vpop.f32.mrb[0].mxu0
  %v3110 = vpop.f32.mrb[0].mxu0
  %3111 = vdwg.mxu0
  %3112 = vmatprep.subr.bf16.mxu0 %v2994
  %3113 = vmatpush1.bf16.msra.mxu0 %v2993
  %3114 = vmatprep.subr.bf16.mxu0 %v2998
  %3115 = vmatpush1.bf16.msra.mxu0 %v2997
  %3116 = vmatprep.subr.bf16.mxu0 %v3002
  %3117 = vmatpush1.bf16.msra.mxu0 %v3001
  %3118 = vmatprep.subr.bf16.mxu0 %v3006
  %3119 = vmatpush1.bf16.msra.mxu0 %v3005
  %3120 = vmatprep.subr.bf16.mxu0 %v3010
  %3121 = vmatpush1.bf16.msra.mxu0 %v3009
  %3122 = vmatprep.subr.bf16.mxu0 %v3014
  %3123 = vmatpush1.bf16.msra.mxu0 %v3013
  %3124 = vmatprep.subr.bf16.mxu0 %v3018
  %3125 = vmatpush1.bf16.msra.mxu0 %v3017
  %3126 = vmatprep.subr.bf16.mxu0 %v3022
  %3127 = vmatpush1.bf16.msra.mxu0 %v3021
  %3128 = vmatprep.subr.bf16.mxu0 %v3026
  %3129 = vmatpush1.bf16.msra.mxu0 %v3025
  %3130 = vmatprep.subr.bf16.mxu0 %v3030
  %3131 = vmatpush1.bf16.msra.mxu0 %v3029
  %3132 = vmatprep.subr.bf16.mxu0 %v3034
  %3133 = vmatpush1.bf16.msra.mxu0 %v3033
  %3134 = vmatprep.subr.bf16.mxu0 %v3038
  %3135 = vmatpush1.bf16.msra.mxu0 %v3037
  %3136 = vmatprep.subr.bf16.mxu0 %v3042
  %3137 = vmatpush1.bf16.msra.mxu0 %v3041
  %3138 = vmatprep.subr.bf16.mxu0 %v3046
  %3139 = vmatpush1.bf16.msra.mxu0 %v3045
  %3140 = vmatprep.subr.bf16.mxu0 %v3050
  %3141 = vmatpush1.bf16.msra.mxu0 %v3049
  %3142 = vmatprep.subr.bf16.mxu0 %v3054
  %3143 = vmatpush1.bf16.msra.mxu0 %v3053
  %3144 = vmatprep.mubr.bf16.mxu0 %v3066
  %3145 = vmatmul.mubr.bf16.gmra.mrb[0].mxu0 %v3065
  %v3146 = vpop.f32.mrb[0].mxu0
  %v3147 = vadd.f32 %v3106, %v3146
  %v3148 = vpop.f32.mrb[0].mxu0
  %v3149 = vadd.f32 %v3108, %v3148
  %v3150 = vpop.f32.mrb[0].mxu0
  %v3151 = vpop.f32.mrb[0].mxu0
  %3152 = vdwg.mxu0
  %3153 = vmatprep.subr.bf16.mxu0 %v2932
  %3154 = vmatpush1.bf16.msra.mxu0 %v2931
  %3155 = vmatprep.subr.bf16.mxu0 %v2936
  %3156 = vmatpush1.bf16.msra.mxu0 %v2935
  %3157 = vmatprep.subr.bf16.mxu0 %v2940
  %3158 = vmatpush1.bf16.msra.mxu0 %v2939
  %3159 = vmatprep.subr.bf16.mxu0 %v2944
  %3160 = vmatpush1.bf16.msra.mxu0 %v2943
  %3161 = vmatprep.subr.bf16.mxu0 %v2948
  %3162 = vmatpush1.bf16.msra.mxu0 %v2947
  %3163 = vmatprep.subr.bf16.mxu0 %v2952
  %3164 = vmatpush1.bf16.msra.mxu0 %v2951
  %3165 = vmatprep.subr.bf16.mxu0 %v2956
  %3166 = vmatpush1.bf16.msra.mxu0 %v2955
  %3167 = vmatprep.subr.bf16.mxu0 %v2960
  %3168 = vmatpush1.bf16.msra.mxu0 %v2959
  %3169 = vmatprep.subr.bf16.mxu0 %v2964
  %3170 = vmatpush1.bf16.msra.mxu0 %v2963
  %3171 = vmatprep.subr.bf16.mxu0 %v2968
  %3172 = vmatpush1.bf16.msra.mxu0 %v2967
  %3173 = vmatprep.subr.bf16.mxu0 %v2972
  %3174 = vmatpush1.bf16.msra.mxu0 %v2971
  %3175 = vmatprep.subr.bf16.mxu0 %v2976
  %3176 = vmatpush1.bf16.msra.mxu0 %v2975
  %3177 = vmatprep.subr.bf16.mxu0 %v2980
  %3178 = vmatpush1.bf16.msra.mxu0 %v2979
  %3179 = vmatprep.subr.bf16.mxu0 %v2984
  %3180 = vmatpush1.bf16.msra.mxu0 %v2983
  %3181 = vmatprep.subr.bf16.mxu0 %v2988
  %3182 = vmatpush1.bf16.msra.mxu0 %v2987
  %3183 = vmatprep.subr.bf16.mxu0 %v2992
  %3184 = vmatpush1.bf16.msra.mxu0 %v2991
  %3185 = vmatprep.mubr.bf16.mxu0 %v3064
  %3186 = vmatmul.mubr.bf16.gmra.mrb[0].mxu0 %v3063
  %v3187 = vpop.f32.mrb[0].mxu0
  %v3188 = vadd.f32 0.0, %v3187
  %v3189 = vpop.f32.mrb[0].mxu0
  %v3190 = vadd.f32 0.0, %v3189
  %v3191 = vpop.f32.mrb[0].mxu0
  %v3192 = vpop.f32.mrb[0].mxu0
  %3193 = vdwg.mxu0
  %3194 = vmatprep.subr.bf16.mxu0 %v2996
  %3195 = vmatpush1.bf16.msra.mxu0 %v2995
  %3196 = vmatprep.subr.bf16.mxu0 %v3000
  %3197 = vmatpush1.bf16.msra.mxu0 %v2999
  %3198 = vmatprep.subr.bf16.mxu0 %v3004
  %3199 = vmatpush1.bf16.msra.mxu0 %v3003
  %3200 = vmatprep.subr.bf16.mxu0 %v3008
  %3201 = vmatpush1.bf16.msra.mxu0 %v3007
  %3202 = vmatprep.subr.bf16.mxu0 %v3012
  %3203 = vmatpush1.bf16.msra.mxu0 %v3011
  %3204 = vmatprep.subr.bf16.mxu0 %v3016
  %3205 = vmatpush1.bf16.msra.mxu0 %v3015
  %3206 = vmatprep.subr.bf16.mxu0 %v3020
  %3207 = vmatpush1.bf16.msra.mxu0 %v3019
  %3208 = vmatprep.subr.bf16.mxu0 %v3024
  %3209 = vmatpush1.bf16.msra.mxu0 %v3023
  %3210 = vmatprep.subr.bf16.mxu0 %v3028
  %3211 = vmatpush1.bf16.msra.mxu0 %v3027
  %3212 = vmatprep.subr.bf16.mxu0 %v3032
  %3213 = vmatpush1.bf16.msra.mxu0 %v3031
  %3214 = vmatprep.subr.bf16.mxu0 %v3036
  %3215 = vmatpush1.bf16.msra.mxu0 %v3035
  %3216 = vmatprep.subr.bf16.mxu0 %v3040
  %3217 = vmatpush1.bf16.msra.mxu0 %v3039
  %3218 = vmatprep.subr.bf16.mxu0 %v3044
  %3219 = vmatpush1.bf16.msra.mxu0 %v3043
  %3220 = vmatprep.subr.bf16.mxu0 %v3048
  %3221 = vmatpush1.bf16.msra.mxu0 %v3047
  %3222 = vmatprep.subr.bf16.mxu0 %v3052
  %3223 = vmatpush1.bf16.msra.mxu0 %v3051
  %3224 = vmatprep.subr.bf16.mxu0 %v3056
  %3225 = vmatpush1.bf16.msra.mxu0 %v3055
  %3226 = vmatprep.mubr.bf16.mxu0 %v3066
  %3227 = vmatmul.mubr.bf16.gmra.mrb[0].mxu0 %v3065
  %v3228 = vpop.f32.mrb[0].mxu0
  %v3229 = vadd.f32 %v3188, %v3228
  %v3230 = vpop.f32.mrb[0].mxu0
  %v3231 = vadd.f32 %v3190, %v3230
  %v3232 = vpop.f32.mrb[0].mxu0
  %v3233 = vpop.f32.mrb[0].mxu0
  %3234 = vdwg.mxu0
  %3235 = vst [vmem:[%s3] sm:$0xff] %v3147
  %3236 = vst [vmem:[%s3 + $0x8] sm:$0xff] %v3149
  %s3237 = scalar_lea.vmem %s3, 16
  %3238 = vst [vmem:[%s3237] sm:$0xff] %v3229
  %3239 = vst [vmem:[%s3237 + $0x8] sm:$0xff] %v3231
  // Predicated region
  $region14: #{_lambda_.1} parent=0 // pred_check
    _
  $region15: #{_lambda_.1} parent=0 // pred_check_branch
    %3241 = sbr.rel (0) target = $region17
  $region16: #{_lambda_.1} parent=0 // pred_region
    _
  $region17: #{_lambda_.1} parent=0 // pred_fallthru
    _
  // Predicated region
  $region18: #{_lambda_.1} parent=0 // pred_check
    _
  $region19: #{_lambda_.1} parent=0 // pred_check_branch
    %3243 = sbr.rel (0) target = $region21
  $region20: #{_lambda_.1} parent=0 // pred_region
    _
  $region21: #{_lambda_.1} parent=0 // pred_fallthru
    _

</llo_original>
